<compile_context>
chip_gen: v7x
topology: tpu7x:2x2x1
jax: 0.10.0
libtpu: 0.0.40
codegen_flags: <defaults>
</compile_context>

<pallas_src>
import functools

import jax
import jax.numpy as jnp
from jax.experimental import pallas as pl
from jax.experimental.pallas import tpu as pltpu


def encoder_kernel(x_ref, amask_ref, pmask_ref,
                   w_in_ref, b_in_ref, w_out_ref, b_out_ref,
                   g1_ref, beta1_ref,
                   w_inc_ref, b_inc_ref, w_dec_ref, b_dec_ref,
                   g2_ref, beta2_ref,
                   o_ref,
                   ctx_ref,
                   *, num_heads, head_dim, ff_chunk):
    # NT matmul: contract the last dim of both operands (A @ B.T without a
    # materialized transpose).
    NT = (((1,), (1,)), ((), ()))

    x = x_ref[0]                                   # [S, E] f32 (residual path)
    S, E = x.shape
    x_bf = x.astype(jnp.bfloat16)

    # ---- multi-head self attention --------------------------------------
    # in_projection: one wide MXU matmul (K=E, N=3E -> best MXU fill), weights
    # pre-transposed and query scaling already folded into the q rows of
    # w_in / b_in.  Bias added in f32, then a single bf16 cast: only the bf16
    # [S, 3E] qkv stays live (no f32 copy, no duplicate).
    qkv = (jnp.dot(x_bf, w_in_ref[...], preferred_element_type=jnp.float32)
           + b_in_ref[...]).astype(jnp.bfloat16)             # [S, 3E] bf16

    # Mask work hoisted out of the per-head loop: broadcast/compare once.
    amask = amask_ref[0].astype(jnp.float32)                 # [S, S] additive mask
    pad = jnp.broadcast_to(pmask_ref[0] > 0.5, (S, S))       # [S, S] bool (key padding)

    # Per-head attention.  Each head's context is stored into the [S, E] bf16
    # VMEM scratch at its static column slice; the out-projection is done ONCE
    # after the loop as a single K=E matmul.
    # Exact torch semantics: scores = masked_fill(scores + amask, pad, -10000).
    for h in range(num_heads):
        lo = h * head_dim
        qh = qkv[:, 0 * E + lo: 0 * E + lo + head_dim]       # [S, D] bf16 (pre-scaled)
        kh = qkv[:, 1 * E + lo: 1 * E + lo + head_dim]
        vh = qkv[:, 2 * E + lo: 2 * E + lo + head_dim]

        scores = jax.lax.dot_general(qh, kh, NT,
                                     preferred_element_type=jnp.float32)   # [S, S]
        scores = jnp.where(pad, jnp.float32(-10000.0), scores + amask)

        # softmax over the key axis (f32, matches the torch float path).
        # NOTE: approx reciprocal (EUP) deviates from exact division at the
        # last-ulp level; use approx=False if bit parity with torch matters.
        m = jnp.max(scores, axis=-1, keepdims=True)
        p = jnp.exp(scores - m)
        p = p * pl.reciprocal(jnp.sum(p, axis=-1, keepdims=True), approx=True)
        # TODO(synk): attention dropout skipped (inference / eval semantics)

        ctx = jnp.dot(p.astype(jnp.bfloat16), vh,
                      preferred_element_type=jnp.float32)                   # [S, D]
        ctx_ref[:, lo: lo + head_dim] = ctx.astype(jnp.bfloat16)

    # single out-projection: [S,E] @ [E,E], contraction K=E (full MXU depth)
    attn = jnp.dot(ctx_ref[...], w_out_ref[...],
                   preferred_element_type=jnp.float32) + b_out_ref[...]

    # residual + LayerNorm (norm_attention); dropout_attention == identity (eval)
    x1 = x + attn
    mu = jnp.mean(x1, axis=-1, keepdims=True)
    var = jnp.mean(jnp.square(x1 - mu), axis=-1, keepdims=True)
    x1 = (x1 - mu) * jax.lax.rsqrt(var + 1e-5) * g1_ref[...] + beta1_ref[...]

    # ---- position-wise feed forward (Conv1d k=1 == pointwise linear) ------
    # Chunked along FF so the [S, FF] intermediate is never materialized; only
    # [S, ff_chunk] (f32 + bf16) is live per chunk.  All slices are static.
    x1_bf = x1.astype(jnp.bfloat16)
    FF = w_inc_ref.shape[1]
    y = jnp.zeros((S, E), jnp.float32)
    for cs in range(0, FF, ff_chunk):
        ce = min(cs + ff_chunk, FF)
        h1 = (jnp.dot(x1_bf, w_inc_ref[:, cs:ce],
                      preferred_element_type=jnp.float32) + b_inc_ref[:, cs:ce])
        h1 = jnp.maximum(h1, 0.0).astype(jnp.bfloat16)       # ReLU
        # TODO(synk): FFN dropout skipped (inference / eval semantics)
        y = y + jnp.dot(h1, w_dec_ref[cs:ce, :],
                        preferred_element_type=jnp.float32)
    y = y + b_dec_ref[...]

    # residual + LayerNorm (norm_feed_forward); dropout_feed_forward == identity
    x2 = x1 + y
    mu2 = jnp.mean(x2, axis=-1, keepdims=True)
    var2 = jnp.mean(jnp.square(x2 - mu2), axis=-1, keepdims=True)
    x2 = (x2 - mu2) * jax.lax.rsqrt(var2 + 1e-5) * g2_ref[...] + beta2_ref[...]

    # TODO(synk): emit bf16 here (halves the output DMA) if the consumer of this
    #             layer accepts bf16; f32 kept to match the torch module.
    o_ref[0] = x2.astype(o_ref.dtype)


def prepare_params(params, num_heads):
    """One-time host-side parameter prep: transpose weights for MXU-friendly
    `x @ W_T` matmuls, fold the query scaling into the q rows of the
    in-projection, and cast matmul weights to bf16."""
    E = params["w_out"].shape[0]
    head_dim = E // num_heads
    scaling = float(head_dim) ** (-0.5)

    scale_vec = jnp.concatenate([jnp.full((E,), scaling, jnp.float32),
                                 jnp.ones((2 * E,), jnp.float32)])
    w_in = params["w_in"] * scale_vec[:, None]       # [3E, E]
    b_in = params["b_in"] * scale_vec                # [3E]

    f32 = jnp.float32
    return {
        "w_in_t":  w_in.T.astype(jnp.bfloat16),             # [E, 3E]
        "b_in":    b_in.reshape(1, -1).astype(f32),
        "w_out_t": params["w_out"].T.astype(jnp.bfloat16),  # [E, E]
        "b_out":   params["b_out"].reshape(1, -1).astype(f32),
        "w_inc_t": params["w_inc"].T.astype(jnp.bfloat16),  # [E, FF]
        "b_inc":   params["b_inc"].reshape(1, -1).astype(f32),
        "w_dec_t": params["w_dec"].T.astype(jnp.bfloat16),  # [FF, E]
        "b_dec":   params["b_dec"].reshape(1, -1).astype(f32),
        "gamma1":  params["gamma1"].reshape(1, -1).astype(f32),
        "beta1":   params["beta1"].reshape(1, -1).astype(f32),
        "gamma2":  params["gamma2"].reshape(1, -1).astype(f32),
        "beta2":   params["beta2"].reshape(1, -1).astype(f32),
    }


def _vmem_limit_bytes():
    # ~84% of the physical per-core VMEM of the chip we are running on:
    # ~108 MiB on v5e/v6e (128 MiB phys), ~54 MiB on v7x (64 MiB phys) —
    # leaves headroom for Mosaic internal scratch / semaphores.
    try:
        cap = int(pltpu.get_tpu_info().vmem_capacity_bytes)
        return (cap * 27) // 32
    except Exception:
        return 64 * 1024 * 1024


def transformer_encoder(x_sbe, attention_mask, padding_mask, prepped, num_heads,
                        ff_chunk=2048):
    """x_sbe: [S, B, E]; attention_mask: [B, S, S] (additive, float);
    padding_mask: [B, S] (nonzero => padded).  Returns [S, B, E] f32."""
    S, B, E = x_sbe.shape
    assert E % num_heads == 0
    head_dim = E // num_heads
    FF = prepped["w_inc_t"].shape[1]
    ff_chunk = min(ff_chunk, FF)       # multiple of 256 at realistic FF (MXU fill)

    # Batch-major relayout done ONCE in HBM: an (S, 1, E) block over the native
    # [S, B, E] layout would put a size-1 block dim on the second-minor axis
    # (B > 1), violating the Mosaic (8, 128) block constraint, so we tile the
    # transposed [B, S, E] array with full-extent (S, E) tiles instead.
    # TODO(synk): for B == 1 (or B padded to a multiple of 8) tile [S, B, E]
    #             directly and drop both wrapper transposes.
    x = jnp.transpose(x_sbe, (1, 0, 2)).astype(jnp.float32)      # [B, S, E]
    # bf16 additive mask halves the per-step HBM traffic; the add is done in f32
    # inside the kernel.  (A batch-invariant mask could use a constant index_map
    # and be fetched once.)
    amask = attention_mask.astype(jnp.bfloat16)                  # [B, S, S]
    pmask = padding_mask.astype(jnp.float32).reshape(B, 1, S)    # [B, 1, S]

    kernel = functools.partial(encoder_kernel, num_heads=num_heads,
                               head_dim=head_dim, ff_chunk=ff_chunk)

    def build(single_buffer_consts):
        cs_kwargs = ({"pipeline_mode": pl.Buffered(1)}
                     if single_buffer_consts else {})

        def const_spec(shape):
            # weight / bias blocks: constant block index -> fetched once; single
            # buffering (Buffered(1)) halves their resident VMEM footprint.
            return pl.BlockSpec(shape, lambda b: (0,) * len(shape), **cs_kwargs)

        return pl.pallas_call(
            kernel,
            out_shape=jax.ShapeDtypeStruct((B, S, E), jnp.float32),
            grid=(B,),
            in_specs=[
                pl.BlockSpec((1, S, E), lambda b: (b, 0, 0)),   # x
                pl.BlockSpec((1, S, S), lambda b: (b, 0, 0)),   # attention_mask (bf16)
                pl.BlockSpec((1, 1, S), lambda b: (b, 0, 0)),   # padding_mask
                const_spec((E, 3 * E)),                         # in_projection weight^T (bf16)
                const_spec((1, 3 * E)),                         # in_projection bias
                const_spec((E, E)),                             # out_projection weight^T (bf16)
                const_spec((1, E)),                             # out_projection bias
                const_spec((1, E)),                             # norm_attention gamma
                const_spec((1, E)),                             # norm_attention beta
                const_spec((E, FF)),                            # ffn increase weight^T (bf16)
                const_spec((1, FF)),                            # ffn increase bias
                const_spec((FF, E)),                            # ffn decrease weight^T (bf16)
                const_spec((1, E)),                             # ffn decrease bias
                const_spec((1, E)),                             # norm_feed_forward gamma
                const_spec((1, E)),                             # norm_feed_forward beta
            ],
            out_specs=pl.BlockSpec((1, S, E), lambda b: (b, 0, 0)),
            scratch_shapes=[pltpu.VMEM((S, E), jnp.bfloat16)],  # per-head ctx slab
            compiler_params=pltpu.CompilerParams(
                dimension_semantics=("parallel",),
                vmem_limit_bytes=_vmem_limit_bytes(),
            ),
        )

    call_args = (x, amask, pmask,
                 prepped["w_in_t"], prepped["b_in"],
                 prepped["w_out_t"], prepped["b_out"],
                 prepped["gamma1"], prepped["beta1"],
                 prepped["w_inc_t"], prepped["b_inc"],
                 prepped["w_dec_t"], prepped["b_dec"],
                 prepped["gamma2"], prepped["beta2"])

    try:
        out = build(True)(*call_args)
    except Exception:
        # Older/newer jax builds may reject pipeline_mode on pallas_call
        # BlockSpecs; retry with default double-buffered weight blocks.
        out = build(False)(*call_args)

    return jnp.transpose(out, (1, 0, 2))                         # [S, B, E]


def init_params(key, model_dim, feed_forward_dim):
    E, FF = model_dim, feed_forward_dim
    ks = jax.random.split(key, 8)
    s = 0.1
    return {
        # MultiHeadSelfAttention (torch Linear layout: [out, in])
        "w_in":  s * jax.random.normal(ks[0], (3 * E, E), jnp.float32),
        "b_in":  s * jax.random.normal(ks[1], (3 * E,), jnp.float32),
        "w_out": s * jax.random.normal(ks[2], (E, E), jnp.float32),
        "b_out": s * jax.random.normal(ks[3], (E,), jnp.float32),
        # PositionWiseFeedForwardLayer (Conv1d kernel_size=1 weights, squeezed)
        "w_inc": s * jax.random.normal(ks[4], (FF, E), jnp.float32),
        "b_inc": s * jax.random.normal(ks[5], (FF,), jnp.float32),
        "w_dec": s * jax.random.normal(ks[6], (E, FF), jnp.float32),
        "b_dec": s * jax.random.normal(ks[7], (E,), jnp.float32),
        # LayerNorms (torch default init)
        "gamma1": jnp.ones((E,), jnp.float32),
        "beta1":  jnp.zeros((E,), jnp.float32),
        "gamma2": jnp.ones((E,), jnp.float32),
        "beta2":  jnp.zeros((E,), jnp.float32),
    }


def reference_encoder(x_sbe, attention_mask, padding_mask, params, num_heads):
    """Pure-JAX f32 reference mirroring the torch module (eval mode)."""
    S, B, E = x_sbe.shape
    D = E // num_heads
    x = jnp.transpose(x_sbe, (1, 0, 2))                                  # [B,S,E]
    qkv = jnp.einsum('bse,fe->bsf', x, params["w_in"]) + params["b_in"]
    q, k, v = jnp.split(qkv, 3, axis=-1)
    q = q * (float(D) ** (-0.5))
    q = q.reshape(B, S, num_heads, D).transpose(0, 2, 1, 3)              # [B,H,S,D]
    k = k.reshape(B, S, num_heads, D).transpose(0, 2, 1, 3)
    v = v.reshape(B, S, num_heads, D).transpose(0, 2, 1, 3)
    scores = jnp.einsum('bhqd,bhkd->bhqk', q, k) + attention_mask[:, None, :, :]
    pad = padding_mask[:, None, None, :] > 0.5
    scores = jnp.where(pad, -10000.0, scores)
    p = jax.nn.softmax(scores, axis=-1)
    ctx = jnp.einsum('bhqk,bhkd->bhqd', p, v)
    ctx = ctx.transpose(0, 2, 1, 3).reshape(B, S, E)
    attn = jnp.einsum('bse,fe->bsf', ctx, params["w_out"]) + params["b_out"]

    def ln(z, g, b):
        mu = z.mean(-1, keepdims=True)
        var = jnp.square(z - mu).mean(-1, keepdims=True)
        return (z - mu) * jax.lax.rsqrt(var + 1e-5) * g + b

    x1 = ln(x + attn, params["gamma1"], params["beta1"])
    h = jnp.maximum(jnp.einsum('bse,fe->bsf', x1, params["w_inc"]) + params["b_inc"], 0.0)
    y = jnp.einsum('bsf,ef->bse', h, params["w_dec"]) + params["b_dec"]
    x2 = ln(x1 + y, params["gamma2"], params["beta2"])
    return jnp.transpose(x2, (1, 0, 2))                                  # [S,B,E]


if __name__ == "__main__":
    S, B, E, H, FF = 8, 2, 32, 4, 64

    key = jax.random.PRNGKey(0)
    kx, ka, kp = jax.random.split(key, 3)

    x = jax.random.normal(kx, (S, B, E), jnp.float32)                 # [seq, batch, embed]
    attention_mask = 0.1 * jax.random.normal(ka, (B, S, S), jnp.float32)
    padding_mask = jnp.zeros((B, S), jnp.float32).at[1, S - 1].set(1.0)

    params = init_params(kp, E, FF)
    prepped = prepare_params(params, num_heads=H)   # one-time host-side weight prep

    out = transformer_encoder(x, attention_mask, padding_mask, prepped, num_heads=H)
    out = jax.block_until_ready(out)
    assert out.shape == (S, B, E)

    # loose tolerance: kernel uses bf16 matmul operands, f32 softmax/LN math
    ref = reference_encoder(x, attention_mask, padding_mask, params, num_heads=H)
    max_err = float(jnp.max(jnp.abs(out - ref)))
    assert max_err < 0.3, f"kernel deviates from f32 reference: {max_err}"

    print("KERNEL_OK")
</pallas_src>

<mosaic_0001>
module attributes {stable_mosaic.version = 11 : i64} {
  func.func @encoder_kernel(%arg0: i32, %arg1: memref<1x8x32xf32, #tpu.memory_space<vmem>>, %arg2: memref<1x8x8xbf16, #tpu.memory_space<vmem>>, %arg3: memref<1x1x8xf32, #tpu.memory_space<vmem>>, %arg4: memref<32x96xbf16, #tpu.memory_space<vmem>>, %arg5: memref<1x96xf32, #tpu.memory_space<vmem>>, %arg6: memref<32x32xbf16, #tpu.memory_space<vmem>>, %arg7: memref<1x32xf32, #tpu.memory_space<vmem>>, %arg8: memref<1x32xf32, #tpu.memory_space<vmem>>, %arg9: memref<1x32xf32, #tpu.memory_space<vmem>>, %arg10: memref<32x64xbf16, #tpu.memory_space<vmem>>, %arg11: memref<1x64xf32, #tpu.memory_space<vmem>>, %arg12: memref<64x32xbf16, #tpu.memory_space<vmem>>, %arg13: memref<1x32xf32, #tpu.memory_space<vmem>>, %arg14: memref<1x32xf32, #tpu.memory_space<vmem>>, %arg15: memref<1x32xf32, #tpu.memory_space<vmem>>, %arg16: memref<1x8x32xf32, #tpu.memory_space<vmem>>, %arg17: memref<8x32xbf16, #tpu.memory_space<vmem>>) attributes {dimension_semantics = [#tpu.dimension_semantics<parallel>], iteration_bounds = array<i64: 2>, scalar_prefetch = 0 : i64, scratch_operands = 1 : i64, tpu.core_type = #tpu.core_type<tc>, window_params = [{transform_indices = @transform_0, window_bounds = array<i64: 1, 8, 32>}, {transform_indices = @transform_1, window_bounds = array<i64: 1, 8, 8>}, {transform_indices = @transform_2, window_bounds = array<i64: 1, 1, 8>}, {pipeline_mode = #tpu.pipeline_mode<synchronous>, transform_indices = @transform_3, window_bounds = array<i64: 32, 96>}, {pipeline_mode = #tpu.pipeline_mode<synchronous>, transform_indices = @transform_4, window_bounds = array<i64: 1, 96>}, {pipeline_mode = #tpu.pipeline_mode<synchronous>, transform_indices = @transform_5, window_bounds = array<i64: 32, 32>}, {pipeline_mode = #tpu.pipeline_mode<synchronous>, transform_indices = @transform_6, window_bounds = array<i64: 1, 32>}, {pipeline_mode = #tpu.pipeline_mode<synchronous>, transform_indices = @transform_7, window_bounds = array<i64: 1, 32>}, {pipeline_mode = #tpu.pipeline_mode<synchronous>, transform_indices = @transform_8, window_bounds = array<i64: 1, 32>}, {pipeline_mode = #tpu.pipeline_mode<synchronous>, transform_indices = @transform_9, window_bounds = array<i64: 32, 64>}, {pipeline_mode = #tpu.pipeline_mode<synchronous>, transform_indices = @transform_10, window_bounds = array<i64: 1, 64>}, {pipeline_mode = #tpu.pipeline_mode<synchronous>, transform_indices = @transform_11, window_bounds = array<i64: 64, 32>}, {pipeline_mode = #tpu.pipeline_mode<synchronous>, transform_indices = @transform_12, window_bounds = array<i64: 1, 32>}, {pipeline_mode = #tpu.pipeline_mode<synchronous>, transform_indices = @transform_13, window_bounds = array<i64: 1, 32>}, {pipeline_mode = #tpu.pipeline_mode<synchronous>, transform_indices = @transform_14, window_bounds = array<i64: 1, 32>}, {transform_indices = @transform_15, window_bounds = array<i64: 1, 8, 32>}]} {
    %c0 = arith.constant 0 : index
    %c0_0 = arith.constant 0 : index
    %c0_1 = arith.constant 0 : index
    %0 = vector.load %arg1[%c0, %c0_0, %c0_1] : memref<1x8x32xf32, #tpu.memory_space<vmem>>, vector<1x8x32xf32>
    %1 = vector.shape_cast %0 : vector<1x8x32xf32> to vector<8x32xf32>
    %2 = arith.truncf %1 : vector<8x32xf32> to vector<8x32xbf16>
    %c0_2 = arith.constant 0 : index
    %c0_3 = arith.constant 0 : index
    %3 = vector.load %arg4[%c0_2, %c0_3] : memref<32x96xbf16, #tpu.memory_space<vmem>>, vector<32x96xbf16>
    %cst = arith.constant dense<0.000000e+00> : vector<8x96xf32>
    %4 = tpu.matmul %2, %3, %cst {dimension_numbers = #tpu.dot_dimension_numbers<[1], [0], [0], [1], [0, 0, 1, 1], [], []>} : vector<8x32xbf16>, vector<32x96xbf16>, vector<8x96xf32> -> vector<8x96xf32>
    %c0_4 = arith.constant 0 : index
    %c0_5 = arith.constant 0 : index
    %5 = vector.load %arg5[%c0_4, %c0_5] : memref<1x96xf32, #tpu.memory_space<vmem>>, vector<1x96xf32>
    %6 = vector.broadcast %5 : vector<1x96xf32> to vector<8x96xf32>
    %7 = arith.addf %4, %6 : vector<8x96xf32>
    %8 = arith.truncf %7 : vector<8x96xf32> to vector<8x96xbf16>
    %c0_6 = arith.constant 0 : index
    %c0_7 = arith.constant 0 : index
    %c0_8 = arith.constant 0 : index
    %9 = vector.load %arg2[%c0_6, %c0_7, %c0_8] : memref<1x8x8xbf16, #tpu.memory_space<vmem>>, vector<1x8x8xbf16>
    %10 = vector.shape_cast %9 : vector<1x8x8xbf16> to vector<8x8xbf16>
    %11 = arith.extf %10 : vector<8x8xbf16> to vector<8x8xf32>
    %c0_9 = arith.constant 0 : index
    %c0_10 = arith.constant 0 : index
    %c0_11 = arith.constant 0 : index
    %12 = vector.load %arg3[%c0_9, %c0_10, %c0_11] : memref<1x1x8xf32, #tpu.memory_space<vmem>>, vector<1x1x8xf32>
    %13 = vector.shape_cast %12 : vector<1x1x8xf32> to vector<1x8xf32>
    %cst_12 = arith.constant 5.000000e-01 : f32
    %14 = vector.broadcast %cst_12 : f32 to vector<1x8xf32>
    %15 = arith.cmpf ogt, %13, %14 : vector<1x8xf32>
    %16 = vector.shape_cast %15 : vector<1x8xi1> to vector<1x8xi1>
    %17 = vector.broadcast %16 : vector<1x8xi1> to vector<8x8xi1>
    %18 = vector.extract_strided_slice %8 {offsets = [0, 0], sizes = [8, 8], strides = [1, 1]} : vector<8x96xbf16> to vector<8x8xbf16>
    %19 = vector.extract_strided_slice %8 {offsets = [0, 32], sizes = [8, 8], strides = [1, 1]} : vector<8x96xbf16> to vector<8x8xbf16>
    %20 = vector.extract_strided_slice %8 {offsets = [0, 64], sizes = [8, 8], strides = [1, 1]} : vector<8x96xbf16> to vector<8x8xbf16>
    %cst_13 = arith.constant dense<0.000000e+00> : vector<8x8xf32>
    %21 = tpu.matmul %18, %19, %cst_13 {dimension_numbers = #tpu.dot_dimension_numbers<[1], [1], [0], [0], [0, 0, 1, 0], [], []>} : vector<8x8xbf16>, vector<8x8xbf16>, vector<8x8xf32> -> vector<8x8xf32>
    %22 = arith.addf %21, %11 : vector<8x8xf32>
    %cst_14 = arith.constant -1.000000e+04 : f32
    %23 = vector.broadcast %cst_14 : f32 to vector<8x8xf32>
    %24 = arith.select %17, %23, %22 : vector<8x8xi1>, vector<8x8xf32>
    %cst_15 = arith.constant dense<0xFF800000> : vector<8xf32>
    %25 = vector.multi_reduction <maximumf>, %24, %cst_15 [1] : vector<8x8xf32> to vector<8xf32>
    %26 = vector.shape_cast %25 : vector<8xf32> to vector<8x1xf32>
    %27 = vector.broadcast %26 : vector<8x1xf32> to vector<8x8xf32>
    %28 = arith.subf %24, %27 : vector<8x8xf32>
    %29 = math.exp %28 : vector<8x8xf32>
    %cst_16 = arith.constant dense<0.000000e+00> : vector<8xf32>
    %30 = vector.multi_reduction <add>, %29, %cst_16 [1] : vector<8x8xf32> to vector<8xf32>
    %31 = vector.shape_cast %30 : vector<8xf32> to vector<8x1xf32>
    %32 = tpu.reciprocal %31 {approx = true} : vector<8x1xf32> -> vector<8x1xf32>
    %33 = vector.broadcast %32 : vector<8x1xf32> to vector<8x8xf32>
    %34 = arith.mulf %29, %33 : vector<8x8xf32>
    %35 = arith.truncf %34 : vector<8x8xf32> to vector<8x8xbf16>
    %cst_17 = arith.constant dense<0.000000e+00> : vector<8x8xf32>
    %36 = tpu.matmul %35, %20, %cst_17 {dimension_numbers = #tpu.dot_dimension_numbers<[1], [0], [0], [1], [0, 0, 1, 1], [], []>} : vector<8x8xbf16>, vector<8x8xbf16>, vector<8x8xf32> -> vector<8x8xf32>
    %37 = arith.truncf %36 : vector<8x8xf32> to vector<8x8xbf16>
    %c0_18 = arith.constant 0 : index
    %c0_19 = arith.constant 0 : index
    %38 = vector.load %arg17[%c0_18, %c0_19] : memref<8x32xbf16, #tpu.memory_space<vmem>>, vector<8x8xbf16>
    tpu.vector_store %arg17[%c0_18, %c0_19], %37 {strides = array<i32>} : memref<8x32xbf16, #tpu.memory_space<vmem>>, vector<8x8xbf16>,
    %39 = vector.extract_strided_slice %8 {offsets = [0, 8], sizes = [8, 8], strides = [1, 1]} : vector<8x96xbf16> to vector<8x8xbf16>
    %40 = vector.extract_strided_slice %8 {offsets = [0, 40], sizes = [8, 8], strides = [1, 1]} : vector<8x96xbf16> to vector<8x8xbf16>
    %41 = vector.extract_strided_slice %8 {offsets = [0, 72], sizes = [8, 8], strides = [1, 1]} : vector<8x96xbf16> to vector<8x8xbf16>
    %cst_20 = arith.constant dense<0.000000e+00> : vector<8x8xf32>
    %42 = tpu.matmul %39, %40, %cst_20 {dimension_numbers = #tpu.dot_dimension_numbers<[1], [1], [0], [0], [0, 0, 1, 0], [], []>} : vector<8x8xbf16>, vector<8x8xbf16>, vector<8x8xf32> -> vector<8x8xf32>
    %43 = arith.addf %42, %11 : vector<8x8xf32>
    %cst_21 = arith.constant -1.000000e+04 : f32
    %44 = vector.broadcast %cst_21 : f32 to vector<8x8xf32>
    %45 = arith.select %17, %44, %43 : vector<8x8xi1>, vector<8x8xf32>
    %cst_22 = arith.constant dense<0xFF800000> : vector<8xf32>
    %46 = vector.multi_reduction <maximumf>, %45, %cst_22 [1] : vector<8x8xf32> to vector<8xf32>
    %47 = vector.shape_cast %46 : vector<8xf32> to vector<8x1xf32>
    %48 = vector.broadcast %47 : vector<8x1xf32> to vector<8x8xf32>
    %49 = arith.subf %45, %48 : vector<8x8xf32>
    %50 = math.exp %49 : vector<8x8xf32>
    %cst_23 = arith.constant dense<0.000000e+00> : vector<8xf32>
    %51 = vector.multi_reduction <add>, %50, %cst_23 [1] : vector<8x8xf32> to vector<8xf32>
    %52 = vector.shape_cast %51 : vector<8xf32> to vector<8x1xf32>
    %53 = tpu.reciprocal %52 {approx = true} : vector<8x1xf32> -> vector<8x1xf32>
    %54 = vector.broadcast %53 : vector<8x1xf32> to vector<8x8xf32>
    %55 = arith.mulf %50, %54 : vector<8x8xf32>
    %56 = arith.truncf %55 : vector<8x8xf32> to vector<8x8xbf16>
    %cst_24 = arith.constant dense<0.000000e+00> : vector<8x8xf32>
    %57 = tpu.matmul %56, %41, %cst_24 {dimension_numbers = #tpu.dot_dimension_numbers<[1], [0], [0], [1], [0, 0, 1, 1], [], []>} : vector<8x8xbf16>, vector<8x8xbf16>, vector<8x8xf32> -> vector<8x8xf32>
    %58 = arith.truncf %57 : vector<8x8xf32> to vector<8x8xbf16>
    %c0_25 = arith.constant 0 : index
    %c8 = arith.constant 8 : index
    %59 = vector.load %arg17[%c0_25, %c8] : memref<8x32xbf16, #tpu.memory_space<vmem>>, vector<8x8xbf16>
    tpu.vector_store %arg17[%c0_25, %c8], %58 {strides = array<i32>} : memref<8x32xbf16, #tpu.memory_space<vmem>>, vector<8x8xbf16>,
    %60 = vector.extract_strided_slice %8 {offsets = [0, 16], sizes = [8, 8], strides = [1, 1]} : vector<8x96xbf16> to vector<8x8xbf16>
    %61 = vector.extract_strided_slice %8 {offsets = [0, 48], sizes = [8, 8], strides = [1, 1]} : vector<8x96xbf16> to vector<8x8xbf16>
    %62 = vector.extract_strided_slice %8 {offsets = [0, 80], sizes = [8, 8], strides = [1, 1]} : vector<8x96xbf16> to vector<8x8xbf16>
    %cst_26 = arith.constant dense<0.000000e+00> : vector<8x8xf32>
    %63 = tpu.matmul %60, %61, %cst_26 {dimension_numbers = #tpu.dot_dimension_numbers<[1], [1], [0], [0], [0, 0, 1, 0], [], []>} : vector<8x8xbf16>, vector<8x8xbf16>, vector<8x8xf32> -> vector<8x8xf32>
    %64 = arith.addf %63, %11 : vector<8x8xf32>
    %cst_27 = arith.constant -1.000000e+04 : f32
    %65 = vector.broadcast %cst_27 : f32 to vector<8x8xf32>
    %66 = arith.select %17, %65, %64 : vector<8x8xi1>, vector<8x8xf32>
    %cst_28 = arith.constant dense<0xFF800000> : vector<8xf32>
    %67 = vector.multi_reduction <maximumf>, %66, %cst_28 [1] : vector<8x8xf32> to vector<8xf32>
    %68 = vector.shape_cast %67 : vector<8xf32> to vector<8x1xf32>
    %69 = vector.broadcast %68 : vector<8x1xf32> to vector<8x8xf32>
    %70 = arith.subf %66, %69 : vector<8x8xf32>
    %71 = math.exp %70 : vector<8x8xf32>
    %cst_29 = arith.constant dense<0.000000e+00> : vector<8xf32>
    %72 = vector.multi_reduction <add>, %71, %cst_29 [1] : vector<8x8xf32> to vector<8xf32>
    %73 = vector.shape_cast %72 : vector<8xf32> to vector<8x1xf32>
    %74 = tpu.reciprocal %73 {approx = true} : vector<8x1xf32> -> vector<8x1xf32>
    %75 = vector.broadcast %74 : vector<8x1xf32> to vector<8x8xf32>
    %76 = arith.mulf %71, %75 : vector<8x8xf32>
    %77 = arith.truncf %76 : vector<8x8xf32> to vector<8x8xbf16>
    %cst_30 = arith.constant dense<0.000000e+00> : vector<8x8xf32>
    %78 = tpu.matmul %77, %62, %cst_30 {dimension_numbers = #tpu.dot_dimension_numbers<[1], [0], [0], [1], [0, 0, 1, 1], [], []>} : vector<8x8xbf16>, vector<8x8xbf16>, vector<8x8xf32> -> vector<8x8xf32>
    %79 = arith.truncf %78 : vector<8x8xf32> to vector<8x8xbf16>
    %c0_31 = arith.constant 0 : index
    %c16 = arith.constant 16 : index
    %80 = vector.load %arg17[%c0_31, %c16] : memref<8x32xbf16, #tpu.memory_space<vmem>>, vector<8x8xbf16>
    tpu.vector_store %arg17[%c0_31, %c16], %79 {strides = array<i32>} : memref<8x32xbf16, #tpu.memory_space<vmem>>, vector<8x8xbf16>,
    %81 = vector.extract_strided_slice %8 {offsets = [0, 24], sizes = [8, 8], strides = [1, 1]} : vector<8x96xbf16> to vector<8x8xbf16>
    %82 = vector.extract_strided_slice %8 {offsets = [0, 56], sizes = [8, 8], strides = [1, 1]} : vector<8x96xbf16> to vector<8x8xbf16>
    %83 = vector.extract_strided_slice %8 {offsets = [0, 88], sizes = [8, 8], strides = [1, 1]} : vector<8x96xbf16> to vector<8x8xbf16>
    %cst_32 = arith.constant dense<0.000000e+00> : vector<8x8xf32>
    %84 = tpu.matmul %81, %82, %cst_32 {dimension_numbers = #tpu.dot_dimension_numbers<[1], [1], [0], [0], [0, 0, 1, 0], [], []>} : vector<8x8xbf16>, vector<8x8xbf16>, vector<8x8xf32> -> vector<8x8xf32>
    %85 = arith.addf %84, %11 : vector<8x8xf32>
    %cst_33 = arith.constant -1.000000e+04 : f32
    %86 = vector.broadcast %cst_33 : f32 to vector<8x8xf32>
    %87 = arith.select %17, %86, %85 : vector<8x8xi1>, vector<8x8xf32>
    %cst_34 = arith.constant dense<0xFF800000> : vector<8xf32>
    %88 = vector.multi_reduction <maximumf>, %87, %cst_34 [1] : vector<8x8xf32> to vector<8xf32>
    %89 = vector.shape_cast %88 : vector<8xf32> to vector<8x1xf32>
    %90 = vector.broadcast %89 : vector<8x1xf32> to vector<8x8xf32>
    %91 = arith.subf %87, %90 : vector<8x8xf32>
    %92 = math.exp %91 : vector<8x8xf32>
    %cst_35 = arith.constant dense<0.000000e+00> : vector<8xf32>
    %93 = vector.multi_reduction <add>, %92, %cst_35 [1] : vector<8x8xf32> to vector<8xf32>
    %94 = vector.shape_cast %93 : vector<8xf32> to vector<8x1xf32>
    %95 = tpu.reciprocal %94 {approx = true} : vector<8x1xf32> -> vector<8x1xf32>
    %96 = vector.broadcast %95 : vector<8x1xf32> to vector<8x8xf32>
    %97 = arith.mulf %92, %96 : vector<8x8xf32>
    %98 = arith.truncf %97 : vector<8x8xf32> to vector<8x8xbf16>
    %cst_36 = arith.constant dense<0.000000e+00> : vector<8x8xf32>
    %99 = tpu.matmul %98, %83, %cst_36 {dimension_numbers = #tpu.dot_dimension_numbers<[1], [0], [0], [1], [0, 0, 1, 1], [], []>} : vector<8x8xbf16>, vector<8x8xbf16>, vector<8x8xf32> -> vector<8x8xf32>
    %100 = arith.truncf %99 : vector<8x8xf32> to vector<8x8xbf16>
    %c0_37 = arith.constant 0 : index
    %c24 = arith.constant 24 : index
    %101 = vector.load %arg17[%c0_37, %c24] : memref<8x32xbf16, #tpu.memory_space<vmem>>, vector<8x8xbf16>
    tpu.vector_store %arg17[%c0_37, %c24], %100 {strides = array<i32>} : memref<8x32xbf16, #tpu.memory_space<vmem>>, vector<8x8xbf16>,
    %c0_38 = arith.constant 0 : index
    %c0_39 = arith.constant 0 : index
    %102 = vector.load %arg17[%c0_38, %c0_39] : memref<8x32xbf16, #tpu.memory_space<vmem>>, vector<8x32xbf16>
    %c0_40 = arith.constant 0 : index
    %c0_41 = arith.constant 0 : index
    %103 = vector.load %arg6[%c0_40, %c0_41] : memref<32x32xbf16, #tpu.memory_space<vmem>>, vector<32x32xbf16>
    %cst_42 = arith.constant dense<0.000000e+00> : vector<8x32xf32>
    %104 = tpu.matmul %102, %103, %cst_42 {dimension_numbers = #tpu.dot_dimension_numbers<[1], [0], [0], [1], [0, 0, 1, 1], [], []>} : vector<8x32xbf16>, vector<32x32xbf16>, vector<8x32xf32> -> vector<8x32xf32>
    %c0_43 = arith.constant 0 : index
    %c0_44 = arith.constant 0 : index
    %105 = vector.load %arg7[%c0_43, %c0_44] : memref<1x32xf32, #tpu.memory_space<vmem>>, vector<1x32xf32>
    %106 = vector.broadcast %105 : vector<1x32xf32> to vector<8x32xf32>
    %107 = arith.addf %104, %106 : vector<8x32xf32>
    %108 = arith.addf %1, %107 : vector<8x32xf32>
    %cst_45 = arith.constant dense<0.000000e+00> : vector<8xf32>
    %109 = vector.multi_reduction <add>, %108, %cst_45 [1] : vector<8x32xf32> to vector<8xf32>
    %110 = vector.shape_cast %109 : vector<8xf32> to vector<8x1xf32>
    %cst_46 = arith.constant 3.200000e+01 : f32
    %111 = vector.broadcast %cst_46 : f32 to vector<8x1xf32>
    %112 = arith.divf %110, %111 : vector<8x1xf32>
    %113 = vector.broadcast %112 : vector<8x1xf32> to vector<8x32xf32>
    %114 = arith.subf %108, %113 : vector<8x32xf32>
    %115 = arith.mulf %114, %114 : vector<8x32xf32>
    %cst_47 = arith.constant dense<0.000000e+00> : vector<8xf32>
    %116 = vector.multi_reduction <add>, %115, %cst_47 [1] : vector<8x32xf32> to vector<8xf32>
    %117 = vector.shape_cast %116 : vector<8xf32> to vector<8x1xf32>
    %cst_48 = arith.constant 3.200000e+01 : f32
    %118 = vector.broadcast %cst_48 : f32 to vector<8x1xf32>
    %119 = arith.divf %117, %118 : vector<8x1xf32>
    %120 = vector.broadcast %112 : vector<8x1xf32> to vector<8x32xf32>
    %121 = arith.subf %108, %120 : vector<8x32xf32>
    %cst_49 = arith.constant 9.99999974E-6 : f32
    %122 = vector.broadcast %cst_49 : f32 to vector<8x1xf32>
    %123 = arith.addf %119, %122 : vector<8x1xf32>
    %124 = math.rsqrt %123 : vector<8x1xf32>
    %125 = vector.broadcast %124 : vector<8x1xf32> to vector<8x32xf32>
    %126 = arith.mulf %121, %125 : vector<8x32xf32>
    %c0_50 = arith.constant 0 : index
    %c0_51 = arith.constant 0 : index
    %127 = vector.load %arg8[%c0_50, %c0_51] : memref<1x32xf32, #tpu.memory_space<vmem>>, vector<1x32xf32>
    %128 = vector.broadcast %127 : vector<1x32xf32> to vector<8x32xf32>
    %129 = arith.mulf %126, %128 : vector<8x32xf32>
    %c0_52 = arith.constant 0 : index
    %c0_53 = arith.constant 0 : index
    %130 = vector.load %arg9[%c0_52, %c0_53] : memref<1x32xf32, #tpu.memory_space<vmem>>, vector<1x32xf32>
    %131 = vector.broadcast %130 : vector<1x32xf32> to vector<8x32xf32>
    %132 = arith.addf %129, %131 : vector<8x32xf32>
    %133 = arith.truncf %132 : vector<8x32xf32> to vector<8x32xbf16>
    %cst_54 = arith.constant 0.000000e+00 : f32
    %134 = vector.broadcast %cst_54 : f32 to vector<8x32xf32>
    %c0_55 = arith.constant 0 : index
    %c0_56 = arith.constant 0 : index
    %135 = vector.load %arg10[%c0_55, %c0_56] : memref<32x64xbf16, #tpu.memory_space<vmem>>, vector<32x64xbf16>
    %cst_57 = arith.constant dense<0.000000e+00> : vector<8x64xf32>
    %136 = tpu.matmul %133, %135, %cst_57 {dimension_numbers = #tpu.dot_dimension_numbers<[1], [0], [0], [1], [0, 0, 1, 1], [], []>} : vector<8x32xbf16>, vector<32x64xbf16>, vector<8x64xf32> -> vector<8x64xf32>
    %c0_58 = arith.constant 0 : index
    %c0_59 = arith.constant 0 : index
    %137 = vector.load %arg11[%c0_58, %c0_59] : memref<1x64xf32, #tpu.memory_space<vmem>>, vector<1x64xf32>
    %138 = vector.broadcast %137 : vector<1x64xf32> to vector<8x64xf32>
    %139 = arith.addf %136, %138 : vector<8x64xf32>
    %cst_60 = arith.constant 0.000000e+00 : f32
    %140 = vector.broadcast %cst_60 : f32 to vector<8x64xf32>
    %141 = arith.maximumf %139, %140 : vector<8x64xf32>
    %142 = arith.truncf %141 : vector<8x64xf32> to vector<8x64xbf16>
    %c0_61 = arith.constant 0 : index
    %c0_62 = arith.constant 0 : index
    %143 = vector.load %arg12[%c0_61, %c0_62] : memref<64x32xbf16, #tpu.memory_space<vmem>>, vector<64x32xbf16>
    %cst_63 = arith.constant dense<0.000000e+00> : vector<8x32xf32>
    %144 = tpu.matmul %142, %143, %cst_63 {dimension_numbers = #tpu.dot_dimension_numbers<[1], [0], [0], [1], [0, 0, 1, 1], [], []>} : vector<8x64xbf16>, vector<64x32xbf16>, vector<8x32xf32> -> vector<8x32xf32>
    %145 = arith.addf %134, %144 : vector<8x32xf32>
    %c0_64 = arith.constant 0 : index
    %c0_65 = arith.constant 0 : index
    %146 = vector.load %arg13[%c0_64, %c0_65] : memref<1x32xf32, #tpu.memory_space<vmem>>, vector<1x32xf32>
    %147 = vector.broadcast %146 : vector<1x32xf32> to vector<8x32xf32>
    %148 = arith.addf %145, %147 : vector<8x32xf32>
    %149 = arith.addf %132, %148 : vector<8x32xf32>
    %cst_66 = arith.constant dense<0.000000e+00> : vector<8xf32>
    %150 = vector.multi_reduction <add>, %149, %cst_66 [1] : vector<8x32xf32> to vector<8xf32>
    %151 = vector.shape_cast %150 : vector<8xf32> to vector<8x1xf32>
    %cst_67 = arith.constant 3.200000e+01 : f32
    %152 = vector.broadcast %cst_67 : f32 to vector<8x1xf32>
    %153 = arith.divf %151, %152 : vector<8x1xf32>
    %154 = vector.broadcast %153 : vector<8x1xf32> to vector<8x32xf32>
    %155 = arith.subf %149, %154 : vector<8x32xf32>
    %156 = arith.mulf %155, %155 : vector<8x32xf32>
    %cst_68 = arith.constant dense<0.000000e+00> : vector<8xf32>
    %157 = vector.multi_reduction <add>, %156, %cst_68 [1] : vector<8x32xf32> to vector<8xf32>
    %158 = vector.shape_cast %157 : vector<8xf32> to vector<8x1xf32>
    %cst_69 = arith.constant 3.200000e+01 : f32
    %159 = vector.broadcast %cst_69 : f32 to vector<8x1xf32>
    %160 = arith.divf %158, %159 : vector<8x1xf32>
    %161 = vector.broadcast %153 : vector<8x1xf32> to vector<8x32xf32>
    %162 = arith.subf %149, %161 : vector<8x32xf32>
    %cst_70 = arith.constant 9.99999974E-6 : f32
    %163 = vector.broadcast %cst_70 : f32 to vector<8x1xf32>
    %164 = arith.addf %160, %163 : vector<8x1xf32>
    %165 = math.rsqrt %164 : vector<8x1xf32>
    %166 = vector.broadcast %165 : vector<8x1xf32> to vector<8x32xf32>
    %167 = arith.mulf %162, %166 : vector<8x32xf32>
    %c0_71 = arith.constant 0 : index
    %c0_72 = arith.constant 0 : index
    %168 = vector.load %arg14[%c0_71, %c0_72] : memref<1x32xf32, #tpu.memory_space<vmem>>, vector<1x32xf32>
    %169 = vector.broadcast %168 : vector<1x32xf32> to vector<8x32xf32>
    %170 = arith.mulf %167, %169 : vector<8x32xf32>
    %c0_73 = arith.constant 0 : index
    %c0_74 = arith.constant 0 : index
    %171 = vector.load %arg15[%c0_73, %c0_74] : memref<1x32xf32, #tpu.memory_space<vmem>>, vector<1x32xf32>
    %172 = vector.broadcast %171 : vector<1x32xf32> to vector<8x32xf32>
    %173 = arith.addf %170, %172 : vector<8x32xf32>
    %c0_75 = arith.constant 0 : index
    %c0_76 = arith.constant 0 : index
    %c0_77 = arith.constant 0 : index
    %174 = vector.load %arg16[%c0_75, %c0_76, %c0_77] : memref<1x8x32xf32, #tpu.memory_space<vmem>>, vector<1x8x32xf32>
    %175 = vector.shape_cast %174 : vector<1x8x32xf32> to vector<8x32xf32>
    %176 = vector.shape_cast %173 : vector<8x32xf32> to vector<1x8x32xf32>
    tpu.vector_store %arg16[%c0_75, %c0_76, %c0_77], %176 {strides = array<i32>} : memref<1x8x32xf32, #tpu.memory_space<vmem>>, vector<1x8x32xf32>,
    return
  }
  func.func @transform_0(%arg0: i32) -> (i32, i32, i32) {
    %c0_i32 = arith.constant 0 : i32
    %c0_i32_0 = arith.constant 0 : i32
    %c0_i32_1 = arith.constant 0 : i32
    return %arg0, %c0_i32, %c0_i32_0 : i32, i32, i32
  }
  func.func @transform_1(%arg0: i32) -> (i32, i32, i32) {
    %c0_i32 = arith.constant 0 : i32
    %c0_i32_0 = arith.constant 0 : i32
    %c0_i32_1 = arith.constant 0 : i32
    return %arg0, %c0_i32, %c0_i32_0 : i32, i32, i32
  }
  func.func @transform_2(%arg0: i32) -> (i32, i32, i32) {
    %c0_i32 = arith.constant 0 : i32
    %c0_i32_0 = arith.constant 0 : i32
    %c0_i32_1 = arith.constant 0 : i32
    return %arg0, %c0_i32, %c0_i32_0 : i32, i32, i32
  }
  func.func @transform_3(%arg0: i32) -> (i32, i32) {
    %c0_i32 = arith.constant 0 : i32
    %c0_i32_0 = arith.constant 0 : i32
    %c0_i32_1 = arith.constant 0 : i32
    return %c0_i32, %c0_i32_0 : i32, i32
  }
  func.func @transform_4(%arg0: i32) -> (i32, i32) {
    %c0_i32 = arith.constant 0 : i32
    %c0_i32_0 = arith.constant 0 : i32
    %c0_i32_1 = arith.constant 0 : i32
    return %c0_i32, %c0_i32_0 : i32, i32
  }
  func.func @transform_5(%arg0: i32) -> (i32, i32) {
    %c0_i32 = arith.constant 0 : i32
    %c0_i32_0 = arith.constant 0 : i32
    %c0_i32_1 = arith.constant 0 : i32
    return %c0_i32, %c0_i32_0 : i32, i32
  }
  func.func @transform_6(%arg0: i32) -> (i32, i32) {
    %c0_i32 = arith.constant 0 : i32
    %c0_i32_0 = arith.constant 0 : i32
    %c0_i32_1 = arith.constant 0 : i32
    return %c0_i32, %c0_i32_0 : i32, i32
  }
  func.func @transform_7(%arg0: i32) -> (i32, i32) {
    %c0_i32 = arith.constant 0 : i32
    %c0_i32_0 = arith.constant 0 : i32
    %c0_i32_1 = arith.constant 0 : i32
    return %c0_i32, %c0_i32_0 : i32, i32
  }
  func.func @transform_8(%arg0: i32) -> (i32, i32) {
    %c0_i32 = arith.constant 0 : i32
    %c0_i32_0 = arith.constant 0 : i32
    %c0_i32_1 = arith.constant 0 : i32
    return %c0_i32, %c0_i32_0 : i32, i32
  }
  func.func @transform_9(%arg0: i32) -> (i32, i32) {
    %c0_i32 = arith.constant 0 : i32
    %c0_i32_0 = arith.constant 0 : i32
    %c0_i32_1 = arith.constant 0 : i32
    return %c0_i32, %c0_i32_0 : i32, i32
  }
  func.func @transform_10(%arg0: i32) -> (i32, i32) {
    %c0_i32 = arith.constant 0 : i32
    %c0_i32_0 = arith.constant 0 : i32
    %c0_i32_1 = arith.constant 0 : i32
    return %c0_i32, %c0_i32_0 : i32, i32
  }
  func.func @transform_11(%arg0: i32) -> (i32, i32) {
    %c0_i32 = arith.constant 0 : i32
    %c0_i32_0 = arith.constant 0 : i32
    %c0_i32_1 = arith.constant 0 : i32
    return %c0_i32, %c0_i32_0 : i32, i32
  }
  func.func @transform_12(%arg0: i32) -> (i32, i32) {
    %c0_i32 = arith.constant 0 : i32
    %c0_i32_0 = arith.constant 0 : i32
    %c0_i32_1 = arith.constant 0 : i32
    return %c0_i32, %c0_i32_0 : i32, i32
  }
  func.func @transform_13(%arg0: i32) -> (i32, i32) {
    %c0_i32 = arith.constant 0 : i32
    %c0_i32_0 = arith.constant 0 : i32
    %c0_i32_1 = arith.constant 0 : i32
    return %c0_i32, %c0_i32_0 : i32, i32
  }
  func.func @transform_14(%arg0: i32) -> (i32, i32) {
    %c0_i32 = arith.constant 0 : i32
    %c0_i32_0 = arith.constant 0 : i32
    %c0_i32_1 = arith.constant 0 : i32
    return %c0_i32, %c0_i32_0 : i32, i32
  }
  func.func @transform_15(%arg0: i32) -> (i32, i32, i32) {
    %c0_i32 = arith.constant 0 : i32
    %c0_i32_0 = arith.constant 0 : i32
    %c0_i32_1 = arith.constant 0 : i32
    return %arg0, %c0_i32, %c0_i32_0 : i32, i32, i32
  }
}

module attributes {stable_mosaic.version = 11 : i64} {
  func.func @encoder_kernel(%arg0: i32, %arg1: memref<1x8x32xf32, #tpu.memory_space<vmem>>, %arg2: memref<1x8x8xbf16, #tpu.memory_space<vmem>>, %arg3: memref<1x1x8xf32, #tpu.memory_space<vmem>>, %arg4: memref<32x96xbf16, #tpu.memory_space<vmem>>, %arg5: memref<1x96xf32, #tpu.memory_space<vmem>>, %arg6: memref<32x32xbf16, #tpu.memory_space<vmem>>, %arg7: memref<1x32xf32, #tpu.memory_space<vmem>>, %arg8: memref<1x32xf32, #tpu.memory_space<vmem>>, %arg9: memref<1x32xf32, #tpu.memory_space<vmem>>, %arg10: memref<32x64xbf16, #tpu.memory_space<vmem>>, %arg11: memref<1x64xf32, #tpu.memory_space<vmem>>, %arg12: memref<64x32xbf16, #tpu.memory_space<vmem>>, %arg13: memref<1x32xf32, #tpu.memory_space<vmem>>, %arg14: memref<1x32xf32, #tpu.memory_space<vmem>>, %arg15: memref<1x32xf32, #tpu.memory_space<vmem>>, %arg16: memref<1x8x32xf32, #tpu.memory_space<vmem>>, %arg17: memref<8x32xbf16, #tpu.memory_space<vmem>>) attributes {dimension_semantics = [#tpu.dimension_semantics<parallel>], iteration_bounds = array<i64: 2>, scalar_prefetch = 0 : i64, scratch_operands = 1 : i64, tpu.core_type = #tpu.core_type<tc>, window_params = [{transform_indices = @transform_0, window_bounds = array<i64: 1, 8, 32>}, {transform_indices = @transform_1, window_bounds = array<i64: 1, 8, 8>}, {transform_indices = @transform_2, window_bounds = array<i64: 1, 1, 8>}, {pipeline_mode = #tpu.pipeline_mode<synchronous>, transform_indices = @transform_3, window_bounds = array<i64: 32, 96>}, {pipeline_mode = #tpu.pipeline_mode<synchronous>, transform_indices = @transform_4, window_bounds = array<i64: 1, 96>}, {pipeline_mode = #tpu.pipeline_mode<synchronous>, transform_indices = @transform_5, window_bounds = array<i64: 32, 32>}, {pipeline_mode = #tpu.pipeline_mode<synchronous>, transform_indices = @transform_6, window_bounds = array<i64: 1, 32>}, {pipeline_mode = #tpu.pipeline_mode<synchronous>, transform_indices = @transform_7, window_bounds = array<i64: 1, 32>}, {pipeline_mode = #tpu.pipeline_mode<synchronous>, transform_indices = @transform_8, window_bounds = array<i64: 1, 32>}, {pipeline_mode = #tpu.pipeline_mode<synchronous>, transform_indices = @transform_9, window_bounds = array<i64: 32, 64>}, {pipeline_mode = #tpu.pipeline_mode<synchronous>, transform_indices = @transform_10, window_bounds = array<i64: 1, 64>}, {pipeline_mode = #tpu.pipeline_mode<synchronous>, transform_indices = @transform_11, window_bounds = array<i64: 64, 32>}, {pipeline_mode = #tpu.pipeline_mode<synchronous>, transform_indices = @transform_12, window_bounds = array<i64: 1, 32>}, {pipeline_mode = #tpu.pipeline_mode<synchronous>, transform_indices = @transform_13, window_bounds = array<i64: 1, 32>}, {pipeline_mode = #tpu.pipeline_mode<synchronous>, transform_indices = @transform_14, window_bounds = array<i64: 1, 32>}, {transform_indices = @transform_15, window_bounds = array<i64: 1, 8, 32>}]} {
    %c0 = arith.constant 0 : index
    %c0_0 = arith.constant 0 : index
    %c0_1 = arith.constant 0 : index
    %0 = vector.load %arg1[%c0, %c0_0, %c0_1] : memref<1x8x32xf32, #tpu.memory_space<vmem>>, vector<1x8x32xf32>
    %1 = vector.shape_cast %0 : vector<1x8x32xf32> to vector<8x32xf32>
    %2 = arith.truncf %1 : vector<8x32xf32> to vector<8x32xbf16>
    %c0_2 = arith.constant 0 : index
    %c0_3 = arith.constant 0 : index
    %3 = vector.load %arg4[%c0_2, %c0_3] : memref<32x96xbf16, #tpu.memory_space<vmem>>, vector<32x96xbf16>
    %cst = arith.constant dense<0.000000e+00> : vector<8x96xf32>
    %4 = tpu.matmul %2, %3, %cst {dimension_numbers = #tpu.dot_dimension_numbers<[1], [0], [0], [1], [0, 0, 1, 1], [], []>} : vector<8x32xbf16>, vector<32x96xbf16>, vector<8x96xf32> -> vector<8x96xf32>
    %c0_4 = arith.constant 0 : index
    %c0_5 = arith.constant 0 : index
    %5 = vector.load %arg5[%c0_4, %c0_5] : memref<1x96xf32, #tpu.memory_space<vmem>>, vector<1x96xf32>
    %6 = vector.broadcast %5 : vector<1x96xf32> to vector<8x96xf32>
    %7 = arith.addf %4, %6 : vector<8x96xf32>
    %8 = arith.truncf %7 : vector<8x96xf32> to vector<8x96xbf16>
    %c0_6 = arith.constant 0 : index
    %c0_7 = arith.constant 0 : index
    %c0_8 = arith.constant 0 : index
    %9 = vector.load %arg2[%c0_6, %c0_7, %c0_8] : memref<1x8x8xbf16, #tpu.memory_space<vmem>>, vector<1x8x8xbf16>
    %10 = vector.shape_cast %9 : vector<1x8x8xbf16> to vector<8x8xbf16>
    %11 = arith.extf %10 : vector<8x8xbf16> to vector<8x8xf32>
    %c0_9 = arith.constant 0 : index
    %c0_10 = arith.constant 0 : index
    %c0_11 = arith.constant 0 : index
    %12 = vector.load %arg3[%c0_9, %c0_10, %c0_11] : memref<1x1x8xf32, #tpu.memory_space<vmem>>, vector<1x1x8xf32>
    %13 = vector.shape_cast %12 : vector<1x1x8xf32> to vector<1x8xf32>
    %cst_12 = arith.constant 5.000000e-01 : f32
    %14 = vector.broadcast %cst_12 : f32 to vector<1x8xf32>
    %15 = arith.cmpf ogt, %13, %14 : vector<1x8xf32>
    %16 = vector.shape_cast %15 : vector<1x8xi1> to vector<1x8xi1>
    %17 = vector.broadcast %16 : vector<1x8xi1> to vector<8x8xi1>
    %18 = vector.extract_strided_slice %8 {offsets = [0, 0], sizes = [8, 8], strides = [1, 1]} : vector<8x96xbf16> to vector<8x8xbf16>
    %19 = vector.extract_strided_slice %8 {offsets = [0, 32], sizes = [8, 8], strides = [1, 1]} : vector<8x96xbf16> to vector<8x8xbf16>
    %20 = vector.extract_strided_slice %8 {offsets = [0, 64], sizes = [8, 8], strides = [1, 1]} : vector<8x96xbf16> to vector<8x8xbf16>
    %cst_13 = arith.constant dense<0.000000e+00> : vector<8x8xf32>
    %21 = tpu.matmul %18, %19, %cst_13 {dimension_numbers = #tpu.dot_dimension_numbers<[1], [1], [0], [0], [0, 0, 1, 0], [], []>} : vector<8x8xbf16>, vector<8x8xbf16>, vector<8x8xf32> -> vector<8x8xf32>
    %22 = arith.addf %21, %11 : vector<8x8xf32>
    %cst_14 = arith.constant -1.000000e+04 : f32
    %23 = vector.broadcast %cst_14 : f32 to vector<8x8xf32>
    %24 = arith.select %17, %23, %22 : vector<8x8xi1>, vector<8x8xf32>
    %cst_15 = arith.constant dense<0xFF800000> : vector<8xf32>
    %25 = vector.multi_reduction <maximumf>, %24, %cst_15 [1] : vector<8x8xf32> to vector<8xf32>
    %26 = vector.shape_cast %25 : vector<8xf32> to vector<8x1xf32>
    %27 = vector.broadcast %26 : vector<8x1xf32> to vector<8x8xf32>
    %28 = arith.subf %24, %27 : vector<8x8xf32>
    %29 = math.exp %28 : vector<8x8xf32>
    %cst_16 = arith.constant dense<0.000000e+00> : vector<8xf32>
    %30 = vector.multi_reduction <add>, %29, %cst_16 [1] : vector<8x8xf32> to vector<8xf32>
    %31 = vector.shape_cast %30 : vector<8xf32> to vector<8x1xf32>
    %32 = tpu.reciprocal %31 {approx = true} : vector<8x1xf32> -> vector<8x1xf32>
    %33 = vector.broadcast %32 : vector<8x1xf32> to vector<8x8xf32>
    %34 = arith.mulf %29, %33 : vector<8x8xf32>
    %35 = arith.truncf %34 : vector<8x8xf32> to vector<8x8xbf16>
    %cst_17 = arith.constant dense<0.000000e+00> : vector<8x8xf32>
    %36 = tpu.matmul %35, %20, %cst_17 {dimension_numbers = #tpu.dot_dimension_numbers<[1], [0], [0], [1], [0, 0, 1, 1], [], []>} : vector<8x8xbf16>, vector<8x8xbf16>, vector<8x8xf32> -> vector<8x8xf32>
    %37 = arith.truncf %36 : vector<8x8xf32> to vector<8x8xbf16>
    %c0_18 = arith.constant 0 : index
    %c0_19 = arith.constant 0 : index
    %38 = vector.load %arg17[%c0_18, %c0_19] : memref<8x32xbf16, #tpu.memory_space<vmem>>, vector<8x8xbf16>
    tpu.vector_store %arg17[%c0_18, %c0_19], %37 {strides = array<i32>} : memref<8x32xbf16, #tpu.memory_space<vmem>>, vector<8x8xbf16>,
    %39 = vector.extract_strided_slice %8 {offsets = [0, 8], sizes = [8, 8], strides = [1, 1]} : vector<8x96xbf16> to vector<8x8xbf16>
    %40 = vector.extract_strided_slice %8 {offsets = [0, 40], sizes = [8, 8], strides = [1, 1]} : vector<8x96xbf16> to vector<8x8xbf16>
    %41 = vector.extract_strided_slice %8 {offsets = [0, 72], sizes = [8, 8], strides = [1, 1]} : vector<8x96xbf16> to vector<8x8xbf16>
    %cst_20 = arith.constant dense<0.000000e+00> : vector<8x8xf32>
    %42 = tpu.matmul %39, %40, %cst_20 {dimension_numbers = #tpu.dot_dimension_numbers<[1], [1], [0], [0], [0, 0, 1, 0], [], []>} : vector<8x8xbf16>, vector<8x8xbf16>, vector<8x8xf32> -> vector<8x8xf32>
    %43 = arith.addf %42, %11 : vector<8x8xf32>
    %cst_21 = arith.constant -1.000000e+04 : f32
    %44 = vector.broadcast %cst_21 : f32 to vector<8x8xf32>
    %45 = arith.select %17, %44, %43 : vector<8x8xi1>, vector<8x8xf32>
    %cst_22 = arith.constant dense<0xFF800000> : vector<8xf32>
    %46 = vector.multi_reduction <maximumf>, %45, %cst_22 [1] : vector<8x8xf32> to vector<8xf32>
    %47 = vector.shape_cast %46 : vector<8xf32> to vector<8x1xf32>
    %48 = vector.broadcast %47 : vector<8x1xf32> to vector<8x8xf32>
    %49 = arith.subf %45, %48 : vector<8x8xf32>
    %50 = math.exp %49 : vector<8x8xf32>
    %cst_23 = arith.constant dense<0.000000e+00> : vector<8xf32>
    %51 = vector.multi_reduction <add>, %50, %cst_23 [1] : vector<8x8xf32> to vector<8xf32>
    %52 = vector.shape_cast %51 : vector<8xf32> to vector<8x1xf32>
    %53 = tpu.reciprocal %52 {approx = true} : vector<8x1xf32> -> vector<8x1xf32>
    %54 = vector.broadcast %53 : vector<8x1xf32> to vector<8x8xf32>
    %55 = arith.mulf %50, %54 : vector<8x8xf32>
    %56 = arith.truncf %55 : vector<8x8xf32> to vector<8x8xbf16>
    %cst_24 = arith.constant dense<0.000000e+00> : vector<8x8xf32>
    %57 = tpu.matmul %56, %41, %cst_24 {dimension_numbers = #tpu.dot_dimension_numbers<[1], [0], [0], [1], [0, 0, 1, 1], [], []>} : vector<8x8xbf16>, vector<8x8xbf16>, vector<8x8xf32> -> vector<8x8xf32>
    %58 = arith.truncf %57 : vector<8x8xf32> to vector<8x8xbf16>
    %c0_25 = arith.constant 0 : index
    %c8 = arith.constant 8 : index
    %59 = vector.load %arg17[%c0_25, %c8] : memref<8x32xbf16, #tpu.memory_space<vmem>>, vector<8x8xbf16>
    tpu.vector_store %arg17[%c0_25, %c8], %58 {strides = array<i32>} : memref<8x32xbf16, #tpu.memory_space<vmem>>, vector<8x8xbf16>,
    %60 = vector.extract_strided_slice %8 {offsets = [0, 16], sizes = [8, 8], strides = [1, 1]} : vector<8x96xbf16> to vector<8x8xbf16>
    %61 = vector.extract_strided_slice %8 {offsets = [0, 48], sizes = [8, 8], strides = [1, 1]} : vector<8x96xbf16> to vector<8x8xbf16>
    %62 = vector.extract_strided_slice %8 {offsets = [0, 80], sizes = [8, 8], strides = [1, 1]} : vector<8x96xbf16> to vector<8x8xbf16>
    %cst_26 = arith.constant dense<0.000000e+00> : vector<8x8xf32>
    %63 = tpu.matmul %60, %61, %cst_26 {dimension_numbers = #tpu.dot_dimension_numbers<[1], [1], [0], [0], [0, 0, 1, 0], [], []>} : vector<8x8xbf16>, vector<8x8xbf16>, vector<8x8xf32> -> vector<8x8xf32>
    %64 = arith.addf %63, %11 : vector<8x8xf32>
    %cst_27 = arith.constant -1.000000e+04 : f32
    %65 = vector.broadcast %cst_27 : f32 to vector<8x8xf32>
    %66 = arith.select %17, %65, %64 : vector<8x8xi1>, vector<8x8xf32>
    %cst_28 = arith.constant dense<0xFF800000> : vector<8xf32>
    %67 = vector.multi_reduction <maximumf>, %66, %cst_28 [1] : vector<8x8xf32> to vector<8xf32>
    %68 = vector.shape_cast %67 : vector<8xf32> to vector<8x1xf32>
    %69 = vector.broadcast %68 : vector<8x1xf32> to vector<8x8xf32>
    %70 = arith.subf %66, %69 : vector<8x8xf32>
    %71 = math.exp %70 : vector<8x8xf32>
    %cst_29 = arith.constant dense<0.000000e+00> : vector<8xf32>
    %72 = vector.multi_reduction <add>, %71, %cst_29 [1] : vector<8x8xf32> to vector<8xf32>
    %73 = vector.shape_cast %72 : vector<8xf32> to vector<8x1xf32>
    %74 = tpu.reciprocal %73 {approx = true} : vector<8x1xf32> -> vector<8x1xf32>
    %75 = vector.broadcast %74 : vector<8x1xf32> to vector<8x8xf32>
    %76 = arith.mulf %71, %75 : vector<8x8xf32>
    %77 = arith.truncf %76 : vector<8x8xf32> to vector<8x8xbf16>
    %cst_30 = arith.constant dense<0.000000e+00> : vector<8x8xf32>
    %78 = tpu.matmul %77, %62, %cst_30 {dimension_numbers = #tpu.dot_dimension_numbers<[1], [0], [0], [1], [0, 0, 1, 1], [], []>} : vector<8x8xbf16>, vector<8x8xbf16>, vector<8x8xf32> -> vector<8x8xf32>
    %79 = arith.truncf %78 : vector<8x8xf32> to vector<8x8xbf16>
    %c0_31 = arith.constant 0 : index
    %c16 = arith.constant 16 : index
    %80 = vector.load %arg17[%c0_31, %c16] : memref<8x32xbf16, #tpu.memory_space<vmem>>, vector<8x8xbf16>
    tpu.vector_store %arg17[%c0_31, %c16], %79 {strides = array<i32>} : memref<8x32xbf16, #tpu.memory_space<vmem>>, vector<8x8xbf16>,
    %81 = vector.extract_strided_slice %8 {offsets = [0, 24], sizes = [8, 8], strides = [1, 1]} : vector<8x96xbf16> to vector<8x8xbf16>
    %82 = vector.extract_strided_slice %8 {offsets = [0, 56], sizes = [8, 8], strides = [1, 1]} : vector<8x96xbf16> to vector<8x8xbf16>
    %83 = vector.extract_strided_slice %8 {offsets = [0, 88], sizes = [8, 8], strides = [1, 1]} : vector<8x96xbf16> to vector<8x8xbf16>
    %cst_32 = arith.constant dense<0.000000e+00> : vector<8x8xf32>
    %84 = tpu.matmul %81, %82, %cst_32 {dimension_numbers = #tpu.dot_dimension_numbers<[1], [1], [0], [0], [0, 0, 1, 0], [], []>} : vector<8x8xbf16>, vector<8x8xbf16>, vector<8x8xf32> -> vector<8x8xf32>
    %85 = arith.addf %84, %11 : vector<8x8xf32>
    %cst_33 = arith.constant -1.000000e+04 : f32
    %86 = vector.broadcast %cst_33 : f32 to vector<8x8xf32>
    %87 = arith.select %17, %86, %85 : vector<8x8xi1>, vector<8x8xf32>
    %cst_34 = arith.constant dense<0xFF800000> : vector<8xf32>
    %88 = vector.multi_reduction <maximumf>, %87, %cst_34 [1] : vector<8x8xf32> to vector<8xf32>
    %89 = vector.shape_cast %88 : vector<8xf32> to vector<8x1xf32>
    %90 = vector.broadcast %89 : vector<8x1xf32> to vector<8x8xf32>
    %91 = arith.subf %87, %90 : vector<8x8xf32>
    %92 = math.exp %91 : vector<8x8xf32>
    %cst_35 = arith.constant dense<0.000000e+00> : vector<8xf32>
    %93 = vector.multi_reduction <add>, %92, %cst_35 [1] : vector<8x8xf32> to vector<8xf32>
    %94 = vector.shape_cast %93 : vector<8xf32> to vector<8x1xf32>
    %95 = tpu.reciprocal %94 {approx = true} : vector<8x1xf32> -> vector<8x1xf32>
    %96 = vector.broadcast %95 : vector<8x1xf32> to vector<8x8xf32>
    %97 = arith.mulf %92, %96 : vector<8x8xf32>
    %98 = arith.truncf %97 : vector<8x8xf32> to vector<8x8xbf16>
    %cst_36 = arith.constant dense<0.000000e+00> : vector<8x8xf32>
    %99 = tpu.matmul %98, %83, %cst_36 {dimension_numbers = #tpu.dot_dimension_numbers<[1], [0], [0], [1], [0, 0, 1, 1], [], []>} : vector<8x8xbf16>, vector<8x8xbf16>, vector<8x8xf32> -> vector<8x8xf32>
    %100 = arith.truncf %99 : vector<8x8xf32> to vector<8x8xbf16>
    %c0_37 = arith.constant 0 : index
    %c24 = arith.constant 24 : index
    %101 = vector.load %arg17[%c0_37, %c24] : memref<8x32xbf16, #tpu.memory_space<vmem>>, vector<8x8xbf16>
    tpu.vector_store %arg17[%c0_37, %c24], %100 {strides = array<i32>} : memref<8x32xbf16, #tpu.memory_space<vmem>>, vector<8x8xbf16>,
    %c0_38 = arith.constant 0 : index
    %c0_39 = arith.constant 0 : index
    %102 = vector.load %arg17[%c0_38, %c0_39] : memref<8x32xbf16, #tpu.memory_space<vmem>>, vector<8x32xbf16>
    %c0_40 = arith.constant 0 : index
    %c0_41 = arith.constant 0 : index
    %103 = vector.load %arg6[%c0_40, %c0_41] : memref<32x32xbf16, #tpu.memory_space<vmem>>, vector<32x32xbf16>
    %cst_42 = arith.constant dense<0.000000e+00> : vector<8x32xf32>
    %104 = tpu.matmul %102, %103, %cst_42 {dimension_numbers = #tpu.dot_dimension_numbers<[1], [0], [0], [1], [0, 0, 1, 1], [], []>} : vector<8x32xbf16>, vector<32x32xbf16>, vector<8x32xf32> -> vector<8x32xf32>
    %c0_43 = arith.constant 0 : index
    %c0_44 = arith.constant 0 : index
    %105 = vector.load %arg7[%c0_43, %c0_44] : memref<1x32xf32, #tpu.memory_space<vmem>>, vector<1x32xf32>
    %106 = vector.broadcast %105 : vector<1x32xf32> to vector<8x32xf32>
    %107 = arith.addf %104, %106 : vector<8x32xf32>
    %108 = arith.addf %1, %107 : vector<8x32xf32>
    %cst_45 = arith.constant dense<0.000000e+00> : vector<8xf32>
    %109 = vector.multi_reduction <add>, %108, %cst_45 [1] : vector<8x32xf32> to vector<8xf32>
    %110 = vector.shape_cast %109 : vector<8xf32> to vector<8x1xf32>
    %cst_46 = arith.constant 3.200000e+01 : f32
    %111 = vector.broadcast %cst_46 : f32 to vector<8x1xf32>
    %112 = arith.divf %110, %111 : vector<8x1xf32>
    %113 = vector.broadcast %112 : vector<8x1xf32> to vector<8x32xf32>
    %114 = arith.subf %108, %113 : vector<8x32xf32>
    %115 = arith.mulf %114, %114 : vector<8x32xf32>
    %cst_47 = arith.constant dense<0.000000e+00> : vector<8xf32>
    %116 = vector.multi_reduction <add>, %115, %cst_47 [1] : vector<8x32xf32> to vector<8xf32>
    %117 = vector.shape_cast %116 : vector<8xf32> to vector<8x1xf32>
    %cst_48 = arith.constant 3.200000e+01 : f32
    %118 = vector.broadcast %cst_48 : f32 to vector<8x1xf32>
    %119 = arith.divf %117, %118 : vector<8x1xf32>
    %120 = vector.broadcast %112 : vector<8x1xf32> to vector<8x32xf32>
    %121 = arith.subf %108, %120 : vector<8x32xf32>
    %cst_49 = arith.constant 9.99999974E-6 : f32
    %122 = vector.broadcast %cst_49 : f32 to vector<8x1xf32>
    %123 = arith.addf %119, %122 : vector<8x1xf32>
    %124 = math.rsqrt %123 : vector<8x1xf32>
    %125 = vector.broadcast %124 : vector<8x1xf32> to vector<8x32xf32>
    %126 = arith.mulf %121, %125 : vector<8x32xf32>
    %c0_50 = arith.constant 0 : index
    %c0_51 = arith.constant 0 : index
    %127 = vector.load %arg8[%c0_50, %c0_51] : memref<1x32xf32, #tpu.memory_space<vmem>>, vector<1x32xf32>
    %128 = vector.broadcast %127 : vector<1x32xf32> to vector<8x32xf32>
    %129 = arith.mulf %126, %128 : vector<8x32xf32>
    %c0_52 = arith.constant 0 : index
    %c0_53 = arith.constant 0 : index
    %130 = vector.load %arg9[%c0_52, %c0_53] : memref<1x32xf32, #tpu.memory_space<vmem>>, vector<1x32xf32>
    %131 = vector.broadcast %130 : vector<1x32xf32> to vector<8x32xf32>
    %132 = arith.addf %129, %131 : vector<8x32xf32>
    %133 = arith.truncf %132 : vector<8x32xf32> to vector<8x32xbf16>
    %cst_54 = arith.constant 0.000000e+00 : f32
    %134 = vector.broadcast %cst_54 : f32 to vector<8x32xf32>
    %c0_55 = arith.constant 0 : index
    %c0_56 = arith.constant 0 : index
    %135 = vector.load %arg10[%c0_55, %c0_56] : memref<32x64xbf16, #tpu.memory_space<vmem>>, vector<32x64xbf16>
    %cst_57 = arith.constant dense<0.000000e+00> : vector<8x64xf32>
    %136 = tpu.matmul %133, %135, %cst_57 {dimension_numbers = #tpu.dot_dimension_numbers<[1], [0], [0], [1], [0, 0, 1, 1], [], []>} : vector<8x32xbf16>, vector<32x64xbf16>, vector<8x64xf32> -> vector<8x64xf32>
    %c0_58 = arith.constant 0 : index
    %c0_59 = arith.constant 0 : index
    %137 = vector.load %arg11[%c0_58, %c0_59] : memref<1x64xf32, #tpu.memory_space<vmem>>, vector<1x64xf32>
    %138 = vector.broadcast %137 : vector<1x64xf32> to vector<8x64xf32>
    %139 = arith.addf %136, %138 : vector<8x64xf32>
    %cst_60 = arith.constant 0.000000e+00 : f32
    %140 = vector.broadcast %cst_60 : f32 to vector<8x64xf32>
    %141 = arith.maximumf %139, %140 : vector<8x64xf32>
    %142 = arith.truncf %141 : vector<8x64xf32> to vector<8x64xbf16>
    %c0_61 = arith.constant 0 : index
    %c0_62 = arith.constant 0 : index
    %143 = vector.load %arg12[%c0_61, %c0_62] : memref<64x32xbf16, #tpu.memory_space<vmem>>, vector<64x32xbf16>
    %cst_63 = arith.constant dense<0.000000e+00> : vector<8x32xf32>
    %144 = tpu.matmul %142, %143, %cst_63 {dimension_numbers = #tpu.dot_dimension_numbers<[1], [0], [0], [1], [0, 0, 1, 1], [], []>} : vector<8x64xbf16>, vector<64x32xbf16>, vector<8x32xf32> -> vector<8x32xf32>
    %145 = arith.addf %134, %144 : vector<8x32xf32>
    %c0_64 = arith.constant 0 : index
    %c0_65 = arith.constant 0 : index
    %146 = vector.load %arg13[%c0_64, %c0_65] : memref<1x32xf32, #tpu.memory_space<vmem>>, vector<1x32xf32>
    %147 = vector.broadcast %146 : vector<1x32xf32> to vector<8x32xf32>
    %148 = arith.addf %145, %147 : vector<8x32xf32>
    %149 = arith.addf %132, %148 : vector<8x32xf32>
    %cst_66 = arith.constant dense<0.000000e+00> : vector<8xf32>
    %150 = vector.multi_reduction <add>, %149, %cst_66 [1] : vector<8x32xf32> to vector<8xf32>
    %151 = vector.shape_cast %150 : vector<8xf32> to vector<8x1xf32>
    %cst_67 = arith.constant 3.200000e+01 : f32
    %152 = vector.broadcast %cst_67 : f32 to vector<8x1xf32>
    %153 = arith.divf %151, %152 : vector<8x1xf32>
    %154 = vector.broadcast %153 : vector<8x1xf32> to vector<8x32xf32>
    %155 = arith.subf %149, %154 : vector<8x32xf32>
    %156 = arith.mulf %155, %155 : vector<8x32xf32>
    %cst_68 = arith.constant dense<0.000000e+00> : vector<8xf32>
    %157 = vector.multi_reduction <add>, %156, %cst_68 [1] : vector<8x32xf32> to vector<8xf32>
    %158 = vector.shape_cast %157 : vector<8xf32> to vector<8x1xf32>
    %cst_69 = arith.constant 3.200000e+01 : f32
    %159 = vector.broadcast %cst_69 : f32 to vector<8x1xf32>
    %160 = arith.divf %158, %159 : vector<8x1xf32>
    %161 = vector.broadcast %153 : vector<8x1xf32> to vector<8x32xf32>
    %162 = arith.subf %149, %161 : vector<8x32xf32>
    %cst_70 = arith.constant 9.99999974E-6 : f32
    %163 = vector.broadcast %cst_70 : f32 to vector<8x1xf32>
    %164 = arith.addf %160, %163 : vector<8x1xf32>
    %165 = math.rsqrt %164 : vector<8x1xf32>
    %166 = vector.broadcast %165 : vector<8x1xf32> to vector<8x32xf32>
    %167 = arith.mulf %162, %166 : vector<8x32xf32>
    %c0_71 = arith.constant 0 : index
    %c0_72 = arith.constant 0 : index
    %168 = vector.load %arg14[%c0_71, %c0_72] : memref<1x32xf32, #tpu.memory_space<vmem>>, vector<1x32xf32>
    %169 = vector.broadcast %168 : vector<1x32xf32> to vector<8x32xf32>
    %170 = arith.mulf %167, %169 : vector<8x32xf32>
    %c0_73 = arith.constant 0 : index
    %c0_74 = arith.constant 0 : index
    %171 = vector.load %arg15[%c0_73, %c0_74] : memref<1x32xf32, #tpu.memory_space<vmem>>, vector<1x32xf32>
    %172 = vector.broadcast %171 : vector<1x32xf32> to vector<8x32xf32>
    %173 = arith.addf %170, %172 : vector<8x32xf32>
    %c0_75 = arith.constant 0 : index
    %c0_76 = arith.constant 0 : index
    %c0_77 = arith.constant 0 : index
    %174 = vector.load %arg16[%c0_75, %c0_76, %c0_77] : memref<1x8x32xf32, #tpu.memory_space<vmem>>, vector<1x8x32xf32>
    %175 = vector.shape_cast %174 : vector<1x8x32xf32> to vector<8x32xf32>
    %176 = vector.shape_cast %173 : vector<8x32xf32> to vector<1x8x32xf32>
    tpu.vector_store %arg16[%c0_75, %c0_76, %c0_77], %176 {strides = array<i32>} : memref<1x8x32xf32, #tpu.memory_space<vmem>>, vector<1x8x32xf32>,
    return
  }
  func.func @transform_0(%arg0: i32) -> (i32, i32, i32) {
    %c0_i32 = arith.constant 0 : i32
    %c0_i32_0 = arith.constant 0 : i32
    %c0_i32_1 = arith.constant 0 : i32
    return %arg0, %c0_i32, %c0_i32_0 : i32, i32, i32
  }
  func.func @transform_1(%arg0: i32) -> (i32, i32, i32) {
    %c0_i32 = arith.constant 0 : i32
    %c0_i32_0 = arith.constant 0 : i32
    %c0_i32_1 = arith.constant 0 : i32
    return %arg0, %c0_i32, %c0_i32_0 : i32, i32, i32
  }
  func.func @transform_2(%arg0: i32) -> (i32, i32, i32) {
    %c0_i32 = arith.constant 0 : i32
    %c0_i32_0 = arith.constant 0 : i32
    %c0_i32_1 = arith.constant 0 : i32
    return %arg0, %c0_i32, %c0_i32_0 : i32, i32, i32
  }
  func.func @transform_3(%arg0: i32) -> (i32, i32) {
    %c0_i32 = arith.constant 0 : i32
    %c0_i32_0 = arith.constant 0 : i32
    %c0_i32_1 = arith.constant 0 : i32
    return %c0_i32, %c0_i32_0 : i32, i32
  }
  func.func @transform_4(%arg0: i32) -> (i32, i32) {
    %c0_i32 = arith.constant 0 : i32
    %c0_i32_0 = arith.constant 0 : i32
    %c0_i32_1 = arith.constant 0 : i32
    return %c0_i32, %c0_i32_0 : i32, i32
  }
  func.func @transform_5(%arg0: i32) -> (i32, i32) {
    %c0_i32 = arith.constant 0 : i32
    %c0_i32_0 = arith.constant 0 : i32
    %c0_i32_1 = arith.constant 0 : i32
    return %c0_i32, %c0_i32_0 : i32, i32
  }
  func.func @transform_6(%arg0: i32) -> (i32, i32) {
    %c0_i32 = arith.constant 0 : i32
    %c0_i32_0 = arith.constant 0 : i32
    %c0_i32_1 = arith.constant 0 : i32
    return %c0_i32, %c0_i32_0 : i32, i32
  }
  func.func @transform_7(%arg0: i32) -> (i32, i32) {
    %c0_i32 = arith.constant 0 : i32
    %c0_i32_0 = arith.constant 0 : i32
    %c0_i32_1 = arith.constant 0 : i32
    return %c0_i32, %c0_i32_0 : i32, i32
  }
  func.func @transform_8(%arg0: i32) -> (i32, i32) {
    %c0_i32 = arith.constant 0 : i32
    %c0_i32_0 = arith.constant 0 : i32
    %c0_i32_1 = arith.constant 0 : i32
    return %c0_i32, %c0_i32_0 : i32, i32
  }
  func.func @transform_9(%arg0: i32) -> (i32, i32) {
    %c0_i32 = arith.constant 0 : i32
    %c0_i32_0 = arith.constant 0 : i32
    %c0_i32_1 = arith.constant 0 : i32
    return %c0_i32, %c0_i32_0 : i32, i32
  }
  func.func @transform_10(%arg0: i32) -> (i32, i32) {
    %c0_i32 = arith.constant 0 : i32
    %c0_i32_0 = arith.constant 0 : i32
    %c0_i32_1 = arith.constant 0 : i32
    return %c0_i32, %c0_i32_0 : i32, i32
  }
  func.func @transform_11(%arg0: i32) -> (i32, i32) {
    %c0_i32 = arith.constant 0 : i32
    %c0_i32_0 = arith.constant 0 : i32
    %c0_i32_1 = arith.constant 0 : i32
    return %c0_i32, %c0_i32_0 : i32, i32
  }
  func.func @transform_12(%arg0: i32) -> (i32, i32) {
    %c0_i32 = arith.constant 0 : i32
    %c0_i32_0 = arith.constant 0 : i32
    %c0_i32_1 = arith.constant 0 : i32
    return %c0_i32, %c0_i32_0 : i32, i32
  }
  func.func @transform_13(%arg0: i32) -> (i32, i32) {
    %c0_i32 = arith.constant 0 : i32
    %c0_i32_0 = arith.constant 0 : i32
    %c0_i32_1 = arith.constant 0 : i32
    return %c0_i32, %c0_i32_0 : i32, i32
  }
  func.func @transform_14(%arg0: i32) -> (i32, i32) {
    %c0_i32 = arith.constant 0 : i32
    %c0_i32_0 = arith.constant 0 : i32
    %c0_i32_1 = arith.constant 0 : i32
    return %c0_i32, %c0_i32_0 : i32, i32
  }
  func.func @transform_15(%arg0: i32) -> (i32, i32, i32) {
    %c0_i32 = arith.constant 0 : i32
    %c0_i32_0 = arith.constant 0 : i32
    %c0_i32_1 = arith.constant 0 : i32
    return %arg0, %c0_i32, %c0_i32_0 : i32, i32, i32
  }
}

</mosaic_0001>

<llo_original>
// kernel: tpu_custom_call.1
$region0: #{tpu_custom_call.1}
  #allocation0 [shape = 'u32[]', space=smem, size = 0x4, offset = 0x4, fixed_abs, tag = 'smem constant byte address 0x4 - core index']
  #allocation1 [shape = 'u32[144,128]{1,0:T(1,128)}', space=vmem, size = 0x12000, scoped, tag = 'internal scratch']
  #allocation2 [shape = 'bf16[8,32]{1,0:T(8,128)(2,1)}', space=vmem, size = 0x800, scoped, tag = 'scratch operand']
  %s0 = inlined_call_operand.hbm [shape: f32[2,8,32], index: 0, kind: input, shape index: {}]
  %s1 = inlined_call_operand.hbm [shape: bf16[2,8,8], index: 1, kind: input, shape index: {}]
  %s2 = inlined_call_operand.hbm [shape: f32[2,1,8], index: 2, kind: input, shape index: {}]
  %s3 = inlined_call_operand.hbm [shape: bf16[32,96], index: 3, kind: input, shape index: {}]
  %s4 = inlined_call_operand.hbm [shape: f32[1,96], index: 4, kind: input, shape index: {}]
  %s5 = inlined_call_operand.hbm [shape: bf16[32,32], index: 5, kind: input, shape index: {}]
  %s6 = inlined_call_operand.hbm [shape: f32[1,32], index: 6, kind: input, shape index: {}]
  %s7 = inlined_call_operand.hbm [shape: f32[1,32], index: 7, kind: input, shape index: {}]
  %s8 = inlined_call_operand.hbm [shape: f32[1,32], index: 8, kind: input, shape index: {}]
  %s9 = inlined_call_operand.hbm [shape: bf16[32,64], index: 9, kind: input, shape index: {}]
  %s10 = inlined_call_operand.hbm [shape: f32[1,64], index: 10, kind: input, shape index: {}]
  %s11 = inlined_call_operand.hbm [shape: bf16[64,32], index: 11, kind: input, shape index: {}]
  %s12 = inlined_call_operand.hbm [shape: f32[1,32], index: 12, kind: input, shape index: {}]
  %s13 = inlined_call_operand.hbm [shape: f32[1,32], index: 13, kind: input, shape index: {}]
  %s14 = inlined_call_operand.hbm [shape: f32[1,32], index: 14, kind: input, shape index: {}]
  %s15 = inlined_call_operand.hbm [shape: f32[2,8,32], index: 15, kind: output, shape index: {}]
  %s16 = sld [smem:[#allocation0]]
  $region153: #{tpu_custom_call.1} parent=0
    _
  %s18 = ssub.s32 1, %s16
  %s19 = scalar_select 0, %s18, %s16
  $region1: #{tpu_custom_call.1} parent=0
    #allocation3 [shape = 'u8[8192]{0}', space=vmem, size = 0x2000, scoped, tag = 'input window, operand 0']
    #allocation4 [shape = 's32[2]{0}', space=sflag, size = 0x8, scoped, tag = 'scoped memory for tpu_custom_call.1']
    #allocation5 [shape = 's32[2]{0}', space=sflag, size = 0x8, scoped, tag = 'scoped memory for tpu_custom_call.1']
    #allocation6 [shape = 'u8[4096]{0}', space=vmem, size = 0x1000, scoped, tag = 'input window, operand 1']
    #allocation7 [shape = 's32[2]{0}', space=sflag, size = 0x8, scoped, tag = 'scoped memory for tpu_custom_call.1']
    #allocation8 [shape = 'u8[1024]{0}', space=vmem, size = 0x400, scoped, tag = 'input window, operand 2']
    #allocation9 [shape = 'u8[8192]{0}', space=vmem, size = 0x2000, scoped, tag = 'input window, operand 3, single buffered']
    #allocation10 [shape = 's32[1]{0}', space=sflag, size = 0x4, scoped, tag = 'scoped memory for tpu_custom_call.1']
    #allocation11 [shape = 'u8[512]{0}', space=vmem, size = 0x400, scoped, tag = 'input window, operand 4, single buffered']
    #allocation12 [shape = 'u8[8192]{0}', space=vmem, size = 0x2000, scoped, tag = 'input window, operand 5, single buffered']
    #allocation13 [shape = 's32[1]{0}', space=sflag, size = 0x4, scoped, tag = 'scoped memory for tpu_custom_call.1']
    #allocation14 [shape = 'u8[512]{0}', space=vmem, size = 0x400, scoped, tag = 'input window, operand 6, single buffered']
    #allocation15 [shape = 'u8[512]{0}', space=vmem, size = 0x400, scoped, tag = 'input window, operand 7, single buffered']
    #allocation16 [shape = 's32[1]{0}', space=sflag, size = 0x4, scoped, tag = 'scoped memory for tpu_custom_call.1']
    #allocation17 [shape = 'u8[512]{0}', space=vmem, size = 0x400, scoped, tag = 'input window, operand 8, single buffered']
    #allocation18 [shape = 'u8[8192]{0}', space=vmem, size = 0x2000, scoped, tag = 'input window, operand 9, single buffered']
    #allocation19 [shape = 's32[1]{0}', space=sflag, size = 0x4, scoped, tag = 'scoped memory for tpu_custom_call.1']
    #allocation20 [shape = 'u8[512]{0}', space=vmem, size = 0x400, scoped, tag = 'input window, operand 10, single buffered']
    #allocation21 [shape = 'u8[16384]{0}', space=vmem, size = 0x4000, scoped, tag = 'input window, operand 11, single buffered']
    #allocation22 [shape = 's32[1]{0}', space=sflag, size = 0x4, scoped, tag = 'scoped memory for tpu_custom_call.1']
    #allocation23 [shape = 'u8[512]{0}', space=vmem, size = 0x400, scoped, tag = 'input window, operand 12, single buffered']
    #allocation24 [shape = 'u8[512]{0}', space=vmem, size = 0x400, scoped, tag = 'input window, operand 13, single buffered']
    #allocation25 [shape = 's32[1]{0}', space=sflag, size = 0x4, scoped, tag = 'scoped memory for tpu_custom_call.1']
    #allocation26 [shape = 'u8[512]{0}', space=vmem, size = 0x400, scoped, tag = 'input window, operand 14, single buffered']
    #allocation27 [shape = 'u8[8192]{0}', space=vmem, size = 0x2000, scoped, tag = 'output window, operand 0']
    %20 = vsyncpa [#allocation4], 0
    %s21 = scalar_lea.sflag [#allocation4], 1
    %22 = vsyncpa %s21, 0
    %23 = vsyncpa [#allocation7], 0
    %s24 = scalar_lea.sflag [#allocation7], 1
    %25 = vsyncpa %s24, 0
    %26 = vsyncpa [#allocation10], 0
    %27 = vsyncpa [#allocation13], 0
    %28 = vsyncpa [#allocation16], 0
    %29 = vsyncpa [#allocation19], 0
    %30 = vsyncpa [#allocation22], 0
    %31 = vsyncpa [#allocation25], 0
    %32 = vsyncpa [#allocation5], 0
    %s33 = scalar_lea.sflag [#allocation5], 1
    %34 = vsyncpa %s33, 0
    loop: start=0, step=1, limit=4
    $region2: #{tpu_custom_call.1} parent=1 // loop_pre_header
      _
    $region3: #{tpu_custom_call.1} parent=1 // loop_header
      %s36 = sphi 0, %s40
      %p37 = scmp.ge.s32.totalorder %s36, 4
      %s46 = sphi 0, %s48
      %s49 = sphi 0, %s46
      %s50 = sphi 0, %s49
      %s66 = sphi 0, %s50
      %s72 = sphi 0, %s74
      %s75 = sphi 0, %s72
      %s76 = sphi 0, %s75
      %s92 = sphi 0, %s76
      %s98 = sphi 0, %s100
      %s101 = sphi 0, %s98
      %s102 = sphi 0, %s101
      %s118 = sphi 0, %s102
      %s122 = sphi 0, %s122
      %s124 = sphi 0, %s122
      %s125 = sphi 0, %s124
      %s139 = sphi 0, %s125
      %s143 = sphi 0, %s143
      %s145 = sphi 0, %s143
      %s146 = sphi 0, %s145
      %s160 = sphi 0, %s146
      %s164 = sphi 0, %s164
      %s166 = sphi 0, %s164
      %s167 = sphi 0, %s166
      %s181 = sphi 0, %s167
      %s185 = sphi 0, %s185
      %s187 = sphi 0, %s185
      %s188 = sphi 0, %s187
      %s202 = sphi 0, %s188
      %s206 = sphi 0, %s206
      %s208 = sphi 0, %s206
      %s209 = sphi 0, %s208
      %s223 = sphi 0, %s209
      %s227 = sphi 0, %s227
      %s229 = sphi 0, %s227
      %s230 = sphi 0, %s229
      %s244 = sphi 0, %s230
      %s248 = sphi 0, %s248
      %s250 = sphi 0, %s248
      %s251 = sphi 0, %s250
      %s265 = sphi 0, %s251
      %s269 = sphi 0, %s269
      %s271 = sphi 0, %s269
      %s272 = sphi 0, %s271
      %s286 = sphi 0, %s272
      %s290 = sphi 0, %s290
      %s292 = sphi 0, %s290
      %s293 = sphi 0, %s292
      %s307 = sphi 0, %s293
      %s311 = sphi 0, %s311
      %s313 = sphi 0, %s311
      %s314 = sphi 0, %s313
      %s328 = sphi 0, %s314
      %s332 = sphi 0, %s332
      %s334 = sphi 0, %s332
      %s335 = sphi 0, %s334
      %s349 = sphi 0, %s335
      %s353 = sphi 0, %s353
      %s355 = sphi 0, %s353
      %s356 = sphi 0, %s355
      %s370 = sphi 0, %s356
      %s376 = sphi 0, %s378
      %s379 = sphi 0, %s376
      %s380 = sphi 0, %s379
      %s396 = sphi 0, %s380
    $region4: #{tpu_custom_call.1} parent=1 // loop_header_branch
      %39 = sbr.rel (%p37) target = $region8
    $region5: #{tpu_custom_call.1} parent=1 // loop_body
      %s41 = ssub.s32 %s36, 1
      %s42 = ssub.s32 %s36, 2
      %s43 = sadd.s32 %s36, 1
      %s44 = ssub.s32 %s36, %s43
      %p45 = scmp.eq.s32.totalorder %s44, 0
      %s47 = sadd.s32 %s46, 1
      %s48 = scalar_select %p45, %s46, %s47
      %p51 = pneg %p45
      %p52 = scmp.eq.s32.totalorder %s36, 1
      %p53 = por %p51, %p52
      %p54 = scmp.ne.s32.totalorder %s46, %s49
      %p55 = scmp.eq.s32.totalorder %s36, 0
      %p56 = por %p54, %p55
      %p57 = scmp.ne.s32.totalorder %s46, %s49
      %p58 = scmp.eq.s32.totalorder %s41, 1
      %p59 = por %p57, %p58
      %p60 = scmp.ne.s32.totalorder %s49, %s50
      %p61 = scmp.eq.s32.totalorder %s41, 0
      %p62 = por %p60, %p61
      %p63 = scmp.ne.s32.totalorder %s49, %s50
      %p64 = scmp.eq.s32.totalorder %s42, 1
      %p65 = por %p63, %p64
      %p67 = scmp.ne.s32.totalorder %s50, %s66
      %p68 = scmp.eq.s32.totalorder %s42, 0
      %p69 = por %p67, %p68
      %s70 = ssub.s32 %s36, %s43
      %p71 = scmp.eq.s32.totalorder %s70, 0
      %s73 = sadd.s32 %s72, 1
      %s74 = scalar_select %p71, %s72, %s73
      %p77 = pneg %p71
      %p78 = scmp.eq.s32.totalorder %s36, 1
      %p79 = por %p77, %p78
      %p80 = scmp.ne.s32.totalorder %s72, %s75
      %p81 = scmp.eq.s32.totalorder %s36, 0
      %p82 = por %p80, %p81
      %p83 = scmp.ne.s32.totalorder %s72, %s75
      %p84 = scmp.eq.s32.totalorder %s41, 1
      %p85 = por %p83, %p84
      %p86 = scmp.ne.s32.totalorder %s75, %s76
      %p87 = scmp.eq.s32.totalorder %s41, 0
      %p88 = por %p86, %p87
      %p89 = scmp.ne.s32.totalorder %s75, %s76
      %p90 = scmp.eq.s32.totalorder %s42, 1
      %p91 = por %p89, %p90
      %p93 = scmp.ne.s32.totalorder %s76, %s92
      %p94 = scmp.eq.s32.totalorder %s42, 0
      %p95 = por %p93, %p94
      %s96 = ssub.s32 %s36, %s43
      %p97 = scmp.eq.s32.totalorder %s96, 0
      %s99 = sadd.s32 %s98, 1
      %s100 = scalar_select %p97, %s98, %s99
      %p103 = pneg %p97
      %p104 = scmp.eq.s32.totalorder %s36, 1
      %p105 = por %p103, %p104
      %p106 = scmp.ne.s32.totalorder %s98, %s101
      %p107 = scmp.eq.s32.totalorder %s36, 0
      %p108 = por %p106, %p107
      %p109 = scmp.ne.s32.totalorder %s98, %s101
      %p110 = scmp.eq.s32.totalorder %s41, 1
      %p111 = por %p109, %p110
      %p112 = scmp.ne.s32.totalorder %s101, %s102
      %p113 = scmp.eq.s32.totalorder %s41, 0
      %p114 = por %p112, %p113
      %p115 = scmp.ne.s32.totalorder %s101, %s102
      %p116 = scmp.eq.s32.totalorder %s42, 1
      %p117 = por %p115, %p116
      %p119 = scmp.ne.s32.totalorder %s102, %s118
      %p120 = scmp.eq.s32.totalorder %s42, 0
      %p121 = por %p119, %p120
      %s123 = sadd.s32 %s122, 1
      %p126 = scmp.eq.s32.totalorder %s36, 1
      %p127 = scmp.ne.s32.totalorder %s122, %s124
      %p128 = scmp.eq.s32.totalorder %s36, 0
      %p129 = por %p127, %p128
      %p130 = scmp.ne.s32.totalorder %s122, %s124
      %p131 = scmp.eq.s32.totalorder %s41, 1
      %p132 = por %p130, %p131
      %p133 = scmp.ne.s32.totalorder %s124, %s125
      %p134 = scmp.eq.s32.totalorder %s41, 0
      %p135 = por %p133, %p134
      %p136 = scmp.ne.s32.totalorder %s124, %s125
      %p137 = scmp.eq.s32.totalorder %s42, 1
      %p138 = por %p136, %p137
      %p140 = scmp.ne.s32.totalorder %s125, %s139
      %p141 = scmp.eq.s32.totalorder %s42, 0
      %p142 = por %p140, %p141
      %s144 = sadd.s32 %s143, 1
      %p147 = scmp.eq.s32.totalorder %s36, 1
      %p148 = scmp.ne.s32.totalorder %s143, %s145
      %p149 = scmp.eq.s32.totalorder %s36, 0
      %p150 = por %p148, %p149
      %p151 = scmp.ne.s32.totalorder %s143, %s145
      %p152 = scmp.eq.s32.totalorder %s41, 1
      %p153 = por %p151, %p152
      %p154 = scmp.ne.s32.totalorder %s145, %s146
      %p155 = scmp.eq.s32.totalorder %s41, 0
      %p156 = por %p154, %p155
      %p157 = scmp.ne.s32.totalorder %s145, %s146
      %p158 = scmp.eq.s32.totalorder %s42, 1
      %p159 = por %p157, %p158
      %p161 = scmp.ne.s32.totalorder %s146, %s160
      %p162 = scmp.eq.s32.totalorder %s42, 0
      %p163 = por %p161, %p162
      %s165 = sadd.s32 %s164, 1
      %p168 = scmp.eq.s32.totalorder %s36, 1
      %p169 = scmp.ne.s32.totalorder %s164, %s166
      %p170 = scmp.eq.s32.totalorder %s36, 0
      %p171 = por %p169, %p170
      %p172 = scmp.ne.s32.totalorder %s164, %s166
      %p173 = scmp.eq.s32.totalorder %s41, 1
      %p174 = por %p172, %p173
      %p175 = scmp.ne.s32.totalorder %s166, %s167
      %p176 = scmp.eq.s32.totalorder %s41, 0
      %p177 = por %p175, %p176
      %p178 = scmp.ne.s32.totalorder %s166, %s167
      %p179 = scmp.eq.s32.totalorder %s42, 1
      %p180 = por %p178, %p179
      %p182 = scmp.ne.s32.totalorder %s167, %s181
      %p183 = scmp.eq.s32.totalorder %s42, 0
      %p184 = por %p182, %p183
      %s186 = sadd.s32 %s185, 1
      %p189 = scmp.eq.s32.totalorder %s36, 1
      %p190 = scmp.ne.s32.totalorder %s185, %s187
      %p191 = scmp.eq.s32.totalorder %s36, 0
      %p192 = por %p190, %p191
      %p193 = scmp.ne.s32.totalorder %s185, %s187
      %p194 = scmp.eq.s32.totalorder %s41, 1
      %p195 = por %p193, %p194
      %p196 = scmp.ne.s32.totalorder %s187, %s188
      %p197 = scmp.eq.s32.totalorder %s41, 0
      %p198 = por %p196, %p197
      %p199 = scmp.ne.s32.totalorder %s187, %s188
      %p200 = scmp.eq.s32.totalorder %s42, 1
      %p201 = por %p199, %p200
      %p203 = scmp.ne.s32.totalorder %s188, %s202
      %p204 = scmp.eq.s32.totalorder %s42, 0
      %p205 = por %p203, %p204
      %s207 = sadd.s32 %s206, 1
      %p210 = scmp.eq.s32.totalorder %s36, 1
      %p211 = scmp.ne.s32.totalorder %s206, %s208
      %p212 = scmp.eq.s32.totalorder %s36, 0
      %p213 = por %p211, %p212
      %p214 = scmp.ne.s32.totalorder %s206, %s208
      %p215 = scmp.eq.s32.totalorder %s41, 1
      %p216 = por %p214, %p215
      %p217 = scmp.ne.s32.totalorder %s208, %s209
      %p218 = scmp.eq.s32.totalorder %s41, 0
      %p219 = por %p217, %p218
      %p220 = scmp.ne.s32.totalorder %s208, %s209
      %p221 = scmp.eq.s32.totalorder %s42, 1
      %p222 = por %p220, %p221
      %p224 = scmp.ne.s32.totalorder %s209, %s223
      %p225 = scmp.eq.s32.totalorder %s42, 0
      %p226 = por %p224, %p225
      %s228 = sadd.s32 %s227, 1
      %p231 = scmp.eq.s32.totalorder %s36, 1
      %p232 = scmp.ne.s32.totalorder %s227, %s229
      %p233 = scmp.eq.s32.totalorder %s36, 0
      %p234 = por %p232, %p233
      %p235 = scmp.ne.s32.totalorder %s227, %s229
      %p236 = scmp.eq.s32.totalorder %s41, 1
      %p237 = por %p235, %p236
      %p238 = scmp.ne.s32.totalorder %s229, %s230
      %p239 = scmp.eq.s32.totalorder %s41, 0
      %p240 = por %p238, %p239
      %p241 = scmp.ne.s32.totalorder %s229, %s230
      %p242 = scmp.eq.s32.totalorder %s42, 1
      %p243 = por %p241, %p242
      %p245 = scmp.ne.s32.totalorder %s230, %s244
      %p246 = scmp.eq.s32.totalorder %s42, 0
      %p247 = por %p245, %p246
      %s249 = sadd.s32 %s248, 1
      %p252 = scmp.eq.s32.totalorder %s36, 1
      %p253 = scmp.ne.s32.totalorder %s248, %s250
      %p254 = scmp.eq.s32.totalorder %s36, 0
      %p255 = por %p253, %p254
      %p256 = scmp.ne.s32.totalorder %s248, %s250
      %p257 = scmp.eq.s32.totalorder %s41, 1
      %p258 = por %p256, %p257
      %p259 = scmp.ne.s32.totalorder %s250, %s251
      %p260 = scmp.eq.s32.totalorder %s41, 0
      %p261 = por %p259, %p260
      %p262 = scmp.ne.s32.totalorder %s250, %s251
      %p263 = scmp.eq.s32.totalorder %s42, 1
      %p264 = por %p262, %p263
      %p266 = scmp.ne.s32.totalorder %s251, %s265
      %p267 = scmp.eq.s32.totalorder %s42, 0
      %p268 = por %p266, %p267
      %s270 = sadd.s32 %s269, 1
      %p273 = scmp.eq.s32.totalorder %s36, 1
      %p274 = scmp.ne.s32.totalorder %s269, %s271
      %p275 = scmp.eq.s32.totalorder %s36, 0
      %p276 = por %p274, %p275
      %p277 = scmp.ne.s32.totalorder %s269, %s271
      %p278 = scmp.eq.s32.totalorder %s41, 1
      %p279 = por %p277, %p278
      %p280 = scmp.ne.s32.totalorder %s271, %s272
      %p281 = scmp.eq.s32.totalorder %s41, 0
      %p282 = por %p280, %p281
      %p283 = scmp.ne.s32.totalorder %s271, %s272
      %p284 = scmp.eq.s32.totalorder %s42, 1
      %p285 = por %p283, %p284
      %p287 = scmp.ne.s32.totalorder %s272, %s286
      %p288 = scmp.eq.s32.totalorder %s42, 0
      %p289 = por %p287, %p288
      %s291 = sadd.s32 %s290, 1
      %p294 = scmp.eq.s32.totalorder %s36, 1
      %p295 = scmp.ne.s32.totalorder %s290, %s292
      %p296 = scmp.eq.s32.totalorder %s36, 0
      %p297 = por %p295, %p296
      %p298 = scmp.ne.s32.totalorder %s290, %s292
      %p299 = scmp.eq.s32.totalorder %s41, 1
      %p300 = por %p298, %p299
      %p301 = scmp.ne.s32.totalorder %s292, %s293
      %p302 = scmp.eq.s32.totalorder %s41, 0
      %p303 = por %p301, %p302
      %p304 = scmp.ne.s32.totalorder %s292, %s293
      %p305 = scmp.eq.s32.totalorder %s42, 1
      %p306 = por %p304, %p305
      %p308 = scmp.ne.s32.totalorder %s293, %s307
      %p309 = scmp.eq.s32.totalorder %s42, 0
      %p310 = por %p308, %p309
      %s312 = sadd.s32 %s311, 1
      %p315 = scmp.eq.s32.totalorder %s36, 1
      %p316 = scmp.ne.s32.totalorder %s311, %s313
      %p317 = scmp.eq.s32.totalorder %s36, 0
      %p318 = por %p316, %p317
      %p319 = scmp.ne.s32.totalorder %s311, %s313
      %p320 = scmp.eq.s32.totalorder %s41, 1
      %p321 = por %p319, %p320
      %p322 = scmp.ne.s32.totalorder %s313, %s314
      %p323 = scmp.eq.s32.totalorder %s41, 0
      %p324 = por %p322, %p323
      %p325 = scmp.ne.s32.totalorder %s313, %s314
      %p326 = scmp.eq.s32.totalorder %s42, 1
      %p327 = por %p325, %p326
      %p329 = scmp.ne.s32.totalorder %s314, %s328
      %p330 = scmp.eq.s32.totalorder %s42, 0
      %p331 = por %p329, %p330
      %s333 = sadd.s32 %s332, 1
      %p336 = scmp.eq.s32.totalorder %s36, 1
      %p337 = scmp.ne.s32.totalorder %s332, %s334
      %p338 = scmp.eq.s32.totalorder %s36, 0
      %p339 = por %p337, %p338
      %p340 = scmp.ne.s32.totalorder %s332, %s334
      %p341 = scmp.eq.s32.totalorder %s41, 1
      %p342 = por %p340, %p341
      %p343 = scmp.ne.s32.totalorder %s334, %s335
      %p344 = scmp.eq.s32.totalorder %s41, 0
      %p345 = por %p343, %p344
      %p346 = scmp.ne.s32.totalorder %s334, %s335
      %p347 = scmp.eq.s32.totalorder %s42, 1
      %p348 = por %p346, %p347
      %p350 = scmp.ne.s32.totalorder %s335, %s349
      %p351 = scmp.eq.s32.totalorder %s42, 0
      %p352 = por %p350, %p351
      %s354 = sadd.s32 %s353, 1
      %p357 = scmp.eq.s32.totalorder %s36, 1
      %p358 = scmp.ne.s32.totalorder %s353, %s355
      %p359 = scmp.eq.s32.totalorder %s36, 0
      %p360 = por %p358, %p359
      %p361 = scmp.ne.s32.totalorder %s353, %s355
      %p362 = scmp.eq.s32.totalorder %s41, 1
      %p363 = por %p361, %p362
      %p364 = scmp.ne.s32.totalorder %s355, %s356
      %p365 = scmp.eq.s32.totalorder %s41, 0
      %p366 = por %p364, %p365
      %p367 = scmp.ne.s32.totalorder %s355, %s356
      %p368 = scmp.eq.s32.totalorder %s42, 1
      %p369 = por %p367, %p368
      %p371 = scmp.ne.s32.totalorder %s356, %s370
      %p372 = scmp.eq.s32.totalorder %s42, 0
      %p373 = por %p371, %p372
      %s374 = ssub.s32 %s36, %s43
      %p375 = scmp.eq.s32.totalorder %s374, 0
      %s377 = sadd.s32 %s376, 1
      %s378 = scalar_select %p375, %s376, %s377
      %p381 = pneg %p375
      %p382 = scmp.eq.s32.totalorder %s36, 1
      %p383 = por %p381, %p382
      %p384 = scmp.ne.s32.totalorder %s376, %s379
      %p385 = scmp.eq.s32.totalorder %s36, 0
      %p386 = por %p384, %p385
      %p387 = scmp.ne.s32.totalorder %s376, %s379
      %p388 = scmp.eq.s32.totalorder %s41, 1
      %p389 = por %p387, %p388
      %p390 = scmp.ne.s32.totalorder %s379, %s380
      %p391 = scmp.eq.s32.totalorder %s41, 0
      %p392 = por %p390, %p391
      %p393 = scmp.ne.s32.totalorder %s379, %s380
      %p394 = scmp.eq.s32.totalorder %s42, 1
      %p395 = por %p393, %p394
      %p397 = scmp.ne.s32.totalorder %s380, %s396
      %p398 = scmp.eq.s32.totalorder %s42, 0
      %p399 = por %p397, %p398
      %p400 = scmp.le.s32.totalorder 1, %s36
      %p401 = scmp.lt.s32.totalorder %s36, 3
      %p402 = pnand %p400, %p401
      %p403 = pneg %p402
      // Predicated region
      $region9: #{tpu_custom_call.1} parent=5 // pred_check
        _
      $region10: #{tpu_custom_call.1} parent=5 // pred_check_branch
        %405 = sbr.rel (%p402) target = $region12
      $region11: #{tpu_custom_call.1} parent=5 // pred_region
        %s406 = ssub.s32 %s36, 1
        // Predicated region
        $region13: #{tpu_custom_call.1} parent=11 // pred_check
          %p407 = pneg %p135
        $region14: #{tpu_custom_call.1} parent=11 // pred_check_branch
          %409 = sbr.rel (%p407) target = $region16
        $region15: #{tpu_custom_call.1} parent=11 // pred_region
          %s411 = ssub.s32 256, 256
          %412 = vsyncadd [#allocation10], %s411
          %s413 = sshll.u32 [#allocation9], 4
          %s414 = int_to_ptr.vmem [resolvable:$true] %s413
          %419 = dma.hbm_to_vmem [thread:$0]  %s3, 256, %s414, [#allocation10], 64, 64, 4
        $region16: #{tpu_custom_call.1} parent=11 // pred_fallthru
          _
        // Predicated region
        $region17: #{tpu_custom_call.1} parent=11 // pred_check
          %p420 = pneg %p156
        $region18: #{tpu_custom_call.1} parent=11 // pred_check_branch
          %422 = sbr.rel (%p420) target = $region20
        $region19: #{tpu_custom_call.1} parent=11 // pred_region
          %s424 = ssub.s32 16, 16
          %425 = vsyncadd [#allocation10], %s424
          %s427 = sshll.u32 [#allocation11], 4
          %s428 = int_to_ptr.vmem [resolvable:$true] %s427
          %430 = dma.hbm_to_vmem [thread:$0]  %s4, 16, %s428, [#allocation10]
        $region20: #{tpu_custom_call.1} parent=11 // pred_fallthru
          _
        // Predicated region
        $region21: #{tpu_custom_call.1} parent=11 // pred_check
          %p431 = pneg %p177
        $region22: #{tpu_custom_call.1} parent=11 // pred_check_branch
          %433 = sbr.rel (%p431) target = $region24
        $region23: #{tpu_custom_call.1} parent=11 // pred_region
          %s435 = ssub.s32 256, 256
          %436 = vsyncadd [#allocation13], %s435
          %s437 = sshll.u32 [#allocation12], 4
          %s438 = int_to_ptr.vmem [resolvable:$true] %s437
          %443 = dma.hbm_to_vmem [thread:$0]  %s5, 256, %s438, [#allocation13], 64, 64, 4
        $region24: #{tpu_custom_call.1} parent=11 // pred_fallthru
          _
        // Predicated region
        $region25: #{tpu_custom_call.1} parent=11 // pred_check
          %p444 = pneg %p198
        $region26: #{tpu_custom_call.1} parent=11 // pred_check_branch
          %446 = sbr.rel (%p444) target = $region28
        $region27: #{tpu_custom_call.1} parent=11 // pred_region
          %s448 = ssub.s32 16, 16
          %449 = vsyncadd [#allocation13], %s448
          %s451 = sshll.u32 [#allocation14], 4
          %s452 = int_to_ptr.vmem [resolvable:$true] %s451
          %454 = dma.hbm_to_vmem [thread:$0]  %s6, 16, %s452, [#allocation13]
        $region28: #{tpu_custom_call.1} parent=11 // pred_fallthru
          _
        // Predicated region
        $region29: #{tpu_custom_call.1} parent=11 // pred_check
          %p455 = pneg %p219
        $region30: #{tpu_custom_call.1} parent=11 // pred_check_branch
          %457 = sbr.rel (%p455) target = $region32
        $region31: #{tpu_custom_call.1} parent=11 // pred_region
          %s459 = ssub.s32 16, 16
          %460 = vsyncadd [#allocation16], %s459
          %s462 = sshll.u32 [#allocation15], 4
          %s463 = int_to_ptr.vmem [resolvable:$true] %s462
          %465 = dma.hbm_to_vmem [thread:$0]  %s7, 16, %s463, [#allocation16]
        $region32: #{tpu_custom_call.1} parent=11 // pred_fallthru
          _
        // Predicated region
        $region33: #{tpu_custom_call.1} parent=11 // pred_check
          %p466 = pneg %p240
        $region34: #{tpu_custom_call.1} parent=11 // pred_check_branch
          %468 = sbr.rel (%p466) target = $region36
        $region35: #{tpu_custom_call.1} parent=11 // pred_region
          %s470 = ssub.s32 16, 16
          %471 = vsyncadd [#allocation16], %s470
          %s473 = sshll.u32 [#allocation17], 4
          %s474 = int_to_ptr.vmem [resolvable:$true] %s473
          %476 = dma.hbm_to_vmem [thread:$0]  %s8, 16, %s474, [#allocation16]
        $region36: #{tpu_custom_call.1} parent=11 // pred_fallthru
          _
        // Predicated region
        $region37: #{tpu_custom_call.1} parent=11 // pred_check
          %p477 = pneg %p261
        $region38: #{tpu_custom_call.1} parent=11 // pred_check_branch
          %479 = sbr.rel (%p477) target = $region40
        $region39: #{tpu_custom_call.1} parent=11 // pred_region
          %s481 = ssub.s32 256, 256
          %482 = vsyncadd [#allocation19], %s481
          %s483 = sshll.u32 [#allocation18], 4
          %s484 = int_to_ptr.vmem [resolvable:$true] %s483
          %489 = dma.hbm_to_vmem [thread:$0]  %s9, 256, %s484, [#allocation19], 64, 64, 4
        $region40: #{tpu_custom_call.1} parent=11 // pred_fallthru
          _
        // Predicated region
        $region41: #{tpu_custom_call.1} parent=11 // pred_check
          %p490 = pneg %p282
        $region42: #{tpu_custom_call.1} parent=11 // pred_check_branch
          %492 = sbr.rel (%p490) target = $region44
        $region43: #{tpu_custom_call.1} parent=11 // pred_region
          %s494 = ssub.s32 16, 16
          %495 = vsyncadd [#allocation19], %s494
          %s497 = sshll.u32 [#allocation20], 4
          %s498 = int_to_ptr.vmem [resolvable:$true] %s497
          %500 = dma.hbm_to_vmem [thread:$0]  %s10, 16, %s498, [#allocation19]
        $region44: #{tpu_custom_call.1} parent=11 // pred_fallthru
          _
        // Predicated region
        $region45: #{tpu_custom_call.1} parent=11 // pred_check
          %p501 = pneg %p303
        $region46: #{tpu_custom_call.1} parent=11 // pred_check_branch
          %503 = sbr.rel (%p501) target = $region48
        $region47: #{tpu_custom_call.1} parent=11 // pred_region
          %s505 = ssub.s32 512, 512
          %506 = vsyncadd [#allocation22], %s505
          %s507 = sshll.u32 [#allocation21], 4
          %s508 = int_to_ptr.vmem [resolvable:$true] %s507
          %513 = dma.hbm_to_vmem [thread:$0]  %s11, 512, %s508, [#allocation22], 64, 64, 4
        $region48: #{tpu_custom_call.1} parent=11 // pred_fallthru
          _
        // Predicated region
        $region49: #{tpu_custom_call.1} parent=11 // pred_check
          %p514 = pneg %p324
        $region50: #{tpu_custom_call.1} parent=11 // pred_check_branch
          %516 = sbr.rel (%p514) target = $region52
        $region51: #{tpu_custom_call.1} parent=11 // pred_region
          %s518 = ssub.s32 16, 16
          %519 = vsyncadd [#allocation22], %s518
          %s521 = sshll.u32 [#allocation23], 4
          %s522 = int_to_ptr.vmem [resolvable:$true] %s521
          %524 = dma.hbm_to_vmem [thread:$0]  %s12, 16, %s522, [#allocation22]
        $region52: #{tpu_custom_call.1} parent=11 // pred_fallthru
          _
        // Predicated region
        $region53: #{tpu_custom_call.1} parent=11 // pred_check
          %p525 = pneg %p345
        $region54: #{tpu_custom_call.1} parent=11 // pred_check_branch
          %527 = sbr.rel (%p525) target = $region56
        $region55: #{tpu_custom_call.1} parent=11 // pred_region
          %s529 = ssub.s32 16, 16
          %530 = vsyncadd [#allocation25], %s529
          %s532 = sshll.u32 [#allocation24], 4
          %s533 = int_to_ptr.vmem [resolvable:$true] %s532
          %535 = dma.hbm_to_vmem [thread:$0]  %s13, 16, %s533, [#allocation25]
        $region56: #{tpu_custom_call.1} parent=11 // pred_fallthru
          _
        // Predicated region
        $region57: #{tpu_custom_call.1} parent=11 // pred_check
          %p536 = pneg %p366
        $region58: #{tpu_custom_call.1} parent=11 // pred_check_branch
          %538 = sbr.rel (%p536) target = $region60
        $region59: #{tpu_custom_call.1} parent=11 // pred_region
          %s540 = ssub.s32 16, 16
          %541 = vsyncadd [#allocation25], %s540
          %s543 = sshll.u32 [#allocation26], 4
          %s544 = int_to_ptr.vmem [resolvable:$true] %s543
          %546 = dma.hbm_to_vmem [thread:$0]  %s14, 16, %s544, [#allocation25]
        $region60: #{tpu_custom_call.1} parent=11 // pred_fallthru
          _
      $region12: #{tpu_custom_call.1} parent=5 // pred_fallthru
        _
      %p547 = scmp.lt.s32.totalorder %s36, 2
      // Predicated region
      $region61: #{tpu_custom_call.1} parent=5 // pred_check
        %p548 = pneg %p547
      $region62: #{tpu_custom_call.1} parent=5 // pred_check_branch
        %550 = sbr.rel (%p548) target = $region64
      $region63: #{tpu_custom_call.1} parent=5 // pred_region
        // Predicated region
        $region65: #{tpu_custom_call.1} parent=63 // pred_check
          %p551 = pneg %p56
        $region66: #{tpu_custom_call.1} parent=63 // pred_check_branch
          %553 = sbr.rel (%p551) target = $region68
        $region67: #{tpu_custom_call.1} parent=63 // pred_region
          %s554 = sand.u32 %s46, 1
          %s555 = scalar_lea.sflag [#allocation4], %s554
          %s556 = sand.u32 %s46, 1
          %s557 = smul.addr %s556, 8
          %s558 = scalar_lea.vmem [#allocation3], %s557
          %s560 = ssub.s32 128, 128
          %561 = vsyncadd %s555, %s560
          %s562 = smul.addr %s36, 128
          %s563 = scalar_lea.hbm %s0, %s562
          %s565 = sshll.u32 %s558, 4
          %s566 = int_to_ptr.vmem [resolvable:$true] %s565
          %568 = dma.hbm_to_vmem [thread:$0]  %s563, 128, %s566, %s555
        $region68: #{tpu_custom_call.1} parent=63 // pred_fallthru
          _
        // Predicated region
        $region69: #{tpu_custom_call.1} parent=63 // pred_check
          %p569 = pneg %p82
        $region70: #{tpu_custom_call.1} parent=63 // pred_check_branch
          %571 = sbr.rel (%p569) target = $region72
        $region71: #{tpu_custom_call.1} parent=63 // pred_region
          %s572 = sand.u32 %s36, 1
          %s573 = scalar_lea.sflag [#allocation7], %s572
          %s574 = sand.u32 %s72, 1
          %s575 = smul.addr %s574, 4
          %s576 = scalar_lea.vmem [#allocation6], %s575
          %s578 = ssub.s32 64, 64
          %579 = vsyncadd %s573, %s578
          %s580 = smul.addr %s36, 64
          %s581 = scalar_lea.hbm %s1, %s580
          %s583 = sshll.u32 %s576, 4
          %s584 = int_to_ptr.vmem [resolvable:$true] %s583
          %586 = dma.hbm_to_vmem [thread:$0]  %s581, 64, %s584, %s573
        $region72: #{tpu_custom_call.1} parent=63 // pred_fallthru
          _
        // Predicated region
        $region73: #{tpu_custom_call.1} parent=63 // pred_check
          %p587 = pneg %p108
        $region74: #{tpu_custom_call.1} parent=63 // pred_check_branch
          %589 = sbr.rel (%p587) target = $region76
        $region75: #{tpu_custom_call.1} parent=63 // pred_region
          %s590 = sand.u32 %s36, 1
          %s591 = scalar_lea.sflag [#allocation7], %s590
          %s592 = sand.u32 %s98, 1
          %s593 = scalar_lea.vmem [#allocation8], %s592
          %s595 = ssub.s32 16, 16
          %596 = vsyncadd %s591, %s595
          %s597 = smul.addr %s36, 16
          %s598 = scalar_lea.hbm %s2, %s597
          %s600 = sshll.u32 %s593, 4
          %s601 = int_to_ptr.vmem [resolvable:$true] %s600
          %603 = dma.hbm_to_vmem [thread:$0]  %s598, 16, %s601, %s591
        $region76: #{tpu_custom_call.1} parent=63 // pred_fallthru
          _
      $region64: #{tpu_custom_call.1} parent=5 // pred_fallthru
        _
      %p604 = scmp.le.s32.totalorder 1, %s36
      %p605 = scmp.lt.s32.totalorder %s36, 3
      %p606 = pnand %p604, %p605
      %p607 = pneg %p606
      // Predicated region
      $region77: #{tpu_custom_call.1} parent=5 // pred_check
        _
      $region78: #{tpu_custom_call.1} parent=5 // pred_check_branch
        %609 = sbr.rel (%p606) target = $region80
      $region79: #{tpu_custom_call.1} parent=5 // pred_region
        %s610 = ssub.s32 %s36, 1
        %s611 = sand.u32 %s49, 1
        %s612 = scalar_lea.sflag [#allocation4], %s611
        %s613 = sand.u32 %s49, 1
        %s614 = smul.addr %s613, 8
        %s615 = scalar_lea.vmem [#allocation3], %s614
        // Predicated region
        $region81: #{tpu_custom_call.1} parent=79 // pred_check
          %p616 = pneg %p62
        $region82: #{tpu_custom_call.1} parent=79 // pred_check_branch
          %618 = sbr.rel (%p616) target = $region84
        $region83: #{tpu_custom_call.1} parent=79 // pred_region
          %619 = dma.done %s612, 128
        $region84: #{tpu_custom_call.1} parent=79 // pred_fallthru
          _
        %s620 = sand.u32 %s41, 1
        %s621 = scalar_lea.sflag [#allocation7], %s620
        %s622 = sand.u32 %s75, 1
        %s623 = smul.addr %s622, 4
        %s624 = scalar_lea.vmem [#allocation6], %s623
        // Predicated region
        $region85: #{tpu_custom_call.1} parent=79 // pred_check
          %p625 = pneg %p88
        $region86: #{tpu_custom_call.1} parent=79 // pred_check_branch
          %627 = sbr.rel (%p625) target = $region88
        $region87: #{tpu_custom_call.1} parent=79 // pred_region
          %628 = dma.done %s621, 64
        $region88: #{tpu_custom_call.1} parent=79 // pred_fallthru
          _
        %s629 = sand.u32 %s41, 1
        %s630 = scalar_lea.sflag [#allocation7], %s629
        %s631 = sand.u32 %s101, 1
        %s632 = scalar_lea.vmem [#allocation8], %s631
        // Predicated region
        $region89: #{tpu_custom_call.1} parent=79 // pred_check
          %p633 = pneg %p114
        $region90: #{tpu_custom_call.1} parent=79 // pred_check_branch
          %635 = sbr.rel (%p633) target = $region92
        $region91: #{tpu_custom_call.1} parent=79 // pred_region
          %636 = dma.done %s630, 16
        $region92: #{tpu_custom_call.1} parent=79 // pred_fallthru
          _
        // Predicated region
        $region93: #{tpu_custom_call.1} parent=79 // pred_check
          %p637 = pneg %p135
        $region94: #{tpu_custom_call.1} parent=79 // pred_check_branch
          %639 = sbr.rel (%p637) target = $region96
        $region95: #{tpu_custom_call.1} parent=79 // pred_region
          %640 = dma.done [#allocation10], 256
        $region96: #{tpu_custom_call.1} parent=79 // pred_fallthru
          _
        // Predicated region
        $region97: #{tpu_custom_call.1} parent=79 // pred_check
          %p641 = pneg %p156
        $region98: #{tpu_custom_call.1} parent=79 // pred_check_branch
          %643 = sbr.rel (%p641) target = $region100
        $region99: #{tpu_custom_call.1} parent=79 // pred_region
          %644 = dma.done [#allocation10], 16
        $region100: #{tpu_custom_call.1} parent=79 // pred_fallthru
          _
        // Predicated region
        $region101: #{tpu_custom_call.1} parent=79 // pred_check
          %p645 = pneg %p177
        $region102: #{tpu_custom_call.1} parent=79 // pred_check_branch
          %647 = sbr.rel (%p645) target = $region104
        $region103: #{tpu_custom_call.1} parent=79 // pred_region
          %648 = dma.done [#allocation13], 256
        $region104: #{tpu_custom_call.1} parent=79 // pred_fallthru
          _
        // Predicated region
        $region105: #{tpu_custom_call.1} parent=79 // pred_check
          %p649 = pneg %p198
        $region106: #{tpu_custom_call.1} parent=79 // pred_check_branch
          %651 = sbr.rel (%p649) target = $region108
        $region107: #{tpu_custom_call.1} parent=79 // pred_region
          %652 = dma.done [#allocation13], 16
        $region108: #{tpu_custom_call.1} parent=79 // pred_fallthru
          _
        // Predicated region
        $region109: #{tpu_custom_call.1} parent=79 // pred_check
          %p653 = pneg %p219
        $region110: #{tpu_custom_call.1} parent=79 // pred_check_branch
          %655 = sbr.rel (%p653) target = $region112
        $region111: #{tpu_custom_call.1} parent=79 // pred_region
          %656 = dma.done [#allocation16], 16
        $region112: #{tpu_custom_call.1} parent=79 // pred_fallthru
          _
        // Predicated region
        $region113: #{tpu_custom_call.1} parent=79 // pred_check
          %p657 = pneg %p240
        $region114: #{tpu_custom_call.1} parent=79 // pred_check_branch
          %659 = sbr.rel (%p657) target = $region116
        $region115: #{tpu_custom_call.1} parent=79 // pred_region
          %660 = dma.done [#allocation16], 16
        $region116: #{tpu_custom_call.1} parent=79 // pred_fallthru
          _
        // Predicated region
        $region117: #{tpu_custom_call.1} parent=79 // pred_check
          %p661 = pneg %p261
        $region118: #{tpu_custom_call.1} parent=79 // pred_check_branch
          %663 = sbr.rel (%p661) target = $region120
        $region119: #{tpu_custom_call.1} parent=79 // pred_region
          %664 = dma.done [#allocation19], 256
        $region120: #{tpu_custom_call.1} parent=79 // pred_fallthru
          _
        // Predicated region
        $region121: #{tpu_custom_call.1} parent=79 // pred_check
          %p665 = pneg %p282
        $region122: #{tpu_custom_call.1} parent=79 // pred_check_branch
          %667 = sbr.rel (%p665) target = $region124
        $region123: #{tpu_custom_call.1} parent=79 // pred_region
          %668 = dma.done [#allocation19], 16
        $region124: #{tpu_custom_call.1} parent=79 // pred_fallthru
          _
        // Predicated region
        $region125: #{tpu_custom_call.1} parent=79 // pred_check
          %p669 = pneg %p303
        $region126: #{tpu_custom_call.1} parent=79 // pred_check_branch
          %671 = sbr.rel (%p669) target = $region128
        $region127: #{tpu_custom_call.1} parent=79 // pred_region
          %672 = dma.done [#allocation22], 512
        $region128: #{tpu_custom_call.1} parent=79 // pred_fallthru
          _
        // Predicated region
        $region129: #{tpu_custom_call.1} parent=79 // pred_check
          %p673 = pneg %p324
        $region130: #{tpu_custom_call.1} parent=79 // pred_check_branch
          %675 = sbr.rel (%p673) target = $region132
        $region131: #{tpu_custom_call.1} parent=79 // pred_region
          %676 = dma.done [#allocation22], 16
        $region132: #{tpu_custom_call.1} parent=79 // pred_fallthru
          _
        // Predicated region
        $region133: #{tpu_custom_call.1} parent=79 // pred_check
          %p677 = pneg %p345
        $region134: #{tpu_custom_call.1} parent=79 // pred_check_branch
          %679 = sbr.rel (%p677) target = $region136
        $region135: #{tpu_custom_call.1} parent=79 // pred_region
          %680 = dma.done [#allocation25], 16
        $region136: #{tpu_custom_call.1} parent=79 // pred_fallthru
          _
        // Predicated region
        $region137: #{tpu_custom_call.1} parent=79 // pred_check
          %p681 = pneg %p366
        $region138: #{tpu_custom_call.1} parent=79 // pred_check_branch
          %683 = sbr.rel (%p681) target = $region140
        $region139: #{tpu_custom_call.1} parent=79 // pred_region
          %684 = dma.done [#allocation25], 16
        $region140: #{tpu_custom_call.1} parent=79 // pred_fallthru
          _
        %s685 = sand.u32 %s49, 1
        %s686 = scalar_lea.sflag [#allocation4], %s685
        %s687 = sand.u32 %s49, 1
        %s688 = smul.addr %s687, 8
        %s689 = scalar_lea.vmem [#allocation3], %s688
        %p690 = pneg %p62
        %p691 = pneg %p59
        %s692 = sand.u32 %s41, 1
        %s693 = scalar_lea.sflag [#allocation7], %s692
        %s694 = sand.u32 %s75, 1
        %s695 = smul.addr %s694, 4
        %s696 = scalar_lea.vmem [#allocation6], %s695
        %p697 = pneg %p88
        %p698 = pneg %p85
        %s699 = sand.u32 %s41, 1
        %s700 = scalar_lea.sflag [#allocation7], %s699
        %s701 = sand.u32 %s101, 1
        %s702 = scalar_lea.vmem [#allocation8], %s701
        %p703 = pneg %p114
        %p704 = pneg %p111
        %p705 = pneg %p135
        %p706 = pneg %p132
        %p707 = pneg %p156
        %p708 = pneg %p153
        %p709 = pneg %p177
        %p710 = pneg %p174
        %p711 = pneg %p198
        %p712 = pneg %p195
        %p713 = pneg %p219
        %p714 = pneg %p216
        %p715 = pneg %p240
        %p716 = pneg %p237
        %p717 = pneg %p261
        %p718 = pneg %p258
        %p719 = pneg %p282
        %p720 = pneg %p279
        %p721 = pneg %p303
        %p722 = pneg %p300
        %p723 = pneg %p324
        %p724 = pneg %p321
        %p725 = pneg %p345
        %p726 = pneg %p342
        %p727 = pneg %p366
        %p728 = pneg %p363
        %p729 = pneg %p392
        %p730 = pneg %p389
        %s731 = sand.u32 %s379, 1
        %s732 = scalar_lea.sflag [#allocation5], %s731
        %s733 = sand.u32 %s379, 1
        %s734 = smul.addr %s733, 8
        %s735 = scalar_lea.vmem [#allocation27], %s734
        %v737 = vld [vmem:[%s615] sm:$0xff]
        %v738 = vpack.c.bf16 %v737, %v737
        %v739 = vld [vmem:[#allocation9] sm:$0xf]
        %v740 = vld [vmem:[#allocation9 + $0x4] sm:$0xf]
        %v741 = vld [vmem:[#allocation9 + $0x8] sm:$0xf]
        %v742 = vld [vmem:[#allocation9 + $0xc] sm:$0xf]
        %v743 = vld [vmem:[#allocation11] sm:$0x1]
        %v745 = vlaneseq
        %v746 = vshrl.u32 %v745, 7
        %v747 = vsub.s32 0, %v746
        %v748 = vrot.slane %v743, %v747
        %v754 = vunpack.c.l.b16 %v739
        %v755 = vunpack.c.l.b16 %v740
        %v756 = vunpack.c.l.b16 %v741
        %v757 = vunpack.c.l.b16 %v742
        %v758 = vpack.c.b16 %v755, %v754
        %v759 = vpack.c.b16 %v757, %v756
        %vm762 = vcmask 261120
        %v764 = vsel %vm762, %v738, 0
        %766 = vmatprep.subr.bf16.mxu0 0
        %767 = vmatpush1.bf16.msra.mxu0 %v758
        %768 = vmatprep.subr.bf16.mxu0 0
        %769 = vmatpush1.bf16.msra.mxu0 %v759
        %770 = vmatprep.subr.bf16.mxu0 0
        %771 = vmatpush1.bf16.msra.mxu0 0
        %772 = vmatprep.subr.bf16.mxu0 0
        %773 = vmatpush1.bf16.msra.mxu0 0
        %774 = vmatprep.subr.bf16.mxu0 0
        %775 = vmatpush1.bf16.msra.mxu0 0
        %776 = vmatprep.subr.bf16.mxu0 0
        %777 = vmatpush1.bf16.msra.mxu0 0
        %778 = vmatprep.subr.bf16.mxu0 0
        %779 = vmatpush1.bf16.msra.mxu0 0
        %780 = vmatprep.subr.bf16.mxu0 0
        %781 = vmatpush1.bf16.msra.mxu0 0
        %782 = vmatprep.subr.bf16.mxu0 0
        %783 = vmatpush1.bf16.msra.mxu0 0
        %784 = vmatprep.subr.bf16.mxu0 0
        %785 = vmatpush1.bf16.msra.mxu0 0
        %786 = vmatprep.subr.bf16.mxu0 0
        %787 = vmatpush1.bf16.msra.mxu0 0
        %788 = vmatprep.subr.bf16.mxu0 0
        %789 = vmatpush1.bf16.msra.mxu0 0
        %790 = vmatprep.subr.bf16.mxu0 0
        %791 = vmatpush1.bf16.msra.mxu0 0
        %792 = vmatprep.subr.bf16.mxu0 0
        %793 = vmatpush1.bf16.msra.mxu0 0
        %794 = vmatprep.subr.bf16.mxu0 0
        %795 = vmatpush1.bf16.msra.mxu0 0
        %796 = vmatprep.subr.bf16.mxu0 0
        %797 = vmatpush1.bf16.msra.mxu0 0
        %798 = vmatprep.mubr.bf16.mxu0 0
        %799 = vmatmul.mubr.bf16.gmra.mrb[0].mxu0 %v764
        %v800 = vpop.f32.mrb[0].mxu0
        %v801 = vadd.f32 %v748, %v800
        %v802 = vpop.f32.mrb[0].mxu0
        %v803 = vpop.f32.mrb[0].mxu0
        %v804 = vpop.f32.mrb[0].mxu0
        %805 = vdwg.mxu0
        %v806 = vpack.c.bf16 %v801, %v801
        %v807 = vld [vmem:[%s624] sm:$0xf]
        %v808 = vunpack.c.l.bf16 %v807
        %v809 = vld [vmem:[%s632] sm:$0x1]
        %vm810 = vcmp.gt.f32.partialorder %v809, 0.5
        %v811 = vsel %vm810, 1, 0
        %v812 = vlaneseq
        %v813 = vshrl.u32 %v812, 7
        %v814 = vsub.s32 0, %v813
        %v815 = vrot.slane %v811, %v814
        %vm816 = vcmp.eq.s32.totalorder %v815, 1
        %818 = vrot.lane.b32.xlu0 %v806, 96
        %v819 = vpop.permute.xlu0 %818
        %vm820 = vcmask 64512
        %v822 = vsel %vm820, %v806, 0
        %v825 = vsel %vm820, %v819, 0
        %827 = vmatprep.subr.bf16.mxu0 0
        %828 = vmatpush1.bf16.xpose.msra.mxu0 %v825
        %829 = vmatprep.subr.bf16.mxu0 0
        %830 = vmatpush1.bf16.xpose.msra.mxu0 0
        %831 = vmatprep.subr.bf16.mxu0 0
        %832 = vmatpush1.bf16.xpose.msra.mxu0 0
        %833 = vmatprep.subr.bf16.mxu0 0
        %834 = vmatpush1.bf16.xpose.msra.mxu0 0
        %835 = vmatprep.subr.bf16.mxu0 0
        %836 = vmatpush1.bf16.xpose.msra.mxu0 0
        %837 = vmatprep.subr.bf16.mxu0 0
        %838 = vmatpush1.bf16.xpose.msra.mxu0 0
        %839 = vmatprep.subr.bf16.mxu0 0
        %840 = vmatpush1.bf16.xpose.msra.mxu0 0
        %841 = vmatprep.subr.bf16.mxu0 0
        %842 = vmatpush1.bf16.xpose.msra.mxu0 0
        %843 = vmatprep.subr.bf16.mxu0 0
        %844 = vmatpush1.bf16.xpose.msra.mxu0 0
        %845 = vmatprep.subr.bf16.mxu0 0
        %846 = vmatpush1.bf16.xpose.msra.mxu0 0
        %847 = vmatprep.subr.bf16.mxu0 0
        %848 = vmatpush1.bf16.xpose.msra.mxu0 0
        %849 = vmatprep.subr.bf16.mxu0 0
        %850 = vmatpush1.bf16.xpose.msra.mxu0 0
        %851 = vmatprep.subr.bf16.mxu0 0
        %852 = vmatpush1.bf16.xpose.msra.mxu0 0
        %853 = vmatprep.subr.bf16.mxu0 0
        %854 = vmatpush1.bf16.xpose.msra.mxu0 0
        %855 = vmatprep.subr.bf16.mxu0 0
        %856 = vmatpush1.bf16.xpose.msra.mxu0 0
        %857 = vmatprep.subr.bf16.mxu0 0
        %858 = vmatpush1.bf16.xpose.msra.mxu0 0
        %859 = vmatprep.mubr.bf16.mxu0 0
        %860 = vmatmul.mubr.bf16.gmra.mrb[0].mxu0 %v822
        %v861 = vpop.f32.mrb[0].mxu0
        %v862 = vadd.f32 %v808, %v861
        %v863 = vpop.f32.mrb[0].mxu0
        %v864 = vpop.f32.mrb[0].mxu0
        %v865 = vpop.f32.mrb[0].mxu0
        %866 = vdwg.mxu0
        %v867 = vsel %vm816, -10000.0, %v862
        %v868 = vsel %vm820, %v867, -inf
        %869 = vmax.xlane.f32.xlu0 %v868
        %v870 = vpop.xlane.xlu0 %869
        %v871 = vsub.f32 %v867, %v870
        %v872 = vmul.f32 %v871, 1.442695
        %v873 = vpow.pop %v872
        %v874 = vsel %vm820, %v873, 0.0
        %875 = vadd.xlane.f32.xlu0 %v874
        %v876 = vpop.xlane.xlu0 %875
        %v877 = vrcp.pop %v876
        %v878 = vmul.f32 %v873, %v877
        %v879 = vpack.c.bf16 %v878, %v878
        %880 = vrot.lane.b32.xlu0 %v806, 64
        %v881 = vpop.permute.xlu0 %880
        %v883 = vsel %vm820, %v879, 0
        %vm885 = vcmask 1043456
        %v887 = vsel %vm885, %v881, 0
        %889 = vmatprep.subr.bf16.mxu0 0
        %890 = vmatpush1.bf16.msra.mxu0 %v887
        %891 = vmatprep.subr.bf16.mxu0 0
        %892 = vmatpush1.bf16.msra.mxu0 0
        %893 = vmatprep.subr.bf16.mxu0 0
        %894 = vmatpush1.bf16.msra.mxu0 0
        %895 = vmatprep.subr.bf16.mxu0 0
        %896 = vmatpush1.bf16.msra.mxu0 0
        %897 = vmatprep.subr.bf16.mxu0 0
        %898 = vmatpush1.bf16.msra.mxu0 0
        %899 = vmatprep.subr.bf16.mxu0 0
        %900 = vmatpush1.bf16.msra.mxu0 0
        %901 = vmatprep.subr.bf16.mxu0 0
        %902 = vmatpush1.bf16.msra.mxu0 0
        %903 = vmatprep.subr.bf16.mxu0 0
        %904 = vmatpush1.bf16.msra.mxu0 0
        %905 = vmatprep.subr.bf16.mxu0 0
        %906 = vmatpush1.bf16.msra.mxu0 0
        %907 = vmatprep.subr.bf16.mxu0 0
        %908 = vmatpush1.bf16.msra.mxu0 0
        %909 = vmatprep.subr.bf16.mxu0 0
        %910 = vmatpush1.bf16.msra.mxu0 0
        %911 = vmatprep.subr.bf16.mxu0 0
        %912 = vmatpush1.bf16.msra.mxu0 0
        %913 = vmatprep.subr.bf16.mxu0 0
        %914 = vmatpush1.bf16.msra.mxu0 0
        %915 = vmatprep.subr.bf16.mxu0 0
        %916 = vmatpush1.bf16.msra.mxu0 0
        %917 = vmatprep.subr.bf16.mxu0 0
        %918 = vmatpush1.bf16.msra.mxu0 0
        %919 = vmatprep.subr.bf16.mxu0 0
        %920 = vmatpush1.bf16.msra.mxu0 0
        %921 = vmatprep.mubr.bf16.mxu0 0
        %922 = vmatmul.mubr.bf16.gmra.mrb[0].mxu0 %v883
        %v923 = vpop.f32.mrb[0].mxu0
        %v924 = vadd.f32 0.0, %v923
        %v925 = vpop.f32.mrb[0].mxu0
        %v926 = vpop.f32.mrb[0].mxu0
        %v927 = vpop.f32.mrb[0].mxu0
        %928 = vdwg.mxu0
        %v929 = vpack.c.bf16 %v924, %v924
        %vm930 = vcmask 60416
        %931 = vst.msk [vmem:[#allocation2] sm:$0xf] %vm930, %v929
        %932 = vrot.lane.b32.xlu0 %v806, 120
        %v933 = vpop.permute.xlu0 %932
        %934 = vrot.lane.b32.xlu0 %v806, 88
        %v935 = vpop.permute.xlu0 %934
        %v937 = vsel %vm820, %v933, 0
        %v940 = vsel %vm820, %v935, 0
        %942 = vmatprep.subr.bf16.mxu0 0
        %943 = vmatpush1.bf16.xpose.msra.mxu0 %v940
        %944 = vmatprep.subr.bf16.mxu0 0
        %945 = vmatpush1.bf16.xpose.msra.mxu0 0
        %946 = vmatprep.subr.bf16.mxu0 0
        %947 = vmatpush1.bf16.xpose.msra.mxu0 0
        %948 = vmatprep.subr.bf16.mxu0 0
        %949 = vmatpush1.bf16.xpose.msra.mxu0 0
        %950 = vmatprep.subr.bf16.mxu0 0
        %951 = vmatpush1.bf16.xpose.msra.mxu0 0
        %952 = vmatprep.subr.bf16.mxu0 0
        %953 = vmatpush1.bf16.xpose.msra.mxu0 0
        %954 = vmatprep.subr.bf16.mxu0 0
        %955 = vmatpush1.bf16.xpose.msra.mxu0 0
        %956 = vmatprep.subr.bf16.mxu0 0
        %957 = vmatpush1.bf16.xpose.msra.mxu0 0
        %958 = vmatprep.subr.bf16.mxu0 0
        %959 = vmatpush1.bf16.xpose.msra.mxu0 0
        %960 = vmatprep.subr.bf16.mxu0 0
        %961 = vmatpush1.bf16.xpose.msra.mxu0 0
        %962 = vmatprep.subr.bf16.mxu0 0
        %963 = vmatpush1.bf16.xpose.msra.mxu0 0
        %964 = vmatprep.subr.bf16.mxu0 0
        %965 = vmatpush1.bf16.xpose.msra.mxu0 0
        %966 = vmatprep.subr.bf16.mxu0 0
        %967 = vmatpush1.bf16.xpose.msra.mxu0 0
        %968 = vmatprep.subr.bf16.mxu0 0
        %969 = vmatpush1.bf16.xpose.msra.mxu0 0
        %970 = vmatprep.subr.bf16.mxu0 0
        %971 = vmatpush1.bf16.xpose.msra.mxu0 0
        %972 = vmatprep.subr.bf16.mxu0 0
        %973 = vmatpush1.bf16.xpose.msra.mxu0 0
        %974 = vmatprep.mubr.bf16.mxu0 0
        %975 = vmatmul.mubr.bf16.gmra.mrb[0].mxu0 %v937
        %v976 = vpop.f32.mrb[0].mxu0
        %v977 = vadd.f32 %v808, %v976
        %v978 = vpop.f32.mrb[0].mxu0
        %v979 = vpop.f32.mrb[0].mxu0
        %v980 = vpop.f32.mrb[0].mxu0
        %981 = vdwg.mxu0
        %v982 = vsel %vm816, -10000.0, %v977
        %v983 = vsel %vm820, %v982, -inf
        %984 = vmax.xlane.f32.xlu0 %v983
        %v985 = vpop.xlane.xlu0 %984
        %v986 = vsub.f32 %v982, %v985
        %v987 = vmul.f32 %v986, 1.442695
        %v988 = vpow.pop %v987
        %v989 = vsel %vm820, %v988, 0.0
        %990 = vadd.xlane.f32.xlu0 %v989
        %v991 = vpop.xlane.xlu0 %990
        %v992 = vrcp.pop %v991
        %v993 = vmul.f32 %v988, %v992
        %v994 = vpack.c.bf16 %v993, %v993
        %995 = vrot.lane.b32.xlu0 %v806, 56
        %v996 = vpop.permute.xlu0 %995
        %v998 = vsel %vm820, %v994, 0
        %v1001 = vsel %vm885, %v996, 0
        %1003 = vmatprep.subr.bf16.mxu0 0
        %1004 = vmatpush1.bf16.msra.mxu0 %v1001
        %1005 = vmatprep.subr.bf16.mxu0 0
        %1006 = vmatpush1.bf16.msra.mxu0 0
        %1007 = vmatprep.subr.bf16.mxu0 0
        %1008 = vmatpush1.bf16.msra.mxu0 0
        %1009 = vmatprep.subr.bf16.mxu0 0
        %1010 = vmatpush1.bf16.msra.mxu0 0
        %1011 = vmatprep.subr.bf16.mxu0 0
        %1012 = vmatpush1.bf16.msra.mxu0 0
        %1013 = vmatprep.subr.bf16.mxu0 0
        %1014 = vmatpush1.bf16.msra.mxu0 0
        %1015 = vmatprep.subr.bf16.mxu0 0
        %1016 = vmatpush1.bf16.msra.mxu0 0
        %1017 = vmatprep.subr.bf16.mxu0 0
        %1018 = vmatpush1.bf16.msra.mxu0 0
        %1019 = vmatprep.subr.bf16.mxu0 0
        %1020 = vmatpush1.bf16.msra.mxu0 0
        %1021 = vmatprep.subr.bf16.mxu0 0
        %1022 = vmatpush1.bf16.msra.mxu0 0
        %1023 = vmatprep.subr.bf16.mxu0 0
        %1024 = vmatpush1.bf16.msra.mxu0 0
        %1025 = vmatprep.subr.bf16.mxu0 0
        %1026 = vmatpush1.bf16.msra.mxu0 0
        %1027 = vmatprep.subr.bf16.mxu0 0
        %1028 = vmatpush1.bf16.msra.mxu0 0
        %1029 = vmatprep.subr.bf16.mxu0 0
        %1030 = vmatpush1.bf16.msra.mxu0 0
        %1031 = vmatprep.subr.bf16.mxu0 0
        %1032 = vmatpush1.bf16.msra.mxu0 0
        %1033 = vmatprep.subr.bf16.mxu0 0
        %1034 = vmatpush1.bf16.msra.mxu0 0
        %1035 = vmatprep.mubr.bf16.mxu0 0
        %1036 = vmatmul.mubr.bf16.gmra.mrb[0].mxu0 %v998
        %v1037 = vpop.f32.mrb[0].mxu0
        %v1038 = vadd.f32 0.0, %v1037
        %v1039 = vpop.f32.mrb[0].mxu0
        %v1040 = vpop.f32.mrb[0].mxu0
        %v1041 = vpop.f32.mrb[0].mxu0
        %1042 = vdwg.mxu0
        %v1043 = vpack.c.bf16 %v1038, %v1038
        %v1045 = vunpack.c.l.b16 %v1043
        %v1046 = vpack.c.b16 %v1045, %v1045
        %1047 = vrot.lane.b32.xlu0 %v1046, 8
        %v1048 = vpop.permute.xlu0 %1047
        %vm1050 = vcmask 126016
        %1051 = vst.msk [vmem:[#allocation2] sm:$0xf] %vm1050, %v1048
        %1052 = vrot.lane.b32.xlu0 %v806, 112
        %v1053 = vpop.permute.xlu0 %1052
        %1054 = vrot.lane.b32.xlu0 %v806, 80
        %v1055 = vpop.permute.xlu0 %1054
        %v1057 = vsel %vm820, %v1053, 0
        %v1060 = vsel %vm820, %v1055, 0
        %1062 = vmatprep.subr.bf16.mxu0 0
        %1063 = vmatpush1.bf16.xpose.msra.mxu0 %v1060
        %1064 = vmatprep.subr.bf16.mxu0 0
        %1065 = vmatpush1.bf16.xpose.msra.mxu0 0
        %1066 = vmatprep.subr.bf16.mxu0 0
        %1067 = vmatpush1.bf16.xpose.msra.mxu0 0
        %1068 = vmatprep.subr.bf16.mxu0 0
        %1069 = vmatpush1.bf16.xpose.msra.mxu0 0
        %1070 = vmatprep.subr.bf16.mxu0 0
        %1071 = vmatpush1.bf16.xpose.msra.mxu0 0
        %1072 = vmatprep.subr.bf16.mxu0 0
        %1073 = vmatpush1.bf16.xpose.msra.mxu0 0
        %1074 = vmatprep.subr.bf16.mxu0 0
        %1075 = vmatpush1.bf16.xpose.msra.mxu0 0
        %1076 = vmatprep.subr.bf16.mxu0 0
        %1077 = vmatpush1.bf16.xpose.msra.mxu0 0
        %1078 = vmatprep.subr.bf16.mxu0 0
        %1079 = vmatpush1.bf16.xpose.msra.mxu0 0
        %1080 = vmatprep.subr.bf16.mxu0 0
        %1081 = vmatpush1.bf16.xpose.msra.mxu0 0
        %1082 = vmatprep.subr.bf16.mxu0 0
        %1083 = vmatpush1.bf16.xpose.msra.mxu0 0
        %1084 = vmatprep.subr.bf16.mxu0 0
        %1085 = vmatpush1.bf16.xpose.msra.mxu0 0
        %1086 = vmatprep.subr.bf16.mxu0 0
        %1087 = vmatpush1.bf16.xpose.msra.mxu0 0
        %1088 = vmatprep.subr.bf16.mxu0 0
        %1089 = vmatpush1.bf16.xpose.msra.mxu0 0
        %1090 = vmatprep.subr.bf16.mxu0 0
        %1091 = vmatpush1.bf16.xpose.msra.mxu0 0
        %1092 = vmatprep.subr.bf16.mxu0 0
        %1093 = vmatpush1.bf16.xpose.msra.mxu0 0
        %1094 = vmatprep.mubr.bf16.mxu0 0
        %1095 = vmatmul.mubr.bf16.gmra.mrb[0].mxu0 %v1057
        %v1096 = vpop.f32.mrb[0].mxu0
        %v1097 = vadd.f32 %v808, %v1096
        %v1098 = vpop.f32.mrb[0].mxu0
        %v1099 = vpop.f32.mrb[0].mxu0
        %v1100 = vpop.f32.mrb[0].mxu0
        %1101 = vdwg.mxu0
        %v1102 = vsel %vm816, -10000.0, %v1097
        %v1103 = vsel %vm820, %v1102, -inf
        %1104 = vmax.xlane.f32.xlu0 %v1103
        %v1105 = vpop.xlane.xlu0 %1104
        %v1106 = vsub.f32 %v1102, %v1105
        %v1107 = vmul.f32 %v1106, 1.442695
        %v1108 = vpow.pop %v1107
        %v1109 = vsel %vm820, %v1108, 0.0
        %1110 = vadd.xlane.f32.xlu0 %v1109
        %v1111 = vpop.xlane.xlu0 %1110
        %v1112 = vrcp.pop %v1111
        %v1113 = vmul.f32 %v1108, %v1112
        %v1114 = vpack.c.bf16 %v1113, %v1113
        %1115 = vrot.lane.b32.xlu0 %v806, 48
        %v1116 = vpop.permute.xlu0 %1115
        %v1118 = vsel %vm820, %v1114, 0
        %v1121 = vsel %vm885, %v1116, 0
        %1123 = vmatprep.subr.bf16.mxu0 0
        %1124 = vmatpush1.bf16.msra.mxu0 %v1121
        %1125 = vmatprep.subr.bf16.mxu0 0
        %1126 = vmatpush1.bf16.msra.mxu0 0
        %1127 = vmatprep.subr.bf16.mxu0 0
        %1128 = vmatpush1.bf16.msra.mxu0 0
        %1129 = vmatprep.subr.bf16.mxu0 0
        %1130 = vmatpush1.bf16.msra.mxu0 0
        %1131 = vmatprep.subr.bf16.mxu0 0
        %1132 = vmatpush1.bf16.msra.mxu0 0
        %1133 = vmatprep.subr.bf16.mxu0 0
        %1134 = vmatpush1.bf16.msra.mxu0 0
        %1135 = vmatprep.subr.bf16.mxu0 0
        %1136 = vmatpush1.bf16.msra.mxu0 0
        %1137 = vmatprep.subr.bf16.mxu0 0
        %1138 = vmatpush1.bf16.msra.mxu0 0
        %1139 = vmatprep.subr.bf16.mxu0 0
        %1140 = vmatpush1.bf16.msra.mxu0 0
        %1141 = vmatprep.subr.bf16.mxu0 0
        %1142 = vmatpush1.bf16.msra.mxu0 0
        %1143 = vmatprep.subr.bf16.mxu0 0
        %1144 = vmatpush1.bf16.msra.mxu0 0
        %1145 = vmatprep.subr.bf16.mxu0 0
        %1146 = vmatpush1.bf16.msra.mxu0 0
        %1147 = vmatprep.subr.bf16.mxu0 0
        %1148 = vmatpush1.bf16.msra.mxu0 0
        %1149 = vmatprep.subr.bf16.mxu0 0
        %1150 = vmatpush1.bf16.msra.mxu0 0
        %1151 = vmatprep.subr.bf16.mxu0 0
        %1152 = vmatpush1.bf16.msra.mxu0 0
        %1153 = vmatprep.subr.bf16.mxu0 0
        %1154 = vmatpush1.bf16.msra.mxu0 0
        %1155 = vmatprep.mubr.bf16.mxu0 0
        %1156 = vmatmul.mubr.bf16.gmra.mrb[0].mxu0 %v1118
        %v1157 = vpop.f32.mrb[0].mxu0
        %v1158 = vadd.f32 0.0, %v1157
        %v1159 = vpop.f32.mrb[0].mxu0
        %v1160 = vpop.f32.mrb[0].mxu0
        %v1161 = vpop.f32.mrb[0].mxu0
        %1162 = vdwg.mxu0
        %v1163 = vpack.c.bf16 %v1158, %v1158
        %v1165 = vunpack.c.l.b16 %v1163
        %v1166 = vpack.c.b16 %v1165, %v1165
        %1167 = vrot.lane.b32.xlu0 %v1166, 16
        %v1168 = vpop.permute.xlu0 %1167
        %vm1170 = vcmask 191616
        %1171 = vst.msk [vmem:[#allocation2] sm:$0xf] %vm1170, %v1168
        %1172 = vrot.lane.b32.xlu0 %v806, 104
        %v1173 = vpop.permute.xlu0 %1172
        %1174 = vrot.lane.b32.xlu0 %v806, 72
        %v1175 = vpop.permute.xlu0 %1174
        %v1177 = vsel %vm820, %v1173, 0
        %v1180 = vsel %vm820, %v1175, 0
        %1182 = vmatprep.subr.bf16.mxu0 0
        %1183 = vmatpush1.bf16.xpose.msra.mxu0 %v1180
        %1184 = vmatprep.subr.bf16.mxu0 0
        %1185 = vmatpush1.bf16.xpose.msra.mxu0 0
        %1186 = vmatprep.subr.bf16.mxu0 0
        %1187 = vmatpush1.bf16.xpose.msra.mxu0 0
        %1188 = vmatprep.subr.bf16.mxu0 0
        %1189 = vmatpush1.bf16.xpose.msra.mxu0 0
        %1190 = vmatprep.subr.bf16.mxu0 0
        %1191 = vmatpush1.bf16.xpose.msra.mxu0 0
        %1192 = vmatprep.subr.bf16.mxu0 0
        %1193 = vmatpush1.bf16.xpose.msra.mxu0 0
        %1194 = vmatprep.subr.bf16.mxu0 0
        %1195 = vmatpush1.bf16.xpose.msra.mxu0 0
        %1196 = vmatprep.subr.bf16.mxu0 0
        %1197 = vmatpush1.bf16.xpose.msra.mxu0 0
        %1198 = vmatprep.subr.bf16.mxu0 0
        %1199 = vmatpush1.bf16.xpose.msra.mxu0 0
        %1200 = vmatprep.subr.bf16.mxu0 0
        %1201 = vmatpush1.bf16.xpose.msra.mxu0 0
        %1202 = vmatprep.subr.bf16.mxu0 0
        %1203 = vmatpush1.bf16.xpose.msra.mxu0 0
        %1204 = vmatprep.subr.bf16.mxu0 0
        %1205 = vmatpush1.bf16.xpose.msra.mxu0 0
        %1206 = vmatprep.subr.bf16.mxu0 0
        %1207 = vmatpush1.bf16.xpose.msra.mxu0 0
        %1208 = vmatprep.subr.bf16.mxu0 0
        %1209 = vmatpush1.bf16.xpose.msra.mxu0 0
        %1210 = vmatprep.subr.bf16.mxu0 0
        %1211 = vmatpush1.bf16.xpose.msra.mxu0 0
        %1212 = vmatprep.subr.bf16.mxu0 0
        %1213 = vmatpush1.bf16.xpose.msra.mxu0 0
        %1214 = vmatprep.mubr.bf16.mxu0 0
        %1215 = vmatmul.mubr.bf16.gmra.mrb[0].mxu0 %v1177
        %v1216 = vpop.f32.mrb[0].mxu0
        %v1217 = vadd.f32 %v808, %v1216
        %v1218 = vpop.f32.mrb[0].mxu0
        %v1219 = vpop.f32.mrb[0].mxu0
        %v1220 = vpop.f32.mrb[0].mxu0
        %1221 = vdwg.mxu0
        %v1222 = vsel %vm816, -10000.0, %v1217
        %v1223 = vsel %vm820, %v1222, -inf
        %1224 = vmax.xlane.f32.xlu0 %v1223
        %v1225 = vpop.xlane.xlu0 %1224
        %v1226 = vsub.f32 %v1222, %v1225
        %v1227 = vmul.f32 %v1226, 1.442695
        %v1228 = vpow.pop %v1227
        %v1229 = vsel %vm820, %v1228, 0.0
        %1230 = vadd.xlane.f32.xlu0 %v1229
        %v1231 = vpop.xlane.xlu0 %1230
        %v1232 = vrcp.pop %v1231
        %v1233 = vmul.f32 %v1228, %v1232
        %v1234 = vpack.c.bf16 %v1233, %v1233
        %1235 = vrot.lane.b32.xlu0 %v806, 40
        %v1236 = vpop.permute.xlu0 %1235
        %v1238 = vsel %vm820, %v1234, 0
        %v1241 = vsel %vm885, %v1236, 0
        %1243 = vmatprep.subr.bf16.mxu0 0
        %1244 = vmatpush1.bf16.msra.mxu0 %v1241
        %1245 = vmatprep.subr.bf16.mxu0 0
        %1246 = vmatpush1.bf16.msra.mxu0 0
        %1247 = vmatprep.subr.bf16.mxu0 0
        %1248 = vmatpush1.bf16.msra.mxu0 0
        %1249 = vmatprep.subr.bf16.mxu0 0
        %1250 = vmatpush1.bf16.msra.mxu0 0
        %1251 = vmatprep.subr.bf16.mxu0 0
        %1252 = vmatpush1.bf16.msra.mxu0 0
        %1253 = vmatprep.subr.bf16.mxu0 0
        %1254 = vmatpush1.bf16.msra.mxu0 0
        %1255 = vmatprep.subr.bf16.mxu0 0
        %1256 = vmatpush1.bf16.msra.mxu0 0
        %1257 = vmatprep.subr.bf16.mxu0 0
        %1258 = vmatpush1.bf16.msra.mxu0 0
        %1259 = vmatprep.subr.bf16.mxu0 0
        %1260 = vmatpush1.bf16.msra.mxu0 0
        %1261 = vmatprep.subr.bf16.mxu0 0
        %1262 = vmatpush1.bf16.msra.mxu0 0
        %1263 = vmatprep.subr.bf16.mxu0 0
        %1264 = vmatpush1.bf16.msra.mxu0 0
        %1265 = vmatprep.subr.bf16.mxu0 0
        %1266 = vmatpush1.bf16.msra.mxu0 0
        %1267 = vmatprep.subr.bf16.mxu0 0
        %1268 = vmatpush1.bf16.msra.mxu0 0
        %1269 = vmatprep.subr.bf16.mxu0 0
        %1270 = vmatpush1.bf16.msra.mxu0 0
        %1271 = vmatprep.subr.bf16.mxu0 0
        %1272 = vmatpush1.bf16.msra.mxu0 0
        %1273 = vmatprep.subr.bf16.mxu0 0
        %1274 = vmatpush1.bf16.msra.mxu0 0
        %1275 = vmatprep.mubr.bf16.mxu0 0
        %1276 = vmatmul.mubr.bf16.gmra.mrb[0].mxu0 %v1238
        %v1277 = vpop.f32.mrb[0].mxu0
        %v1278 = vadd.f32 0.0, %v1277
        %v1279 = vpop.f32.mrb[0].mxu0
        %v1280 = vpop.f32.mrb[0].mxu0
        %v1281 = vpop.f32.mrb[0].mxu0
        %1282 = vdwg.mxu0
        %v1283 = vpack.c.bf16 %v1278, %v1278
        %v1285 = vunpack.c.l.b16 %v1283
        %v1286 = vpack.c.b16 %v1285, %v1285
        %1287 = vrot.lane.b32.xlu0 %v1286, 24
        %v1288 = vpop.permute.xlu0 %1287
        %vm1290 = vcmask 257216
        %1291 = vst.msk [vmem:[#allocation2] sm:$0xf] %vm1290, %v1288
        %v1292 = vld [vmem:[#allocation2] sm:$0xf]
        %v1293 = vld [vmem:[#allocation12] sm:$0xf]
        %v1294 = vld [vmem:[#allocation12 + $0x4] sm:$0xf]
        %v1295 = vld [vmem:[#allocation12 + $0x8] sm:$0xf]
        %v1296 = vld [vmem:[#allocation12 + $0xc] sm:$0xf]
        %v1297 = vld [vmem:[#allocation14] sm:$0x1]
        %v1299 = vlaneseq
        %v1300 = vshrl.u32 %v1299, 7
        %v1301 = vsub.s32 0, %v1300
        %v1302 = vrot.slane %v1297, %v1301
        %v1308 = vunpack.c.l.b16 %v1293
        %v1309 = vunpack.c.l.b16 %v1294
        %v1310 = vunpack.c.l.b16 %v1295
        %v1311 = vunpack.c.l.b16 %v1296
        %v1312 = vpack.c.b16 %v1309, %v1308
        %v1313 = vpack.c.b16 %v1311, %v1310
        %v1317 = vsel %vm762, %v1292, 0
        %1319 = vmatprep.subr.bf16.mxu0 0
        %1320 = vmatpush1.bf16.msra.mxu0 %v1312
        %1321 = vmatprep.subr.bf16.mxu0 0
        %1322 = vmatpush1.bf16.msra.mxu0 %v1313
        %1323 = vmatprep.subr.bf16.mxu0 0
        %1324 = vmatpush1.bf16.msra.mxu0 0
        %1325 = vmatprep.subr.bf16.mxu0 0
        %1326 = vmatpush1.bf16.msra.mxu0 0
        %1327 = vmatprep.subr.bf16.mxu0 0
        %1328 = vmatpush1.bf16.msra.mxu0 0
        %1329 = vmatprep.subr.bf16.mxu0 0
        %1330 = vmatpush1.bf16.msra.mxu0 0
        %1331 = vmatprep.subr.bf16.mxu0 0
        %1332 = vmatpush1.bf16.msra.mxu0 0
        %1333 = vmatprep.subr.bf16.mxu0 0
        %1334 = vmatpush1.bf16.msra.mxu0 0
        %1335 = vmatprep.subr.bf16.mxu0 0
        %1336 = vmatpush1.bf16.msra.mxu0 0
        %1337 = vmatprep.subr.bf16.mxu0 0
        %1338 = vmatpush1.bf16.msra.mxu0 0
        %1339 = vmatprep.subr.bf16.mxu0 0
        %1340 = vmatpush1.bf16.msra.mxu0 0
        %1341 = vmatprep.subr.bf16.mxu0 0
        %1342 = vmatpush1.bf16.msra.mxu0 0
        %1343 = vmatprep.subr.bf16.mxu0 0
        %1344 = vmatpush1.bf16.msra.mxu0 0
        %1345 = vmatprep.subr.bf16.mxu0 0
        %1346 = vmatpush1.bf16.msra.mxu0 0
        %1347 = vmatprep.subr.bf16.mxu0 0
        %1348 = vmatpush1.bf16.msra.mxu0 0
        %1349 = vmatprep.subr.bf16.mxu0 0
        %1350 = vmatpush1.bf16.msra.mxu0 0
        %1351 = vmatprep.mubr.bf16.mxu0 0
        %1352 = vmatmul.mubr.bf16.gmra.mrb[0].mxu0 %v1317
        %v1353 = vpop.f32.mrb[0].mxu0
        %v1354 = vadd.f32 %v1302, %v1353
        %v1355 = vpop.f32.mrb[0].mxu0
        %v1356 = vpop.f32.mrb[0].mxu0
        %v1357 = vpop.f32.mrb[0].mxu0
        %1358 = vdwg.mxu0
        %v1359 = vadd.f32 %v737, %v1354
        %v1360 = vsel %vm762, %v1359, 0.0
        %1361 = vadd.xlane.f32.xlu0 %v1360
        %v1362 = vpop.xlane.xlu0 %1361
        %v1363 = vrcp.pop 32.0
        %v1364 = vmul.f32 %v1362, %v1363
        %v1365 = vsub.f32 %v1359, %v1364
        %v1366 = vmul.f32 %v1365, %v1365
        %v1367 = vsel %vm762, %v1366, 0.0
        %1368 = vadd.xlane.f32.xlu0 %v1367
        %v1369 = vpop.xlane.xlu0 %1368
        %v1370 = vmul.f32 %v1369, %v1363
        %v1371 = vadd.f32 %v1370, 1e-05
        %v1372 = vrsqrt.pop %v1371
        %v1373 = vmul.f32 %v1365, %v1372
        %v1374 = vld [vmem:[#allocation15] sm:$0x1]
        %v1376 = vlaneseq
        %v1377 = vshrl.u32 %v1376, 7
        %v1378 = vsub.s32 0, %v1377
        %v1379 = vrot.slane %v1374, %v1378
        %v1381 = vmul.f32 %v1373, %v1379
        %v1382 = vld [vmem:[#allocation17] sm:$0x1]
        %v1384 = vlaneseq
        %v1385 = vshrl.u32 %v1384, 7
        %v1386 = vsub.s32 0, %v1385
        %v1387 = vrot.slane %v1382, %v1386
        %v1389 = vadd.f32 %v1381, %v1387
        %v1390 = vpack.c.bf16 %v1389, %v1389
        %v1391 = vld [vmem:[#allocation18] sm:$0xf]
        %v1392 = vld [vmem:[#allocation18 + $0x4] sm:$0xf]
        %v1393 = vld [vmem:[#allocation18 + $0x8] sm:$0xf]
        %v1394 = vld [vmem:[#allocation18 + $0xc] sm:$0xf]
        %v1395 = vld [vmem:[#allocation20] sm:$0x1]
        %v1397 = vlaneseq
        %v1398 = vshrl.u32 %v1397, 7
        %v1399 = vsub.s32 0, %v1398
        %v1400 = vrot.slane %v1395, %v1399
        %v1406 = vunpack.c.l.b16 %v1391
        %v1407 = vunpack.c.l.b16 %v1392
        %v1408 = vunpack.c.l.b16 %v1393
        %v1409 = vunpack.c.l.b16 %v1394
        %v1410 = vpack.c.b16 %v1407, %v1406
        %v1411 = vpack.c.b16 %v1409, %v1408
        %v1415 = vsel %vm762, %v1390, 0
        %1417 = vmatprep.subr.bf16.mxu0 0
        %1418 = vmatpush1.bf16.msra.mxu0 %v1410
        %1419 = vmatprep.subr.bf16.mxu0 0
        %1420 = vmatpush1.bf16.msra.mxu0 %v1411
        %1421 = vmatprep.subr.bf16.mxu0 0
        %1422 = vmatpush1.bf16.msra.mxu0 0
        %1423 = vmatprep.subr.bf16.mxu0 0
        %1424 = vmatpush1.bf16.msra.mxu0 0
        %1425 = vmatprep.subr.bf16.mxu0 0
        %1426 = vmatpush1.bf16.msra.mxu0 0
        %1427 = vmatprep.subr.bf16.mxu0 0
        %1428 = vmatpush1.bf16.msra.mxu0 0
        %1429 = vmatprep.subr.bf16.mxu0 0
        %1430 = vmatpush1.bf16.msra.mxu0 0
        %1431 = vmatprep.subr.bf16.mxu0 0
        %1432 = vmatpush1.bf16.msra.mxu0 0
        %1433 = vmatprep.subr.bf16.mxu0 0
        %1434 = vmatpush1.bf16.msra.mxu0 0
        %1435 = vmatprep.subr.bf16.mxu0 0
        %1436 = vmatpush1.bf16.msra.mxu0 0
        %1437 = vmatprep.subr.bf16.mxu0 0
        %1438 = vmatpush1.bf16.msra.mxu0 0
        %1439 = vmatprep.subr.bf16.mxu0 0
        %1440 = vmatpush1.bf16.msra.mxu0 0
        %1441 = vmatprep.subr.bf16.mxu0 0
        %1442 = vmatpush1.bf16.msra.mxu0 0
        %1443 = vmatprep.subr.bf16.mxu0 0
        %1444 = vmatpush1.bf16.msra.mxu0 0
        %1445 = vmatprep.subr.bf16.mxu0 0
        %1446 = vmatpush1.bf16.msra.mxu0 0
        %1447 = vmatprep.subr.bf16.mxu0 0
        %1448 = vmatpush1.bf16.msra.mxu0 0
        %1449 = vmatprep.mubr.bf16.mxu0 0
        %1450 = vmatmul.mubr.bf16.gmra.mrb[0].mxu0 %v1415
        %v1451 = vpop.f32.mrb[0].mxu0
        %v1452 = vadd.f32 %v1400, %v1451
        %v1453 = vpop.f32.mrb[0].mxu0
        %v1454 = vpop.f32.mrb[0].mxu0
        %v1455 = vpop.f32.mrb[0].mxu0
        %1456 = vdwg.mxu0
        %v1457 = vmax.f32 %v1452, 0.0
        %v1458 = vpack.c.bf16 %v1457, %v1457
        %v1459 = vld [vmem:[#allocation21] sm:$0xf]
        %v1460 = vld [vmem:[#allocation21 + $0x4] sm:$0xf]
        %v1461 = vld [vmem:[#allocation21 + $0x8] sm:$0xf]
        %v1462 = vld [vmem:[#allocation21 + $0xc] sm:$0xf]
        %v1463 = vld [vmem:[#allocation21 + $0x10] sm:$0xf]
        %v1464 = vld [vmem:[#allocation21 + $0x14] sm:$0xf]
        %v1465 = vld [vmem:[#allocation21 + $0x18] sm:$0xf]
        %v1466 = vld [vmem:[#allocation21 + $0x1c] sm:$0xf]
        %v1467 = vld [vmem:[#allocation23] sm:$0x1]
        %v1469 = vlaneseq
        %v1470 = vshrl.u32 %v1469, 7
        %v1471 = vsub.s32 0, %v1470
        %v1472 = vrot.slane %v1467, %v1471
        %v1482 = vunpack.c.l.b16 %v1459
        %v1483 = vunpack.c.l.b16 %v1460
        %v1484 = vunpack.c.l.b16 %v1461
        %v1485 = vunpack.c.l.b16 %v1462
        %v1486 = vunpack.c.l.b16 %v1463
        %v1487 = vunpack.c.l.b16 %v1464
        %v1488 = vunpack.c.l.b16 %v1465
        %v1489 = vunpack.c.l.b16 %v1466
        %v1490 = vpack.c.b16 %v1483, %v1482
        %v1491 = vpack.c.b16 %v1485, %v1484
        %v1492 = vpack.c.b16 %v1487, %v1486
        %v1493 = vpack.c.b16 %v1489, %v1488
        %vm1498 = vcmask 523264
        %v1500 = vsel %vm1498, %v1458, 0
        %1502 = vmatprep.subr.bf16.mxu0 0
        %1503 = vmatpush1.bf16.msra.mxu0 %v1490
        %1504 = vmatprep.subr.bf16.mxu0 0
        %1505 = vmatpush1.bf16.msra.mxu0 %v1491
        %1506 = vmatprep.subr.bf16.mxu0 0
        %1507 = vmatpush1.bf16.msra.mxu0 %v1492
        %1508 = vmatprep.subr.bf16.mxu0 0
        %1509 = vmatpush1.bf16.msra.mxu0 %v1493
        %1510 = vmatprep.subr.bf16.mxu0 0
        %1511 = vmatpush1.bf16.msra.mxu0 0
        %1512 = vmatprep.subr.bf16.mxu0 0
        %1513 = vmatpush1.bf16.msra.mxu0 0
        %1514 = vmatprep.subr.bf16.mxu0 0
        %1515 = vmatpush1.bf16.msra.mxu0 0
        %1516 = vmatprep.subr.bf16.mxu0 0
        %1517 = vmatpush1.bf16.msra.mxu0 0
        %1518 = vmatprep.subr.bf16.mxu0 0
        %1519 = vmatpush1.bf16.msra.mxu0 0
        %1520 = vmatprep.subr.bf16.mxu0 0
        %1521 = vmatpush1.bf16.msra.mxu0 0
        %1522 = vmatprep.subr.bf16.mxu0 0
        %1523 = vmatpush1.bf16.msra.mxu0 0
        %1524 = vmatprep.subr.bf16.mxu0 0
        %1525 = vmatpush1.bf16.msra.mxu0 0
        %1526 = vmatprep.subr.bf16.mxu0 0
        %1527 = vmatpush1.bf16.msra.mxu0 0
        %1528 = vmatprep.subr.bf16.mxu0 0
        %1529 = vmatpush1.bf16.msra.mxu0 0
        %1530 = vmatprep.subr.bf16.mxu0 0
        %1531 = vmatpush1.bf16.msra.mxu0 0
        %1532 = vmatprep.subr.bf16.mxu0 0
        %1533 = vmatpush1.bf16.msra.mxu0 0
        %1534 = vmatprep.mubr.bf16.mxu0 0
        %1535 = vmatmul.mubr.bf16.gmra.mrb[0].mxu0 %v1500
        %v1536 = vpop.f32.mrb[0].mxu0
        %v1537 = vadd.f32 %v1472, %v1536
        %v1538 = vpop.f32.mrb[0].mxu0
        %v1539 = vpop.f32.mrb[0].mxu0
        %v1540 = vpop.f32.mrb[0].mxu0
        %1541 = vdwg.mxu0
        %v1542 = vadd.f32 %v1389, %v1537
        %v1543 = vsel %vm762, %v1542, 0.0
        %1544 = vadd.xlane.f32.xlu0 %v1543
        %v1545 = vpop.xlane.xlu0 %1544
        %v1546 = vmul.f32 %v1545, %v1363
        %v1547 = vsub.f32 %v1542, %v1546
        %v1548 = vmul.f32 %v1547, %v1547
        %v1549 = vsel %vm762, %v1548, 0.0
        %1550 = vadd.xlane.f32.xlu0 %v1549
        %v1551 = vpop.xlane.xlu0 %1550
        %v1552 = vmul.f32 %v1551, %v1363
        %v1553 = vadd.f32 %v1552, 1e-05
        %v1554 = vrsqrt.pop %v1553
        %v1555 = vmul.f32 %v1547, %v1554
        %v1556 = vld [vmem:[#allocation24] sm:$0x1]
        %v1558 = vlaneseq
        %v1559 = vshrl.u32 %v1558, 7
        %v1560 = vsub.s32 0, %v1559
        %v1561 = vrot.slane %v1556, %v1560
        %v1563 = vmul.f32 %v1555, %v1561
        %v1564 = vld [vmem:[#allocation26] sm:$0x1]
        %v1566 = vlaneseq
        %v1567 = vshrl.u32 %v1566, 7
        %v1568 = vsub.s32 0, %v1567
        %v1569 = vrot.slane %v1564, %v1568
        %v1571 = vadd.f32 %v1563, %v1569
        %1572 = vst.msk [vmem:[%s735] sm:$0xff] %vm762, %v1571
        %s1573 = sand.u32 %s379, 1
        %s1574 = scalar_lea.sflag [#allocation5], %s1573
        %s1575 = sand.u32 %s379, 1
        %s1576 = smul.addr %s1575, 8
        %s1577 = scalar_lea.vmem [#allocation27], %s1576
        // Predicated region
        $region141: #{tpu_custom_call.1} parent=79 // pred_check
          %p1578 = pneg %p389
        $region142: #{tpu_custom_call.1} parent=79 // pred_check_branch
          %1580 = sbr.rel (%p1578) target = $region144
        $region143: #{tpu_custom_call.1} parent=79 // pred_region
          %s1582 = ssub.s32 128, 128
          %1583 = vsyncadd %s1574, %s1582
          %s1584 = smul.addr %s41, 128
          %s1585 = scalar_lea.hbm %s15, %s1584
          %s1587 = sshll.u32 %s1577, 4
          %s1588 = int_to_ptr.vmem [resolvable:$true] %s1587
          %1590 = dma.vmem_to_hbm [thread:$0]  %s1588, 128, %s1585, %s1574
        $region144: #{tpu_custom_call.1} parent=79 // pred_fallthru
          _
      $region80: #{tpu_custom_call.1} parent=5 // pred_fallthru
        _
      %p1591 = scmp.le.s32.totalorder 2, %s36
      // Predicated region
      $region145: #{tpu_custom_call.1} parent=5 // pred_check
        %p1592 = pneg %p1591
      $region146: #{tpu_custom_call.1} parent=5 // pred_check_branch
        %1594 = sbr.rel (%p1592) target = $region148
      $region147: #{tpu_custom_call.1} parent=5 // pred_region
        %s1595 = ssub.s32 %s36, 2
        // Predicated region
        $region149: #{tpu_custom_call.1} parent=147 // pred_check
          %p1596 = pneg %p395
        $region150: #{tpu_custom_call.1} parent=147 // pred_check_branch
          %1598 = sbr.rel (%p1596) target = $region152
        $region151: #{tpu_custom_call.1} parent=147 // pred_region
          %s1599 = sand.u32 %s380, 1
          %s1600 = scalar_lea.sflag [#allocation5], %s1599
          %s1601 = sand.u32 %s380, 1
          %s1602 = smul.addr %s1601, 8
          %s1603 = scalar_lea.vmem [#allocation27], %s1602
          %1604 = dma.done %s1600, 128
        $region152: #{tpu_custom_call.1} parent=147 // pred_fallthru
          _
      $region148: #{tpu_custom_call.1} parent=5 // pred_fallthru
        _
    $region6: #{tpu_custom_call.1} parent=1 // loop_footer
      %s40 = sadd.s32 1, %s36
    $region7: #{tpu_custom_call.1} parent=1 // loop_footer_branch
      %35 = sbr.rel target = $region3
    $region8: #{tpu_custom_call.1} parent=1 // loop_exit
      _
    %1605 = vsyncpa [#allocation4], 1
    %s1606 = scalar_lea.sflag [#allocation4], 1
    %1607 = vsyncpa %s1606, 1
    %1608 = vsyncpa [#allocation7], 1
    %s1609 = scalar_lea.sflag [#allocation7], 1
    %1610 = vsyncpa %s1609, 1
    %1611 = vsyncpa [#allocation10], 1
    %1612 = vsyncpa [#allocation13], 1
    %1613 = vsyncpa [#allocation16], 1
    %1614 = vsyncpa [#allocation19], 1
    %1615 = vsyncpa [#allocation22], 1
    %1616 = vsyncpa [#allocation25], 1
    %1617 = vsyncpa [#allocation5], 1
    %s1618 = scalar_lea.sflag [#allocation5], 1
    %1619 = vsyncpa %s1618, 1

// kernel: tpu_custom_call.1
$region0: #{tpu_custom_call.1}
  #allocation0 [shape = 'u32[]', space=smem, size = 0x4, offset = 0x4, fixed_abs, tag = 'smem constant byte address 0x4 - core index']
  #allocation1 [shape = 'u32[144,128]{1,0:T(1,128)}', space=vmem, size = 0x12000, scoped, tag = 'internal scratch']
  #allocation2 [shape = 'bf16[8,32]{1,0:T(8,128)(2,1)}', space=vmem, size = 0x800, scoped, tag = 'scratch operand']
  %s0 = inlined_call_operand.hbm [shape: f32[2,8,32], index: 0, kind: input, shape index: {}]
  %s1 = inlined_call_operand.hbm [shape: bf16[2,8,8], index: 1, kind: input, shape index: {}]
  %s2 = inlined_call_operand.hbm [shape: f32[2,1,8], index: 2, kind: input, shape index: {}]
  %s3 = inlined_call_operand.hbm [shape: bf16[32,96], index: 3, kind: input, shape index: {}]
  %s4 = inlined_call_operand.hbm [shape: f32[1,96], index: 4, kind: input, shape index: {}]
  %s5 = inlined_call_operand.hbm [shape: bf16[32,32], index: 5, kind: input, shape index: {}]
  %s6 = inlined_call_operand.hbm [shape: f32[1,32], index: 6, kind: input, shape index: {}]
  %s7 = inlined_call_operand.hbm [shape: f32[1,32], index: 7, kind: input, shape index: {}]
  %s8 = inlined_call_operand.hbm [shape: f32[1,32], index: 8, kind: input, shape index: {}]
  %s9 = inlined_call_operand.hbm [shape: bf16[32,64], index: 9, kind: input, shape index: {}]
  %s10 = inlined_call_operand.hbm [shape: f32[1,64], index: 10, kind: input, shape index: {}]
  %s11 = inlined_call_operand.hbm [shape: bf16[64,32], index: 11, kind: input, shape index: {}]
  %s12 = inlined_call_operand.hbm [shape: f32[1,32], index: 12, kind: input, shape index: {}]
  %s13 = inlined_call_operand.hbm [shape: f32[1,32], index: 13, kind: input, shape index: {}]
  %s14 = inlined_call_operand.hbm [shape: f32[1,32], index: 14, kind: input, shape index: {}]
  %s15 = inlined_call_operand.hbm [shape: f32[2,8,32], index: 15, kind: output, shape index: {}]
  %s16 = sld [smem:[#allocation0]]
  $region153: #{tpu_custom_call.1} parent=0
    _
  %s18 = ssub.s32 1, %s16
  %s19 = scalar_select 0, %s18, %s16
  $region1: #{tpu_custom_call.1} parent=0
    #allocation3 [shape = 'u8[8192]{0}', space=vmem, size = 0x2000, scoped, tag = 'input window, operand 0']
    #allocation4 [shape = 's32[2]{0}', space=sflag, size = 0x8, scoped, tag = 'scoped memory for tpu_custom_call.1']
    #allocation5 [shape = 's32[2]{0}', space=sflag, size = 0x8, scoped, tag = 'scoped memory for tpu_custom_call.1']
    #allocation6 [shape = 'u8[4096]{0}', space=vmem, size = 0x1000, scoped, tag = 'input window, operand 1']
    #allocation7 [shape = 's32[2]{0}', space=sflag, size = 0x8, scoped, tag = 'scoped memory for tpu_custom_call.1']
    #allocation8 [shape = 'u8[1024]{0}', space=vmem, size = 0x400, scoped, tag = 'input window, operand 2']
    #allocation9 [shape = 'u8[8192]{0}', space=vmem, size = 0x2000, scoped, tag = 'input window, operand 3, single buffered']
    #allocation10 [shape = 's32[1]{0}', space=sflag, size = 0x4, scoped, tag = 'scoped memory for tpu_custom_call.1']
    #allocation11 [shape = 'u8[512]{0}', space=vmem, size = 0x400, scoped, tag = 'input window, operand 4, single buffered']
    #allocation12 [shape = 'u8[8192]{0}', space=vmem, size = 0x2000, scoped, tag = 'input window, operand 5, single buffered']
    #allocation13 [shape = 's32[1]{0}', space=sflag, size = 0x4, scoped, tag = 'scoped memory for tpu_custom_call.1']
    #allocation14 [shape = 'u8[512]{0}', space=vmem, size = 0x400, scoped, tag = 'input window, operand 6, single buffered']
    #allocation15 [shape = 'u8[512]{0}', space=vmem, size = 0x400, scoped, tag = 'input window, operand 7, single buffered']
    #allocation16 [shape = 's32[1]{0}', space=sflag, size = 0x4, scoped, tag = 'scoped memory for tpu_custom_call.1']
    #allocation17 [shape = 'u8[512]{0}', space=vmem, size = 0x400, scoped, tag = 'input window, operand 8, single buffered']
    #allocation18 [shape = 'u8[8192]{0}', space=vmem, size = 0x2000, scoped, tag = 'input window, operand 9, single buffered']
    #allocation19 [shape = 's32[1]{0}', space=sflag, size = 0x4, scoped, tag = 'scoped memory for tpu_custom_call.1']
    #allocation20 [shape = 'u8[512]{0}', space=vmem, size = 0x400, scoped, tag = 'input window, operand 10, single buffered']
    #allocation21 [shape = 'u8[16384]{0}', space=vmem, size = 0x4000, scoped, tag = 'input window, operand 11, single buffered']
    #allocation22 [shape = 's32[1]{0}', space=sflag, size = 0x4, scoped, tag = 'scoped memory for tpu_custom_call.1']
    #allocation23 [shape = 'u8[512]{0}', space=vmem, size = 0x400, scoped, tag = 'input window, operand 12, single buffered']
    #allocation24 [shape = 'u8[512]{0}', space=vmem, size = 0x400, scoped, tag = 'input window, operand 13, single buffered']
    #allocation25 [shape = 's32[1]{0}', space=sflag, size = 0x4, scoped, tag = 'scoped memory for tpu_custom_call.1']
    #allocation26 [shape = 'u8[512]{0}', space=vmem, size = 0x400, scoped, tag = 'input window, operand 14, single buffered']
    #allocation27 [shape = 'u8[8192]{0}', space=vmem, size = 0x2000, scoped, tag = 'output window, operand 0']
    %20 = vsyncpa [#allocation4], 0
    %s21 = scalar_lea.sflag [#allocation4], 1
    %22 = vsyncpa %s21, 0
    %23 = vsyncpa [#allocation7], 0
    %s24 = scalar_lea.sflag [#allocation7], 1
    %25 = vsyncpa %s24, 0
    %26 = vsyncpa [#allocation10], 0
    %27 = vsyncpa [#allocation13], 0
    %28 = vsyncpa [#allocation16], 0
    %29 = vsyncpa [#allocation19], 0
    %30 = vsyncpa [#allocation22], 0
    %31 = vsyncpa [#allocation25], 0
    %32 = vsyncpa [#allocation5], 0
    %s33 = scalar_lea.sflag [#allocation5], 1
    %34 = vsyncpa %s33, 0
    loop: start=0, step=1, limit=4
    $region2: #{tpu_custom_call.1} parent=1 // loop_pre_header
      _
    $region3: #{tpu_custom_call.1} parent=1 // loop_header
      %s36 = sphi 0, %s40
      %p37 = scmp.ge.s32.totalorder %s36, 4
      %s46 = sphi 0, %s48
      %s49 = sphi 0, %s46
      %s50 = sphi 0, %s49
      %s66 = sphi 0, %s50
      %s72 = sphi 0, %s74
      %s75 = sphi 0, %s72
      %s76 = sphi 0, %s75
      %s92 = sphi 0, %s76
      %s98 = sphi 0, %s100
      %s101 = sphi 0, %s98
      %s102 = sphi 0, %s101
      %s118 = sphi 0, %s102
      %s122 = sphi 0, %s122
      %s124 = sphi 0, %s122
      %s125 = sphi 0, %s124
      %s139 = sphi 0, %s125
      %s143 = sphi 0, %s143
      %s145 = sphi 0, %s143
      %s146 = sphi 0, %s145
      %s160 = sphi 0, %s146
      %s164 = sphi 0, %s164
      %s166 = sphi 0, %s164
      %s167 = sphi 0, %s166
      %s181 = sphi 0, %s167
      %s185 = sphi 0, %s185
      %s187 = sphi 0, %s185
      %s188 = sphi 0, %s187
      %s202 = sphi 0, %s188
      %s206 = sphi 0, %s206
      %s208 = sphi 0, %s206
      %s209 = sphi 0, %s208
      %s223 = sphi 0, %s209
      %s227 = sphi 0, %s227
      %s229 = sphi 0, %s227
      %s230 = sphi 0, %s229
      %s244 = sphi 0, %s230
      %s248 = sphi 0, %s248
      %s250 = sphi 0, %s248
      %s251 = sphi 0, %s250
      %s265 = sphi 0, %s251
      %s269 = sphi 0, %s269
      %s271 = sphi 0, %s269
      %s272 = sphi 0, %s271
      %s286 = sphi 0, %s272
      %s290 = sphi 0, %s290
      %s292 = sphi 0, %s290
      %s293 = sphi 0, %s292
      %s307 = sphi 0, %s293
      %s311 = sphi 0, %s311
      %s313 = sphi 0, %s311
      %s314 = sphi 0, %s313
      %s328 = sphi 0, %s314
      %s332 = sphi 0, %s332
      %s334 = sphi 0, %s332
      %s335 = sphi 0, %s334
      %s349 = sphi 0, %s335
      %s353 = sphi 0, %s353
      %s355 = sphi 0, %s353
      %s356 = sphi 0, %s355
      %s370 = sphi 0, %s356
      %s376 = sphi 0, %s378
      %s379 = sphi 0, %s376
      %s380 = sphi 0, %s379
      %s396 = sphi 0, %s380
    $region4: #{tpu_custom_call.1} parent=1 // loop_header_branch
      %39 = sbr.rel (%p37) target = $region8
    $region5: #{tpu_custom_call.1} parent=1 // loop_body
      %s41 = ssub.s32 %s36, 1
      %s42 = ssub.s32 %s36, 2
      %s43 = sadd.s32 %s36, 1
      %s44 = ssub.s32 %s36, %s43
      %p45 = scmp.eq.s32.totalorder %s44, 0
      %s47 = sadd.s32 %s46, 1
      %s48 = scalar_select %p45, %s46, %s47
      %p51 = pneg %p45
      %p52 = scmp.eq.s32.totalorder %s36, 1
      %p53 = por %p51, %p52
      %p54 = scmp.ne.s32.totalorder %s46, %s49
      %p55 = scmp.eq.s32.totalorder %s36, 0
      %p56 = por %p54, %p55
      %p57 = scmp.ne.s32.totalorder %s46, %s49
      %p58 = scmp.eq.s32.totalorder %s41, 1
      %p59 = por %p57, %p58
      %p60 = scmp.ne.s32.totalorder %s49, %s50
      %p61 = scmp.eq.s32.totalorder %s41, 0
      %p62 = por %p60, %p61
      %p63 = scmp.ne.s32.totalorder %s49, %s50
      %p64 = scmp.eq.s32.totalorder %s42, 1
      %p65 = por %p63, %p64
      %p67 = scmp.ne.s32.totalorder %s50, %s66
      %p68 = scmp.eq.s32.totalorder %s42, 0
      %p69 = por %p67, %p68
      %s70 = ssub.s32 %s36, %s43
      %p71 = scmp.eq.s32.totalorder %s70, 0
      %s73 = sadd.s32 %s72, 1
      %s74 = scalar_select %p71, %s72, %s73
      %p77 = pneg %p71
      %p78 = scmp.eq.s32.totalorder %s36, 1
      %p79 = por %p77, %p78
      %p80 = scmp.ne.s32.totalorder %s72, %s75
      %p81 = scmp.eq.s32.totalorder %s36, 0
      %p82 = por %p80, %p81
      %p83 = scmp.ne.s32.totalorder %s72, %s75
      %p84 = scmp.eq.s32.totalorder %s41, 1
      %p85 = por %p83, %p84
      %p86 = scmp.ne.s32.totalorder %s75, %s76
      %p87 = scmp.eq.s32.totalorder %s41, 0
      %p88 = por %p86, %p87
      %p89 = scmp.ne.s32.totalorder %s75, %s76
      %p90 = scmp.eq.s32.totalorder %s42, 1
      %p91 = por %p89, %p90
      %p93 = scmp.ne.s32.totalorder %s76, %s92
      %p94 = scmp.eq.s32.totalorder %s42, 0
      %p95 = por %p93, %p94
      %s96 = ssub.s32 %s36, %s43
      %p97 = scmp.eq.s32.totalorder %s96, 0
      %s99 = sadd.s32 %s98, 1
      %s100 = scalar_select %p97, %s98, %s99
      %p103 = pneg %p97
      %p104 = scmp.eq.s32.totalorder %s36, 1
      %p105 = por %p103, %p104
      %p106 = scmp.ne.s32.totalorder %s98, %s101
      %p107 = scmp.eq.s32.totalorder %s36, 0
      %p108 = por %p106, %p107
      %p109 = scmp.ne.s32.totalorder %s98, %s101
      %p110 = scmp.eq.s32.totalorder %s41, 1
      %p111 = por %p109, %p110
      %p112 = scmp.ne.s32.totalorder %s101, %s102
      %p113 = scmp.eq.s32.totalorder %s41, 0
      %p114 = por %p112, %p113
      %p115 = scmp.ne.s32.totalorder %s101, %s102
      %p116 = scmp.eq.s32.totalorder %s42, 1
      %p117 = por %p115, %p116
      %p119 = scmp.ne.s32.totalorder %s102, %s118
      %p120 = scmp.eq.s32.totalorder %s42, 0
      %p121 = por %p119, %p120
      %s123 = sadd.s32 %s122, 1
      %p126 = scmp.eq.s32.totalorder %s36, 1
      %p127 = scmp.ne.s32.totalorder %s122, %s124
      %p128 = scmp.eq.s32.totalorder %s36, 0
      %p129 = por %p127, %p128
      %p130 = scmp.ne.s32.totalorder %s122, %s124
      %p131 = scmp.eq.s32.totalorder %s41, 1
      %p132 = por %p130, %p131
      %p133 = scmp.ne.s32.totalorder %s124, %s125
      %p134 = scmp.eq.s32.totalorder %s41, 0
      %p135 = por %p133, %p134
      %p136 = scmp.ne.s32.totalorder %s124, %s125
      %p137 = scmp.eq.s32.totalorder %s42, 1
      %p138 = por %p136, %p137
      %p140 = scmp.ne.s32.totalorder %s125, %s139
      %p141 = scmp.eq.s32.totalorder %s42, 0
      %p142 = por %p140, %p141
      %s144 = sadd.s32 %s143, 1
      %p147 = scmp.eq.s32.totalorder %s36, 1
      %p148 = scmp.ne.s32.totalorder %s143, %s145
      %p149 = scmp.eq.s32.totalorder %s36, 0
      %p150 = por %p148, %p149
      %p151 = scmp.ne.s32.totalorder %s143, %s145
      %p152 = scmp.eq.s32.totalorder %s41, 1
      %p153 = por %p151, %p152
      %p154 = scmp.ne.s32.totalorder %s145, %s146
      %p155 = scmp.eq.s32.totalorder %s41, 0
      %p156 = por %p154, %p155
      %p157 = scmp.ne.s32.totalorder %s145, %s146
      %p158 = scmp.eq.s32.totalorder %s42, 1
      %p159 = por %p157, %p158
      %p161 = scmp.ne.s32.totalorder %s146, %s160
      %p162 = scmp.eq.s32.totalorder %s42, 0
      %p163 = por %p161, %p162
      %s165 = sadd.s32 %s164, 1
      %p168 = scmp.eq.s32.totalorder %s36, 1
      %p169 = scmp.ne.s32.totalorder %s164, %s166
      %p170 = scmp.eq.s32.totalorder %s36, 0
      %p171 = por %p169, %p170
      %p172 = scmp.ne.s32.totalorder %s164, %s166
      %p173 = scmp.eq.s32.totalorder %s41, 1
      %p174 = por %p172, %p173
      %p175 = scmp.ne.s32.totalorder %s166, %s167
      %p176 = scmp.eq.s32.totalorder %s41, 0
      %p177 = por %p175, %p176
      %p178 = scmp.ne.s32.totalorder %s166, %s167
      %p179 = scmp.eq.s32.totalorder %s42, 1
      %p180 = por %p178, %p179
      %p182 = scmp.ne.s32.totalorder %s167, %s181
      %p183 = scmp.eq.s32.totalorder %s42, 0
      %p184 = por %p182, %p183
      %s186 = sadd.s32 %s185, 1
      %p189 = scmp.eq.s32.totalorder %s36, 1
      %p190 = scmp.ne.s32.totalorder %s185, %s187
      %p191 = scmp.eq.s32.totalorder %s36, 0
      %p192 = por %p190, %p191
      %p193 = scmp.ne.s32.totalorder %s185, %s187
      %p194 = scmp.eq.s32.totalorder %s41, 1
      %p195 = por %p193, %p194
      %p196 = scmp.ne.s32.totalorder %s187, %s188
      %p197 = scmp.eq.s32.totalorder %s41, 0
      %p198 = por %p196, %p197
      %p199 = scmp.ne.s32.totalorder %s187, %s188
      %p200 = scmp.eq.s32.totalorder %s42, 1
      %p201 = por %p199, %p200
      %p203 = scmp.ne.s32.totalorder %s188, %s202
      %p204 = scmp.eq.s32.totalorder %s42, 0
      %p205 = por %p203, %p204
      %s207 = sadd.s32 %s206, 1
      %p210 = scmp.eq.s32.totalorder %s36, 1
      %p211 = scmp.ne.s32.totalorder %s206, %s208
      %p212 = scmp.eq.s32.totalorder %s36, 0
      %p213 = por %p211, %p212
      %p214 = scmp.ne.s32.totalorder %s206, %s208
      %p215 = scmp.eq.s32.totalorder %s41, 1
      %p216 = por %p214, %p215
      %p217 = scmp.ne.s32.totalorder %s208, %s209
      %p218 = scmp.eq.s32.totalorder %s41, 0
      %p219 = por %p217, %p218
      %p220 = scmp.ne.s32.totalorder %s208, %s209
      %p221 = scmp.eq.s32.totalorder %s42, 1
      %p222 = por %p220, %p221
      %p224 = scmp.ne.s32.totalorder %s209, %s223
      %p225 = scmp.eq.s32.totalorder %s42, 0
      %p226 = por %p224, %p225
      %s228 = sadd.s32 %s227, 1
      %p231 = scmp.eq.s32.totalorder %s36, 1
      %p232 = scmp.ne.s32.totalorder %s227, %s229
      %p233 = scmp.eq.s32.totalorder %s36, 0
      %p234 = por %p232, %p233
      %p235 = scmp.ne.s32.totalorder %s227, %s229
      %p236 = scmp.eq.s32.totalorder %s41, 1
      %p237 = por %p235, %p236
      %p238 = scmp.ne.s32.totalorder %s229, %s230
      %p239 = scmp.eq.s32.totalorder %s41, 0
      %p240 = por %p238, %p239
      %p241 = scmp.ne.s32.totalorder %s229, %s230
      %p242 = scmp.eq.s32.totalorder %s42, 1
      %p243 = por %p241, %p242
      %p245 = scmp.ne.s32.totalorder %s230, %s244
      %p246 = scmp.eq.s32.totalorder %s42, 0
      %p247 = por %p245, %p246
      %s249 = sadd.s32 %s248, 1
      %p252 = scmp.eq.s32.totalorder %s36, 1
      %p253 = scmp.ne.s32.totalorder %s248, %s250
      %p254 = scmp.eq.s32.totalorder %s36, 0
      %p255 = por %p253, %p254
      %p256 = scmp.ne.s32.totalorder %s248, %s250
      %p257 = scmp.eq.s32.totalorder %s41, 1
      %p258 = por %p256, %p257
      %p259 = scmp.ne.s32.totalorder %s250, %s251
      %p260 = scmp.eq.s32.totalorder %s41, 0
      %p261 = por %p259, %p260
      %p262 = scmp.ne.s32.totalorder %s250, %s251
      %p263 = scmp.eq.s32.totalorder %s42, 1
      %p264 = por %p262, %p263
      %p266 = scmp.ne.s32.totalorder %s251, %s265
      %p267 = scmp.eq.s32.totalorder %s42, 0
      %p268 = por %p266, %p267
      %s270 = sadd.s32 %s269, 1
      %p273 = scmp.eq.s32.totalorder %s36, 1
      %p274 = scmp.ne.s32.totalorder %s269, %s271
      %p275 = scmp.eq.s32.totalorder %s36, 0
      %p276 = por %p274, %p275
      %p277 = scmp.ne.s32.totalorder %s269, %s271
      %p278 = scmp.eq.s32.totalorder %s41, 1
      %p279 = por %p277, %p278
      %p280 = scmp.ne.s32.totalorder %s271, %s272
      %p281 = scmp.eq.s32.totalorder %s41, 0
      %p282 = por %p280, %p281
      %p283 = scmp.ne.s32.totalorder %s271, %s272
      %p284 = scmp.eq.s32.totalorder %s42, 1
      %p285 = por %p283, %p284
      %p287 = scmp.ne.s32.totalorder %s272, %s286
      %p288 = scmp.eq.s32.totalorder %s42, 0
      %p289 = por %p287, %p288
      %s291 = sadd.s32 %s290, 1
      %p294 = scmp.eq.s32.totalorder %s36, 1
      %p295 = scmp.ne.s32.totalorder %s290, %s292
      %p296 = scmp.eq.s32.totalorder %s36, 0
      %p297 = por %p295, %p296
      %p298 = scmp.ne.s32.totalorder %s290, %s292
      %p299 = scmp.eq.s32.totalorder %s41, 1
      %p300 = por %p298, %p299
      %p301 = scmp.ne.s32.totalorder %s292, %s293
      %p302 = scmp.eq.s32.totalorder %s41, 0
      %p303 = por %p301, %p302
      %p304 = scmp.ne.s32.totalorder %s292, %s293
      %p305 = scmp.eq.s32.totalorder %s42, 1
      %p306 = por %p304, %p305
      %p308 = scmp.ne.s32.totalorder %s293, %s307
      %p309 = scmp.eq.s32.totalorder %s42, 0
      %p310 = por %p308, %p309
      %s312 = sadd.s32 %s311, 1
      %p315 = scmp.eq.s32.totalorder %s36, 1
      %p316 = scmp.ne.s32.totalorder %s311, %s313
      %p317 = scmp.eq.s32.totalorder %s36, 0
      %p318 = por %p316, %p317
      %p319 = scmp.ne.s32.totalorder %s311, %s313
      %p320 = scmp.eq.s32.totalorder %s41, 1
      %p321 = por %p319, %p320
      %p322 = scmp.ne.s32.totalorder %s313, %s314
      %p323 = scmp.eq.s32.totalorder %s41, 0
      %p324 = por %p322, %p323
      %p325 = scmp.ne.s32.totalorder %s313, %s314
      %p326 = scmp.eq.s32.totalorder %s42, 1
      %p327 = por %p325, %p326
      %p329 = scmp.ne.s32.totalorder %s314, %s328
      %p330 = scmp.eq.s32.totalorder %s42, 0
      %p331 = por %p329, %p330
      %s333 = sadd.s32 %s332, 1
      %p336 = scmp.eq.s32.totalorder %s36, 1
      %p337 = scmp.ne.s32.totalorder %s332, %s334
      %p338 = scmp.eq.s32.totalorder %s36, 0
      %p339 = por %p337, %p338
      %p340 = scmp.ne.s32.totalorder %s332, %s334
      %p341 = scmp.eq.s32.totalorder %s41, 1
      %p342 = por %p340, %p341
      %p343 = scmp.ne.s32.totalorder %s334, %s335
      %p344 = scmp.eq.s32.totalorder %s41, 0
      %p345 = por %p343, %p344
      %p346 = scmp.ne.s32.totalorder %s334, %s335
      %p347 = scmp.eq.s32.totalorder %s42, 1
      %p348 = por %p346, %p347
      %p350 = scmp.ne.s32.totalorder %s335, %s349
      %p351 = scmp.eq.s32.totalorder %s42, 0
      %p352 = por %p350, %p351
      %s354 = sadd.s32 %s353, 1
      %p357 = scmp.eq.s32.totalorder %s36, 1
      %p358 = scmp.ne.s32.totalorder %s353, %s355
      %p359 = scmp.eq.s32.totalorder %s36, 0
      %p360 = por %p358, %p359
      %p361 = scmp.ne.s32.totalorder %s353, %s355
      %p362 = scmp.eq.s32.totalorder %s41, 1
      %p363 = por %p361, %p362
      %p364 = scmp.ne.s32.totalorder %s355, %s356
      %p365 = scmp.eq.s32.totalorder %s41, 0
      %p366 = por %p364, %p365
      %p367 = scmp.ne.s32.totalorder %s355, %s356
      %p368 = scmp.eq.s32.totalorder %s42, 1
      %p369 = por %p367, %p368
      %p371 = scmp.ne.s32.totalorder %s356, %s370
      %p372 = scmp.eq.s32.totalorder %s42, 0
      %p373 = por %p371, %p372
      %s374 = ssub.s32 %s36, %s43
      %p375 = scmp.eq.s32.totalorder %s374, 0
      %s377 = sadd.s32 %s376, 1
      %s378 = scalar_select %p375, %s376, %s377
      %p381 = pneg %p375
      %p382 = scmp.eq.s32.totalorder %s36, 1
      %p383 = por %p381, %p382
      %p384 = scmp.ne.s32.totalorder %s376, %s379
      %p385 = scmp.eq.s32.totalorder %s36, 0
      %p386 = por %p384, %p385
      %p387 = scmp.ne.s32.totalorder %s376, %s379
      %p388 = scmp.eq.s32.totalorder %s41, 1
      %p389 = por %p387, %p388
      %p390 = scmp.ne.s32.totalorder %s379, %s380
      %p391 = scmp.eq.s32.totalorder %s41, 0
      %p392 = por %p390, %p391
      %p393 = scmp.ne.s32.totalorder %s379, %s380
      %p394 = scmp.eq.s32.totalorder %s42, 1
      %p395 = por %p393, %p394
      %p397 = scmp.ne.s32.totalorder %s380, %s396
      %p398 = scmp.eq.s32.totalorder %s42, 0
      %p399 = por %p397, %p398
      %p400 = scmp.le.s32.totalorder 1, %s36
      %p401 = scmp.lt.s32.totalorder %s36, 3
      %p402 = pnand %p400, %p401
      %p403 = pneg %p402
      // Predicated region
      $region9: #{tpu_custom_call.1} parent=5 // pred_check
        _
      $region10: #{tpu_custom_call.1} parent=5 // pred_check_branch
        %405 = sbr.rel (%p402) target = $region12
      $region11: #{tpu_custom_call.1} parent=5 // pred_region
        %s406 = ssub.s32 %s36, 1
        // Predicated region
        $region13: #{tpu_custom_call.1} parent=11 // pred_check
          %p407 = pneg %p135
        $region14: #{tpu_custom_call.1} parent=11 // pred_check_branch
          %409 = sbr.rel (%p407) target = $region16
        $region15: #{tpu_custom_call.1} parent=11 // pred_region
          %s411 = ssub.s32 256, 256
          %412 = vsyncadd [#allocation10], %s411
          %s413 = sshll.u32 [#allocation9], 4
          %s414 = int_to_ptr.vmem [resolvable:$true] %s413
          %419 = dma.hbm_to_vmem [thread:$0]  %s3, 256, %s414, [#allocation10], 64, 64, 4
        $region16: #{tpu_custom_call.1} parent=11 // pred_fallthru
          _
        // Predicated region
        $region17: #{tpu_custom_call.1} parent=11 // pred_check
          %p420 = pneg %p156
        $region18: #{tpu_custom_call.1} parent=11 // pred_check_branch
          %422 = sbr.rel (%p420) target = $region20
        $region19: #{tpu_custom_call.1} parent=11 // pred_region
          %s424 = ssub.s32 16, 16
          %425 = vsyncadd [#allocation10], %s424
          %s427 = sshll.u32 [#allocation11], 4
          %s428 = int_to_ptr.vmem [resolvable:$true] %s427
          %430 = dma.hbm_to_vmem [thread:$0]  %s4, 16, %s428, [#allocation10]
        $region20: #{tpu_custom_call.1} parent=11 // pred_fallthru
          _
        // Predicated region
        $region21: #{tpu_custom_call.1} parent=11 // pred_check
          %p431 = pneg %p177
        $region22: #{tpu_custom_call.1} parent=11 // pred_check_branch
          %433 = sbr.rel (%p431) target = $region24
        $region23: #{tpu_custom_call.1} parent=11 // pred_region
          %s435 = ssub.s32 256, 256
          %436 = vsyncadd [#allocation13], %s435
          %s437 = sshll.u32 [#allocation12], 4
          %s438 = int_to_ptr.vmem [resolvable:$true] %s437
          %443 = dma.hbm_to_vmem [thread:$0]  %s5, 256, %s438, [#allocation13], 64, 64, 4
        $region24: #{tpu_custom_call.1} parent=11 // pred_fallthru
          _
        // Predicated region
        $region25: #{tpu_custom_call.1} parent=11 // pred_check
          %p444 = pneg %p198
        $region26: #{tpu_custom_call.1} parent=11 // pred_check_branch
          %446 = sbr.rel (%p444) target = $region28
        $region27: #{tpu_custom_call.1} parent=11 // pred_region
          %s448 = ssub.s32 16, 16
          %449 = vsyncadd [#allocation13], %s448
          %s451 = sshll.u32 [#allocation14], 4
          %s452 = int_to_ptr.vmem [resolvable:$true] %s451
          %454 = dma.hbm_to_vmem [thread:$0]  %s6, 16, %s452, [#allocation13]
        $region28: #{tpu_custom_call.1} parent=11 // pred_fallthru
          _
        // Predicated region
        $region29: #{tpu_custom_call.1} parent=11 // pred_check
          %p455 = pneg %p219
        $region30: #{tpu_custom_call.1} parent=11 // pred_check_branch
          %457 = sbr.rel (%p455) target = $region32
        $region31: #{tpu_custom_call.1} parent=11 // pred_region
          %s459 = ssub.s32 16, 16
          %460 = vsyncadd [#allocation16], %s459
          %s462 = sshll.u32 [#allocation15], 4
          %s463 = int_to_ptr.vmem [resolvable:$true] %s462
          %465 = dma.hbm_to_vmem [thread:$0]  %s7, 16, %s463, [#allocation16]
        $region32: #{tpu_custom_call.1} parent=11 // pred_fallthru
          _
        // Predicated region
        $region33: #{tpu_custom_call.1} parent=11 // pred_check
          %p466 = pneg %p240
        $region34: #{tpu_custom_call.1} parent=11 // pred_check_branch
          %468 = sbr.rel (%p466) target = $region36
        $region35: #{tpu_custom_call.1} parent=11 // pred_region
          %s470 = ssub.s32 16, 16
          %471 = vsyncadd [#allocation16], %s470
          %s473 = sshll.u32 [#allocation17], 4
          %s474 = int_to_ptr.vmem [resolvable:$true] %s473
          %476 = dma.hbm_to_vmem [thread:$0]  %s8, 16, %s474, [#allocation16]
        $region36: #{tpu_custom_call.1} parent=11 // pred_fallthru
          _
        // Predicated region
        $region37: #{tpu_custom_call.1} parent=11 // pred_check
          %p477 = pneg %p261
        $region38: #{tpu_custom_call.1} parent=11 // pred_check_branch
          %479 = sbr.rel (%p477) target = $region40
        $region39: #{tpu_custom_call.1} parent=11 // pred_region
          %s481 = ssub.s32 256, 256
          %482 = vsyncadd [#allocation19], %s481
          %s483 = sshll.u32 [#allocation18], 4
          %s484 = int_to_ptr.vmem [resolvable:$true] %s483
          %489 = dma.hbm_to_vmem [thread:$0]  %s9, 256, %s484, [#allocation19], 64, 64, 4
        $region40: #{tpu_custom_call.1} parent=11 // pred_fallthru
          _
        // Predicated region
        $region41: #{tpu_custom_call.1} parent=11 // pred_check
          %p490 = pneg %p282
        $region42: #{tpu_custom_call.1} parent=11 // pred_check_branch
          %492 = sbr.rel (%p490) target = $region44
        $region43: #{tpu_custom_call.1} parent=11 // pred_region
          %s494 = ssub.s32 16, 16
          %495 = vsyncadd [#allocation19], %s494
          %s497 = sshll.u32 [#allocation20], 4
          %s498 = int_to_ptr.vmem [resolvable:$true] %s497
          %500 = dma.hbm_to_vmem [thread:$0]  %s10, 16, %s498, [#allocation19]
        $region44: #{tpu_custom_call.1} parent=11 // pred_fallthru
          _
        // Predicated region
        $region45: #{tpu_custom_call.1} parent=11 // pred_check
          %p501 = pneg %p303
        $region46: #{tpu_custom_call.1} parent=11 // pred_check_branch
          %503 = sbr.rel (%p501) target = $region48
        $region47: #{tpu_custom_call.1} parent=11 // pred_region
          %s505 = ssub.s32 512, 512
          %506 = vsyncadd [#allocation22], %s505
          %s507 = sshll.u32 [#allocation21], 4
          %s508 = int_to_ptr.vmem [resolvable:$true] %s507
          %513 = dma.hbm_to_vmem [thread:$0]  %s11, 512, %s508, [#allocation22], 64, 64, 4
        $region48: #{tpu_custom_call.1} parent=11 // pred_fallthru
          _
        // Predicated region
        $region49: #{tpu_custom_call.1} parent=11 // pred_check
          %p514 = pneg %p324
        $region50: #{tpu_custom_call.1} parent=11 // pred_check_branch
          %516 = sbr.rel (%p514) target = $region52
        $region51: #{tpu_custom_call.1} parent=11 // pred_region
          %s518 = ssub.s32 16, 16
          %519 = vsyncadd [#allocation22], %s518
          %s521 = sshll.u32 [#allocation23], 4
          %s522 = int_to_ptr.vmem [resolvable:$true] %s521
          %524 = dma.hbm_to_vmem [thread:$0]  %s12, 16, %s522, [#allocation22]
        $region52: #{tpu_custom_call.1} parent=11 // pred_fallthru
          _
        // Predicated region
        $region53: #{tpu_custom_call.1} parent=11 // pred_check
          %p525 = pneg %p345
        $region54: #{tpu_custom_call.1} parent=11 // pred_check_branch
          %527 = sbr.rel (%p525) target = $region56
        $region55: #{tpu_custom_call.1} parent=11 // pred_region
          %s529 = ssub.s32 16, 16
          %530 = vsyncadd [#allocation25], %s529
          %s532 = sshll.u32 [#allocation24], 4
          %s533 = int_to_ptr.vmem [resolvable:$true] %s532
          %535 = dma.hbm_to_vmem [thread:$0]  %s13, 16, %s533, [#allocation25]
        $region56: #{tpu_custom_call.1} parent=11 // pred_fallthru
          _
        // Predicated region
        $region57: #{tpu_custom_call.1} parent=11 // pred_check
          %p536 = pneg %p366
        $region58: #{tpu_custom_call.1} parent=11 // pred_check_branch
          %538 = sbr.rel (%p536) target = $region60
        $region59: #{tpu_custom_call.1} parent=11 // pred_region
          %s540 = ssub.s32 16, 16
          %541 = vsyncadd [#allocation25], %s540
          %s543 = sshll.u32 [#allocation26], 4
          %s544 = int_to_ptr.vmem [resolvable:$true] %s543
          %546 = dma.hbm_to_vmem [thread:$0]  %s14, 16, %s544, [#allocation25]
        $region60: #{tpu_custom_call.1} parent=11 // pred_fallthru
          _
      $region12: #{tpu_custom_call.1} parent=5 // pred_fallthru
        _
      %p547 = scmp.lt.s32.totalorder %s36, 2
      // Predicated region
      $region61: #{tpu_custom_call.1} parent=5 // pred_check
        %p548 = pneg %p547
      $region62: #{tpu_custom_call.1} parent=5 // pred_check_branch
        %550 = sbr.rel (%p548) target = $region64
      $region63: #{tpu_custom_call.1} parent=5 // pred_region
        // Predicated region
        $region65: #{tpu_custom_call.1} parent=63 // pred_check
          %p551 = pneg %p56
        $region66: #{tpu_custom_call.1} parent=63 // pred_check_branch
          %553 = sbr.rel (%p551) target = $region68
        $region67: #{tpu_custom_call.1} parent=63 // pred_region
          %s554 = sand.u32 %s46, 1
          %s555 = scalar_lea.sflag [#allocation4], %s554
          %s556 = sand.u32 %s46, 1
          %s557 = smul.addr %s556, 8
          %s558 = scalar_lea.vmem [#allocation3], %s557
          %s560 = ssub.s32 128, 128
          %561 = vsyncadd %s555, %s560
          %s562 = smul.addr %s36, 128
          %s563 = scalar_lea.hbm %s0, %s562
          %s565 = sshll.u32 %s558, 4
          %s566 = int_to_ptr.vmem [resolvable:$true] %s565
          %568 = dma.hbm_to_vmem [thread:$0]  %s563, 128, %s566, %s555
        $region68: #{tpu_custom_call.1} parent=63 // pred_fallthru
          _
        // Predicated region
        $region69: #{tpu_custom_call.1} parent=63 // pred_check
          %p569 = pneg %p82
        $region70: #{tpu_custom_call.1} parent=63 // pred_check_branch
          %571 = sbr.rel (%p569) target = $region72
        $region71: #{tpu_custom_call.1} parent=63 // pred_region
          %s572 = sand.u32 %s36, 1
          %s573 = scalar_lea.sflag [#allocation7], %s572
          %s574 = sand.u32 %s72, 1
          %s575 = smul.addr %s574, 4
          %s576 = scalar_lea.vmem [#allocation6], %s575
          %s578 = ssub.s32 64, 64
          %579 = vsyncadd %s573, %s578
          %s580 = smul.addr %s36, 64
          %s581 = scalar_lea.hbm %s1, %s580
          %s583 = sshll.u32 %s576, 4
          %s584 = int_to_ptr.vmem [resolvable:$true] %s583
          %586 = dma.hbm_to_vmem [thread:$0]  %s581, 64, %s584, %s573
        $region72: #{tpu_custom_call.1} parent=63 // pred_fallthru
          _
        // Predicated region
        $region73: #{tpu_custom_call.1} parent=63 // pred_check
          %p587 = pneg %p108
        $region74: #{tpu_custom_call.1} parent=63 // pred_check_branch
          %589 = sbr.rel (%p587) target = $region76
        $region75: #{tpu_custom_call.1} parent=63 // pred_region
          %s590 = sand.u32 %s36, 1
          %s591 = scalar_lea.sflag [#allocation7], %s590
          %s592 = sand.u32 %s98, 1
          %s593 = scalar_lea.vmem [#allocation8], %s592
          %s595 = ssub.s32 16, 16
          %596 = vsyncadd %s591, %s595
          %s597 = smul.addr %s36, 16
          %s598 = scalar_lea.hbm %s2, %s597
          %s600 = sshll.u32 %s593, 4
          %s601 = int_to_ptr.vmem [resolvable:$true] %s600
          %603 = dma.hbm_to_vmem [thread:$0]  %s598, 16, %s601, %s591
        $region76: #{tpu_custom_call.1} parent=63 // pred_fallthru
          _
      $region64: #{tpu_custom_call.1} parent=5 // pred_fallthru
        _
      %p604 = scmp.le.s32.totalorder 1, %s36
      %p605 = scmp.lt.s32.totalorder %s36, 3
      %p606 = pnand %p604, %p605
      %p607 = pneg %p606
      // Predicated region
      $region77: #{tpu_custom_call.1} parent=5 // pred_check
        _
      $region78: #{tpu_custom_call.1} parent=5 // pred_check_branch
        %609 = sbr.rel (%p606) target = $region80
      $region79: #{tpu_custom_call.1} parent=5 // pred_region
        %s610 = ssub.s32 %s36, 1
        %s611 = sand.u32 %s49, 1
        %s612 = scalar_lea.sflag [#allocation4], %s611
        %s613 = sand.u32 %s49, 1
        %s614 = smul.addr %s613, 8
        %s615 = scalar_lea.vmem [#allocation3], %s614
        // Predicated region
        $region81: #{tpu_custom_call.1} parent=79 // pred_check
          %p616 = pneg %p62
        $region82: #{tpu_custom_call.1} parent=79 // pred_check_branch
          %618 = sbr.rel (%p616) target = $region84
        $region83: #{tpu_custom_call.1} parent=79 // pred_region
          %619 = dma.done %s612, 128
        $region84: #{tpu_custom_call.1} parent=79 // pred_fallthru
          _
        %s620 = sand.u32 %s41, 1
        %s621 = scalar_lea.sflag [#allocation7], %s620
        %s622 = sand.u32 %s75, 1
        %s623 = smul.addr %s622, 4
        %s624 = scalar_lea.vmem [#allocation6], %s623
        // Predicated region
        $region85: #{tpu_custom_call.1} parent=79 // pred_check
          %p625 = pneg %p88
        $region86: #{tpu_custom_call.1} parent=79 // pred_check_branch
          %627 = sbr.rel (%p625) target = $region88
        $region87: #{tpu_custom_call.1} parent=79 // pred_region
          %628 = dma.done %s621, 64
        $region88: #{tpu_custom_call.1} parent=79 // pred_fallthru
          _
        %s629 = sand.u32 %s41, 1
        %s630 = scalar_lea.sflag [#allocation7], %s629
        %s631 = sand.u32 %s101, 1
        %s632 = scalar_lea.vmem [#allocation8], %s631
        // Predicated region
        $region89: #{tpu_custom_call.1} parent=79 // pred_check
          %p633 = pneg %p114
        $region90: #{tpu_custom_call.1} parent=79 // pred_check_branch
          %635 = sbr.rel (%p633) target = $region92
        $region91: #{tpu_custom_call.1} parent=79 // pred_region
          %636 = dma.done %s630, 16
        $region92: #{tpu_custom_call.1} parent=79 // pred_fallthru
          _
        // Predicated region
        $region93: #{tpu_custom_call.1} parent=79 // pred_check
          %p637 = pneg %p135
        $region94: #{tpu_custom_call.1} parent=79 // pred_check_branch
          %639 = sbr.rel (%p637) target = $region96
        $region95: #{tpu_custom_call.1} parent=79 // pred_region
          %640 = dma.done [#allocation10], 256
        $region96: #{tpu_custom_call.1} parent=79 // pred_fallthru
          _
        // Predicated region
        $region97: #{tpu_custom_call.1} parent=79 // pred_check
          %p641 = pneg %p156
        $region98: #{tpu_custom_call.1} parent=79 // pred_check_branch
          %643 = sbr.rel (%p641) target = $region100
        $region99: #{tpu_custom_call.1} parent=79 // pred_region
          %644 = dma.done [#allocation10], 16
        $region100: #{tpu_custom_call.1} parent=79 // pred_fallthru
          _
        // Predicated region
        $region101: #{tpu_custom_call.1} parent=79 // pred_check
          %p645 = pneg %p177
        $region102: #{tpu_custom_call.1} parent=79 // pred_check_branch
          %647 = sbr.rel (%p645) target = $region104
        $region103: #{tpu_custom_call.1} parent=79 // pred_region
          %648 = dma.done [#allocation13], 256
        $region104: #{tpu_custom_call.1} parent=79 // pred_fallthru
          _
        // Predicated region
        $region105: #{tpu_custom_call.1} parent=79 // pred_check
          %p649 = pneg %p198
        $region106: #{tpu_custom_call.1} parent=79 // pred_check_branch
          %651 = sbr.rel (%p649) target = $region108
        $region107: #{tpu_custom_call.1} parent=79 // pred_region
          %652 = dma.done [#allocation13], 16
        $region108: #{tpu_custom_call.1} parent=79 // pred_fallthru
          _
        // Predicated region
        $region109: #{tpu_custom_call.1} parent=79 // pred_check
          %p653 = pneg %p219
        $region110: #{tpu_custom_call.1} parent=79 // pred_check_branch
          %655 = sbr.rel (%p653) target = $region112
        $region111: #{tpu_custom_call.1} parent=79 // pred_region
          %656 = dma.done [#allocation16], 16
        $region112: #{tpu_custom_call.1} parent=79 // pred_fallthru
          _
        // Predicated region
        $region113: #{tpu_custom_call.1} parent=79 // pred_check
          %p657 = pneg %p240
        $region114: #{tpu_custom_call.1} parent=79 // pred_check_branch
          %659 = sbr.rel (%p657) target = $region116
        $region115: #{tpu_custom_call.1} parent=79 // pred_region
          %660 = dma.done [#allocation16], 16
        $region116: #{tpu_custom_call.1} parent=79 // pred_fallthru
          _
        // Predicated region
        $region117: #{tpu_custom_call.1} parent=79 // pred_check
          %p661 = pneg %p261
        $region118: #{tpu_custom_call.1} parent=79 // pred_check_branch
          %663 = sbr.rel (%p661) target = $region120
        $region119: #{tpu_custom_call.1} parent=79 // pred_region
          %664 = dma.done [#allocation19], 256
        $region120: #{tpu_custom_call.1} parent=79 // pred_fallthru
          _
        // Predicated region
        $region121: #{tpu_custom_call.1} parent=79 // pred_check
          %p665 = pneg %p282
        $region122: #{tpu_custom_call.1} parent=79 // pred_check_branch
          %667 = sbr.rel (%p665) target = $region124
        $region123: #{tpu_custom_call.1} parent=79 // pred_region
          %668 = dma.done [#allocation19], 16
        $region124: #{tpu_custom_call.1} parent=79 // pred_fallthru
          _
        // Predicated region
        $region125: #{tpu_custom_call.1} parent=79 // pred_check
          %p669 = pneg %p303
        $region126: #{tpu_custom_call.1} parent=79 // pred_check_branch
          %671 = sbr.rel (%p669) target = $region128
        $region127: #{tpu_custom_call.1} parent=79 // pred_region
          %672 = dma.done [#allocation22], 512
        $region128: #{tpu_custom_call.1} parent=79 // pred_fallthru
          _
        // Predicated region
        $region129: #{tpu_custom_call.1} parent=79 // pred_check
          %p673 = pneg %p324
        $region130: #{tpu_custom_call.1} parent=79 // pred_check_branch
          %675 = sbr.rel (%p673) target = $region132
        $region131: #{tpu_custom_call.1} parent=79 // pred_region
          %676 = dma.done [#allocation22], 16
        $region132: #{tpu_custom_call.1} parent=79 // pred_fallthru
          _
        // Predicated region
        $region133: #{tpu_custom_call.1} parent=79 // pred_check
          %p677 = pneg %p345
        $region134: #{tpu_custom_call.1} parent=79 // pred_check_branch
          %679 = sbr.rel (%p677) target = $region136
        $region135: #{tpu_custom_call.1} parent=79 // pred_region
          %680 = dma.done [#allocation25], 16
        $region136: #{tpu_custom_call.1} parent=79 // pred_fallthru
          _
        // Predicated region
        $region137: #{tpu_custom_call.1} parent=79 // pred_check
          %p681 = pneg %p366
        $region138: #{tpu_custom_call.1} parent=79 // pred_check_branch
          %683 = sbr.rel (%p681) target = $region140
        $region139: #{tpu_custom_call.1} parent=79 // pred_region
          %684 = dma.done [#allocation25], 16
        $region140: #{tpu_custom_call.1} parent=79 // pred_fallthru
          _
        %s685 = sand.u32 %s49, 1
        %s686 = scalar_lea.sflag [#allocation4], %s685
        %s687 = sand.u32 %s49, 1
        %s688 = smul.addr %s687, 8
        %s689 = scalar_lea.vmem [#allocation3], %s688
        %p690 = pneg %p62
        %p691 = pneg %p59
        %s692 = sand.u32 %s41, 1
        %s693 = scalar_lea.sflag [#allocation7], %s692
        %s694 = sand.u32 %s75, 1
        %s695 = smul.addr %s694, 4
        %s696 = scalar_lea.vmem [#allocation6], %s695
        %p697 = pneg %p88
        %p698 = pneg %p85
        %s699 = sand.u32 %s41, 1
        %s700 = scalar_lea.sflag [#allocation7], %s699
        %s701 = sand.u32 %s101, 1
        %s702 = scalar_lea.vmem [#allocation8], %s701
        %p703 = pneg %p114
        %p704 = pneg %p111
        %p705 = pneg %p135
        %p706 = pneg %p132
        %p707 = pneg %p156
        %p708 = pneg %p153
        %p709 = pneg %p177
        %p710 = pneg %p174
        %p711 = pneg %p198
        %p712 = pneg %p195
        %p713 = pneg %p219
        %p714 = pneg %p216
        %p715 = pneg %p240
        %p716 = pneg %p237
        %p717 = pneg %p261
        %p718 = pneg %p258
        %p719 = pneg %p282
        %p720 = pneg %p279
        %p721 = pneg %p303
        %p722 = pneg %p300
        %p723 = pneg %p324
        %p724 = pneg %p321
        %p725 = pneg %p345
        %p726 = pneg %p342
        %p727 = pneg %p366
        %p728 = pneg %p363
        %p729 = pneg %p392
        %p730 = pneg %p389
        %s731 = sand.u32 %s379, 1
        %s732 = scalar_lea.sflag [#allocation5], %s731
        %s733 = sand.u32 %s379, 1
        %s734 = smul.addr %s733, 8
        %s735 = scalar_lea.vmem [#allocation27], %s734
        %v737 = vld [vmem:[%s615] sm:$0xff]
        %v738 = vpack.c.bf16 %v737, %v737
        %v739 = vld [vmem:[#allocation9] sm:$0xf]
        %v740 = vld [vmem:[#allocation9 + $0x4] sm:$0xf]
        %v741 = vld [vmem:[#allocation9 + $0x8] sm:$0xf]
        %v742 = vld [vmem:[#allocation9 + $0xc] sm:$0xf]
        %v743 = vld [vmem:[#allocation11] sm:$0x1]
        %v745 = vlaneseq
        %v746 = vshrl.u32 %v745, 7
        %v747 = vsub.s32 0, %v746
        %v748 = vrot.slane %v743, %v747
        %v754 = vunpack.c.l.b16 %v739
        %v755 = vunpack.c.l.b16 %v740
        %v756 = vunpack.c.l.b16 %v741
        %v757 = vunpack.c.l.b16 %v742
        %v758 = vpack.c.b16 %v755, %v754
        %v759 = vpack.c.b16 %v757, %v756
        %vm762 = vcmask 261120
        %v764 = vsel %vm762, %v738, 0
        %766 = vmatprep.subr.bf16.mxu0 0
        %767 = vmatpush1.bf16.msra.mxu0 %v758
        %768 = vmatprep.subr.bf16.mxu0 0
        %769 = vmatpush1.bf16.msra.mxu0 %v759
        %770 = vmatprep.subr.bf16.mxu0 0
        %771 = vmatpush1.bf16.msra.mxu0 0
        %772 = vmatprep.subr.bf16.mxu0 0
        %773 = vmatpush1.bf16.msra.mxu0 0
        %774 = vmatprep.subr.bf16.mxu0 0
        %775 = vmatpush1.bf16.msra.mxu0 0
        %776 = vmatprep.subr.bf16.mxu0 0
        %777 = vmatpush1.bf16.msra.mxu0 0
        %778 = vmatprep.subr.bf16.mxu0 0
        %779 = vmatpush1.bf16.msra.mxu0 0
        %780 = vmatprep.subr.bf16.mxu0 0
        %781 = vmatpush1.bf16.msra.mxu0 0
        %782 = vmatprep.subr.bf16.mxu0 0
        %783 = vmatpush1.bf16.msra.mxu0 0
        %784 = vmatprep.subr.bf16.mxu0 0
        %785 = vmatpush1.bf16.msra.mxu0 0
        %786 = vmatprep.subr.bf16.mxu0 0
        %787 = vmatpush1.bf16.msra.mxu0 0
        %788 = vmatprep.subr.bf16.mxu0 0
        %789 = vmatpush1.bf16.msra.mxu0 0
        %790 = vmatprep.subr.bf16.mxu0 0
        %791 = vmatpush1.bf16.msra.mxu0 0
        %792 = vmatprep.subr.bf16.mxu0 0
        %793 = vmatpush1.bf16.msra.mxu0 0
        %794 = vmatprep.subr.bf16.mxu0 0
        %795 = vmatpush1.bf16.msra.mxu0 0
        %796 = vmatprep.subr.bf16.mxu0 0
        %797 = vmatpush1.bf16.msra.mxu0 0
        %798 = vmatprep.mubr.bf16.mxu0 0
        %799 = vmatmul.mubr.bf16.gmra.mrb[0].mxu0 %v764
        %v800 = vpop.f32.mrb[0].mxu0
        %v801 = vadd.f32 %v748, %v800
        %v802 = vpop.f32.mrb[0].mxu0
        %v803 = vpop.f32.mrb[0].mxu0
        %v804 = vpop.f32.mrb[0].mxu0
        %805 = vdwg.mxu0
        %v806 = vpack.c.bf16 %v801, %v801
        %v807 = vld [vmem:[%s624] sm:$0xf]
        %v808 = vunpack.c.l.bf16 %v807
        %v809 = vld [vmem:[%s632] sm:$0x1]
        %vm810 = vcmp.gt.f32.partialorder %v809, 0.5
        %v811 = vsel %vm810, 1, 0
        %v812 = vlaneseq
        %v813 = vshrl.u32 %v812, 7
        %v814 = vsub.s32 0, %v813
        %v815 = vrot.slane %v811, %v814
        %vm816 = vcmp.eq.s32.totalorder %v815, 1
        %818 = vrot.lane.b32.xlu0 %v806, 96
        %v819 = vpop.permute.xlu0 %818
        %vm820 = vcmask 64512
        %v822 = vsel %vm820, %v806, 0
        %v825 = vsel %vm820, %v819, 0
        %827 = vmatprep.subr.bf16.mxu0 0
        %828 = vmatpush1.bf16.xpose.msra.mxu0 %v825
        %829 = vmatprep.subr.bf16.mxu0 0
        %830 = vmatpush1.bf16.xpose.msra.mxu0 0
        %831 = vmatprep.subr.bf16.mxu0 0
        %832 = vmatpush1.bf16.xpose.msra.mxu0 0
        %833 = vmatprep.subr.bf16.mxu0 0
        %834 = vmatpush1.bf16.xpose.msra.mxu0 0
        %835 = vmatprep.subr.bf16.mxu0 0
        %836 = vmatpush1.bf16.xpose.msra.mxu0 0
        %837 = vmatprep.subr.bf16.mxu0 0
        %838 = vmatpush1.bf16.xpose.msra.mxu0 0
        %839 = vmatprep.subr.bf16.mxu0 0
        %840 = vmatpush1.bf16.xpose.msra.mxu0 0
        %841 = vmatprep.subr.bf16.mxu0 0
        %842 = vmatpush1.bf16.xpose.msra.mxu0 0
        %843 = vmatprep.subr.bf16.mxu0 0
        %844 = vmatpush1.bf16.xpose.msra.mxu0 0
        %845 = vmatprep.subr.bf16.mxu0 0
        %846 = vmatpush1.bf16.xpose.msra.mxu0 0
        %847 = vmatprep.subr.bf16.mxu0 0
        %848 = vmatpush1.bf16.xpose.msra.mxu0 0
        %849 = vmatprep.subr.bf16.mxu0 0
        %850 = vmatpush1.bf16.xpose.msra.mxu0 0
        %851 = vmatprep.subr.bf16.mxu0 0
        %852 = vmatpush1.bf16.xpose.msra.mxu0 0
        %853 = vmatprep.subr.bf16.mxu0 0
        %854 = vmatpush1.bf16.xpose.msra.mxu0 0
        %855 = vmatprep.subr.bf16.mxu0 0
        %856 = vmatpush1.bf16.xpose.msra.mxu0 0
        %857 = vmatprep.subr.bf16.mxu0 0
        %858 = vmatpush1.bf16.xpose.msra.mxu0 0
        %859 = vmatprep.mubr.bf16.mxu0 0
        %860 = vmatmul.mubr.bf16.gmra.mrb[0].mxu0 %v822
        %v861 = vpop.f32.mrb[0].mxu0
        %v862 = vadd.f32 %v808, %v861
        %v863 = vpop.f32.mrb[0].mxu0
        %v864 = vpop.f32.mrb[0].mxu0
        %v865 = vpop.f32.mrb[0].mxu0
        %866 = vdwg.mxu0
        %v867 = vsel %vm816, -10000.0, %v862
        %v868 = vsel %vm820, %v867, -inf
        %869 = vmax.xlane.f32.xlu0 %v868
        %v870 = vpop.xlane.xlu0 %869
        %v871 = vsub.f32 %v867, %v870
        %v872 = vmul.f32 %v871, 1.442695
        %v873 = vpow.pop %v872
        %v874 = vsel %vm820, %v873, 0.0
        %875 = vadd.xlane.f32.xlu0 %v874
        %v876 = vpop.xlane.xlu0 %875
        %v877 = vrcp.pop %v876
        %v878 = vmul.f32 %v873, %v877
        %v879 = vpack.c.bf16 %v878, %v878
        %880 = vrot.lane.b32.xlu0 %v806, 64
        %v881 = vpop.permute.xlu0 %880
        %v883 = vsel %vm820, %v879, 0
        %vm885 = vcmask 1043456
        %v887 = vsel %vm885, %v881, 0
        %889 = vmatprep.subr.bf16.mxu0 0
        %890 = vmatpush1.bf16.msra.mxu0 %v887
        %891 = vmatprep.subr.bf16.mxu0 0
        %892 = vmatpush1.bf16.msra.mxu0 0
        %893 = vmatprep.subr.bf16.mxu0 0
        %894 = vmatpush1.bf16.msra.mxu0 0
        %895 = vmatprep.subr.bf16.mxu0 0
        %896 = vmatpush1.bf16.msra.mxu0 0
        %897 = vmatprep.subr.bf16.mxu0 0
        %898 = vmatpush1.bf16.msra.mxu0 0
        %899 = vmatprep.subr.bf16.mxu0 0
        %900 = vmatpush1.bf16.msra.mxu0 0
        %901 = vmatprep.subr.bf16.mxu0 0
        %902 = vmatpush1.bf16.msra.mxu0 0
        %903 = vmatprep.subr.bf16.mxu0 0
        %904 = vmatpush1.bf16.msra.mxu0 0
        %905 = vmatprep.subr.bf16.mxu0 0
        %906 = vmatpush1.bf16.msra.mxu0 0
        %907 = vmatprep.subr.bf16.mxu0 0
        %908 = vmatpush1.bf16.msra.mxu0 0
        %909 = vmatprep.subr.bf16.mxu0 0
        %910 = vmatpush1.bf16.msra.mxu0 0
        %911 = vmatprep.subr.bf16.mxu0 0
        %912 = vmatpush1.bf16.msra.mxu0 0
        %913 = vmatprep.subr.bf16.mxu0 0
        %914 = vmatpush1.bf16.msra.mxu0 0
        %915 = vmatprep.subr.bf16.mxu0 0
        %916 = vmatpush1.bf16.msra.mxu0 0
        %917 = vmatprep.subr.bf16.mxu0 0
        %918 = vmatpush1.bf16.msra.mxu0 0
        %919 = vmatprep.subr.bf16.mxu0 0
        %920 = vmatpush1.bf16.msra.mxu0 0
        %921 = vmatprep.mubr.bf16.mxu0 0
        %922 = vmatmul.mubr.bf16.gmra.mrb[0].mxu0 %v883
        %v923 = vpop.f32.mrb[0].mxu0
        %v924 = vadd.f32 0.0, %v923
        %v925 = vpop.f32.mrb[0].mxu0
        %v926 = vpop.f32.mrb[0].mxu0
        %v927 = vpop.f32.mrb[0].mxu0
        %928 = vdwg.mxu0
        %v929 = vpack.c.bf16 %v924, %v924
        %vm930 = vcmask 60416
        %931 = vst.msk [vmem:[#allocation2] sm:$0xf] %vm930, %v929
        %932 = vrot.lane.b32.xlu0 %v806, 120
        %v933 = vpop.permute.xlu0 %932
        %934 = vrot.lane.b32.xlu0 %v806, 88
        %v935 = vpop.permute.xlu0 %934
        %v937 = vsel %vm820, %v933, 0
        %v940 = vsel %vm820, %v935, 0
        %942 = vmatprep.subr.bf16.mxu0 0
        %943 = vmatpush1.bf16.xpose.msra.mxu0 %v940
        %944 = vmatprep.subr.bf16.mxu0 0
        %945 = vmatpush1.bf16.xpose.msra.mxu0 0
        %946 = vmatprep.subr.bf16.mxu0 0
        %947 = vmatpush1.bf16.xpose.msra.mxu0 0
        %948 = vmatprep.subr.bf16.mxu0 0
        %949 = vmatpush1.bf16.xpose.msra.mxu0 0
        %950 = vmatprep.subr.bf16.mxu0 0
        %951 = vmatpush1.bf16.xpose.msra.mxu0 0
        %952 = vmatprep.subr.bf16.mxu0 0
        %953 = vmatpush1.bf16.xpose.msra.mxu0 0
        %954 = vmatprep.subr.bf16.mxu0 0
        %955 = vmatpush1.bf16.xpose.msra.mxu0 0
        %956 = vmatprep.subr.bf16.mxu0 0
        %957 = vmatpush1.bf16.xpose.msra.mxu0 0
        %958 = vmatprep.subr.bf16.mxu0 0
        %959 = vmatpush1.bf16.xpose.msra.mxu0 0
        %960 = vmatprep.subr.bf16.mxu0 0
        %961 = vmatpush1.bf16.xpose.msra.mxu0 0
        %962 = vmatprep.subr.bf16.mxu0 0
        %963 = vmatpush1.bf16.xpose.msra.mxu0 0
        %964 = vmatprep.subr.bf16.mxu0 0
        %965 = vmatpush1.bf16.xpose.msra.mxu0 0
        %966 = vmatprep.subr.bf16.mxu0 0
        %967 = vmatpush1.bf16.xpose.msra.mxu0 0
        %968 = vmatprep.subr.bf16.mxu0 0
        %969 = vmatpush1.bf16.xpose.msra.mxu0 0
        %970 = vmatprep.subr.bf16.mxu0 0
        %971 = vmatpush1.bf16.xpose.msra.mxu0 0
        %972 = vmatprep.subr.bf16.mxu0 0
        %973 = vmatpush1.bf16.xpose.msra.mxu0 0
        %974 = vmatprep.mubr.bf16.mxu0 0
        %975 = vmatmul.mubr.bf16.gmra.mrb[0].mxu0 %v937
        %v976 = vpop.f32.mrb[0].mxu0
        %v977 = vadd.f32 %v808, %v976
        %v978 = vpop.f32.mrb[0].mxu0
        %v979 = vpop.f32.mrb[0].mxu0
        %v980 = vpop.f32.mrb[0].mxu0
        %981 = vdwg.mxu0
        %v982 = vsel %vm816, -10000.0, %v977
        %v983 = vsel %vm820, %v982, -inf
        %984 = vmax.xlane.f32.xlu0 %v983
        %v985 = vpop.xlane.xlu0 %984
        %v986 = vsub.f32 %v982, %v985
        %v987 = vmul.f32 %v986, 1.442695
        %v988 = vpow.pop %v987
        %v989 = vsel %vm820, %v988, 0.0
        %990 = vadd.xlane.f32.xlu0 %v989
        %v991 = vpop.xlane.xlu0 %990
        %v992 = vrcp.pop %v991
        %v993 = vmul.f32 %v988, %v992
        %v994 = vpack.c.bf16 %v993, %v993
        %995 = vrot.lane.b32.xlu0 %v806, 56
        %v996 = vpop.permute.xlu0 %995
        %v998 = vsel %vm820, %v994, 0
        %v1001 = vsel %vm885, %v996, 0
        %1003 = vmatprep.subr.bf16.mxu0 0
        %1004 = vmatpush1.bf16.msra.mxu0 %v1001
        %1005 = vmatprep.subr.bf16.mxu0 0
        %1006 = vmatpush1.bf16.msra.mxu0 0
        %1007 = vmatprep.subr.bf16.mxu0 0
        %1008 = vmatpush1.bf16.msra.mxu0 0
        %1009 = vmatprep.subr.bf16.mxu0 0
        %1010 = vmatpush1.bf16.msra.mxu0 0
        %1011 = vmatprep.subr.bf16.mxu0 0
        %1012 = vmatpush1.bf16.msra.mxu0 0
        %1013 = vmatprep.subr.bf16.mxu0 0
        %1014 = vmatpush1.bf16.msra.mxu0 0
        %1015 = vmatprep.subr.bf16.mxu0 0
        %1016 = vmatpush1.bf16.msra.mxu0 0
        %1017 = vmatprep.subr.bf16.mxu0 0
        %1018 = vmatpush1.bf16.msra.mxu0 0
        %1019 = vmatprep.subr.bf16.mxu0 0
        %1020 = vmatpush1.bf16.msra.mxu0 0
        %1021 = vmatprep.subr.bf16.mxu0 0
        %1022 = vmatpush1.bf16.msra.mxu0 0
        %1023 = vmatprep.subr.bf16.mxu0 0
        %1024 = vmatpush1.bf16.msra.mxu0 0
        %1025 = vmatprep.subr.bf16.mxu0 0
        %1026 = vmatpush1.bf16.msra.mxu0 0
        %1027 = vmatprep.subr.bf16.mxu0 0
        %1028 = vmatpush1.bf16.msra.mxu0 0
        %1029 = vmatprep.subr.bf16.mxu0 0
        %1030 = vmatpush1.bf16.msra.mxu0 0
        %1031 = vmatprep.subr.bf16.mxu0 0
        %1032 = vmatpush1.bf16.msra.mxu0 0
        %1033 = vmatprep.subr.bf16.mxu0 0
        %1034 = vmatpush1.bf16.msra.mxu0 0
        %1035 = vmatprep.mubr.bf16.mxu0 0
        %1036 = vmatmul.mubr.bf16.gmra.mrb[0].mxu0 %v998
        %v1037 = vpop.f32.mrb[0].mxu0
        %v1038 = vadd.f32 0.0, %v1037
        %v1039 = vpop.f32.mrb[0].mxu0
        %v1040 = vpop.f32.mrb[0].mxu0
        %v1041 = vpop.f32.mrb[0].mxu0
        %1042 = vdwg.mxu0
        %v1043 = vpack.c.bf16 %v1038, %v1038
        %v1045 = vunpack.c.l.b16 %v1043
        %v1046 = vpack.c.b16 %v1045, %v1045
        %1047 = vrot.lane.b32.xlu0 %v1046, 8
        %v1048 = vpop.permute.xlu0 %1047
        %vm1050 = vcmask 126016
        %1051 = vst.msk [vmem:[#allocation2] sm:$0xf] %vm1050, %v1048
        %1052 = vrot.lane.b32.xlu0 %v806, 112
        %v1053 = vpop.permute.xlu0 %1052
        %1054 = vrot.lane.b32.xlu0 %v806, 80
        %v1055 = vpop.permute.xlu0 %1054
        %v1057 = vsel %vm820, %v1053, 0
        %v1060 = vsel %vm820, %v1055, 0
        %1062 = vmatprep.subr.bf16.mxu0 0
        %1063 = vmatpush1.bf16.xpose.msra.mxu0 %v1060
        %1064 = vmatprep.subr.bf16.mxu0 0
        %1065 = vmatpush1.bf16.xpose.msra.mxu0 0
        %1066 = vmatprep.subr.bf16.mxu0 0
        %1067 = vmatpush1.bf16.xpose.msra.mxu0 0
        %1068 = vmatprep.subr.bf16.mxu0 0
        %1069 = vmatpush1.bf16.xpose.msra.mxu0 0
        %1070 = vmatprep.subr.bf16.mxu0 0
        %1071 = vmatpush1.bf16.xpose.msra.mxu0 0
        %1072 = vmatprep.subr.bf16.mxu0 0
        %1073 = vmatpush1.bf16.xpose.msra.mxu0 0
        %1074 = vmatprep.subr.bf16.mxu0 0
        %1075 = vmatpush1.bf16.xpose.msra.mxu0 0
        %1076 = vmatprep.subr.bf16.mxu0 0
        %1077 = vmatpush1.bf16.xpose.msra.mxu0 0
        %1078 = vmatprep.subr.bf16.mxu0 0
        %1079 = vmatpush1.bf16.xpose.msra.mxu0 0
        %1080 = vmatprep.subr.bf16.mxu0 0
        %1081 = vmatpush1.bf16.xpose.msra.mxu0 0
        %1082 = vmatprep.subr.bf16.mxu0 0
        %1083 = vmatpush1.bf16.xpose.msra.mxu0 0
        %1084 = vmatprep.subr.bf16.mxu0 0
        %1085 = vmatpush1.bf16.xpose.msra.mxu0 0
        %1086 = vmatprep.subr.bf16.mxu0 0
        %1087 = vmatpush1.bf16.xpose.msra.mxu0 0
        %1088 = vmatprep.subr.bf16.mxu0 0
        %1089 = vmatpush1.bf16.xpose.msra.mxu0 0
        %1090 = vmatprep.subr.bf16.mxu0 0
        %1091 = vmatpush1.bf16.xpose.msra.mxu0 0
        %1092 = vmatprep.subr.bf16.mxu0 0
        %1093 = vmatpush1.bf16.xpose.msra.mxu0 0
        %1094 = vmatprep.mubr.bf16.mxu0 0
        %1095 = vmatmul.mubr.bf16.gmra.mrb[0].mxu0 %v1057
        %v1096 = vpop.f32.mrb[0].mxu0
        %v1097 = vadd.f32 %v808, %v1096
        %v1098 = vpop.f32.mrb[0].mxu0
        %v1099 = vpop.f32.mrb[0].mxu0
        %v1100 = vpop.f32.mrb[0].mxu0
        %1101 = vdwg.mxu0
        %v1102 = vsel %vm816, -10000.0, %v1097
        %v1103 = vsel %vm820, %v1102, -inf
        %1104 = vmax.xlane.f32.xlu0 %v1103
        %v1105 = vpop.xlane.xlu0 %1104
        %v1106 = vsub.f32 %v1102, %v1105
        %v1107 = vmul.f32 %v1106, 1.442695
        %v1108 = vpow.pop %v1107
        %v1109 = vsel %vm820, %v1108, 0.0
        %1110 = vadd.xlane.f32.xlu0 %v1109
        %v1111 = vpop.xlane.xlu0 %1110
        %v1112 = vrcp.pop %v1111
        %v1113 = vmul.f32 %v1108, %v1112
        %v1114 = vpack.c.bf16 %v1113, %v1113
        %1115 = vrot.lane.b32.xlu0 %v806, 48
        %v1116 = vpop.permute.xlu0 %1115
        %v1118 = vsel %vm820, %v1114, 0
        %v1121 = vsel %vm885, %v1116, 0
        %1123 = vmatprep.subr.bf16.mxu0 0
        %1124 = vmatpush1.bf16.msra.mxu0 %v1121
        %1125 = vmatprep.subr.bf16.mxu0 0
        %1126 = vmatpush1.bf16.msra.mxu0 0
        %1127 = vmatprep.subr.bf16.mxu0 0
        %1128 = vmatpush1.bf16.msra.mxu0 0
        %1129 = vmatprep.subr.bf16.mxu0 0
        %1130 = vmatpush1.bf16.msra.mxu0 0
        %1131 = vmatprep.subr.bf16.mxu0 0
        %1132 = vmatpush1.bf16.msra.mxu0 0
        %1133 = vmatprep.subr.bf16.mxu0 0
        %1134 = vmatpush1.bf16.msra.mxu0 0
        %1135 = vmatprep.subr.bf16.mxu0 0
        %1136 = vmatpush1.bf16.msra.mxu0 0
        %1137 = vmatprep.subr.bf16.mxu0 0
        %1138 = vmatpush1.bf16.msra.mxu0 0
        %1139 = vmatprep.subr.bf16.mxu0 0
        %1140 = vmatpush1.bf16.msra.mxu0 0
        %1141 = vmatprep.subr.bf16.mxu0 0
        %1142 = vmatpush1.bf16.msra.mxu0 0
        %1143 = vmatprep.subr.bf16.mxu0 0
        %1144 = vmatpush1.bf16.msra.mxu0 0
        %1145 = vmatprep.subr.bf16.mxu0 0
        %1146 = vmatpush1.bf16.msra.mxu0 0
        %1147 = vmatprep.subr.bf16.mxu0 0
        %1148 = vmatpush1.bf16.msra.mxu0 0
        %1149 = vmatprep.subr.bf16.mxu0 0
        %1150 = vmatpush1.bf16.msra.mxu0 0
        %1151 = vmatprep.subr.bf16.mxu0 0
        %1152 = vmatpush1.bf16.msra.mxu0 0
        %1153 = vmatprep.subr.bf16.mxu0 0
        %1154 = vmatpush1.bf16.msra.mxu0 0
        %1155 = vmatprep.mubr.bf16.mxu0 0
        %1156 = vmatmul.mubr.bf16.gmra.mrb[0].mxu0 %v1118
        %v1157 = vpop.f32.mrb[0].mxu0
        %v1158 = vadd.f32 0.0, %v1157
        %v1159 = vpop.f32.mrb[0].mxu0
        %v1160 = vpop.f32.mrb[0].mxu0
        %v1161 = vpop.f32.mrb[0].mxu0
        %1162 = vdwg.mxu0
        %v1163 = vpack.c.bf16 %v1158, %v1158
        %v1165 = vunpack.c.l.b16 %v1163
        %v1166 = vpack.c.b16 %v1165, %v1165
        %1167 = vrot.lane.b32.xlu0 %v1166, 16
        %v1168 = vpop.permute.xlu0 %1167
        %vm1170 = vcmask 191616
        %1171 = vst.msk [vmem:[#allocation2] sm:$0xf] %vm1170, %v1168
        %1172 = vrot.lane.b32.xlu0 %v806, 104
        %v1173 = vpop.permute.xlu0 %1172
        %1174 = vrot.lane.b32.xlu0 %v806, 72
        %v1175 = vpop.permute.xlu0 %1174
        %v1177 = vsel %vm820, %v1173, 0
        %v1180 = vsel %vm820, %v1175, 0
        %1182 = vmatprep.subr.bf16.mxu0 0
        %1183 = vmatpush1.bf16.xpose.msra.mxu0 %v1180
        %1184 = vmatprep.subr.bf16.mxu0 0
        %1185 = vmatpush1.bf16.xpose.msra.mxu0 0
        %1186 = vmatprep.subr.bf16.mxu0 0
        %1187 = vmatpush1.bf16.xpose.msra.mxu0 0
        %1188 = vmatprep.subr.bf16.mxu0 0
        %1189 = vmatpush1.bf16.xpose.msra.mxu0 0
        %1190 = vmatprep.subr.bf16.mxu0 0
        %1191 = vmatpush1.bf16.xpose.msra.mxu0 0
        %1192 = vmatprep.subr.bf16.mxu0 0
        %1193 = vmatpush1.bf16.xpose.msra.mxu0 0
        %1194 = vmatprep.subr.bf16.mxu0 0
        %1195 = vmatpush1.bf16.xpose.msra.mxu0 0
        %1196 = vmatprep.subr.bf16.mxu0 0
        %1197 = vmatpush1.bf16.xpose.msra.mxu0 0
        %1198 = vmatprep.subr.bf16.mxu0 0
        %1199 = vmatpush1.bf16.xpose.msra.mxu0 0
        %1200 = vmatprep.subr.bf16.mxu0 0
        %1201 = vmatpush1.bf16.xpose.msra.mxu0 0
        %1202 = vmatprep.subr.bf16.mxu0 0
        %1203 = vmatpush1.bf16.xpose.msra.mxu0 0
        %1204 = vmatprep.subr.bf16.mxu0 0
        %1205 = vmatpush1.bf16.xpose.msra.mxu0 0
        %1206 = vmatprep.subr.bf16.mxu0 0
        %1207 = vmatpush1.bf16.xpose.msra.mxu0 0
        %1208 = vmatprep.subr.bf16.mxu0 0
        %1209 = vmatpush1.bf16.xpose.msra.mxu0 0
        %1210 = vmatprep.subr.bf16.mxu0 0
        %1211 = vmatpush1.bf16.xpose.msra.mxu0 0
        %1212 = vmatprep.subr.bf16.mxu0 0
        %1213 = vmatpush1.bf16.xpose.msra.mxu0 0
        %1214 = vmatprep.mubr.bf16.mxu0 0
        %1215 = vmatmul.mubr.bf16.gmra.mrb[0].mxu0 %v1177
        %v1216 = vpop.f32.mrb[0].mxu0
        %v1217 = vadd.f32 %v808, %v1216
        %v1218 = vpop.f32.mrb[0].mxu0
        %v1219 = vpop.f32.mrb[0].mxu0
        %v1220 = vpop.f32.mrb[0].mxu0
        %1221 = vdwg.mxu0
        %v1222 = vsel %vm816, -10000.0, %v1217
        %v1223 = vsel %vm820, %v1222, -inf
        %1224 = vmax.xlane.f32.xlu0 %v1223
        %v1225 = vpop.xlane.xlu0 %1224
        %v1226 = vsub.f32 %v1222, %v1225
        %v1227 = vmul.f32 %v1226, 1.442695
        %v1228 = vpow.pop %v1227
        %v1229 = vsel %vm820, %v1228, 0.0
        %1230 = vadd.xlane.f32.xlu0 %v1229
        %v1231 = vpop.xlane.xlu0 %1230
        %v1232 = vrcp.pop %v1231
        %v1233 = vmul.f32 %v1228, %v1232
        %v1234 = vpack.c.bf16 %v1233, %v1233
        %1235 = vrot.lane.b32.xlu0 %v806, 40
        %v1236 = vpop.permute.xlu0 %1235
        %v1238 = vsel %vm820, %v1234, 0
        %v1241 = vsel %vm885, %v1236, 0
        %1243 = vmatprep.subr.bf16.mxu0 0
        %1244 = vmatpush1.bf16.msra.mxu0 %v1241
        %1245 = vmatprep.subr.bf16.mxu0 0
        %1246 = vmatpush1.bf16.msra.mxu0 0
        %1247 = vmatprep.subr.bf16.mxu0 0
        %1248 = vmatpush1.bf16.msra.mxu0 0
        %1249 = vmatprep.subr.bf16.mxu0 0
        %1250 = vmatpush1.bf16.msra.mxu0 0
        %1251 = vmatprep.subr.bf16.mxu0 0
        %1252 = vmatpush1.bf16.msra.mxu0 0
        %1253 = vmatprep.subr.bf16.mxu0 0
        %1254 = vmatpush1.bf16.msra.mxu0 0
        %1255 = vmatprep.subr.bf16.mxu0 0
        %1256 = vmatpush1.bf16.msra.mxu0 0
        %1257 = vmatprep.subr.bf16.mxu0 0
        %1258 = vmatpush1.bf16.msra.mxu0 0
        %1259 = vmatprep.subr.bf16.mxu0 0
        %1260 = vmatpush1.bf16.msra.mxu0 0
        %1261 = vmatprep.subr.bf16.mxu0 0
        %1262 = vmatpush1.bf16.msra.mxu0 0
        %1263 = vmatprep.subr.bf16.mxu0 0
        %1264 = vmatpush1.bf16.msra.mxu0 0
        %1265 = vmatprep.subr.bf16.mxu0 0
        %1266 = vmatpush1.bf16.msra.mxu0 0
        %1267 = vmatprep.subr.bf16.mxu0 0
        %1268 = vmatpush1.bf16.msra.mxu0 0
        %1269 = vmatprep.subr.bf16.mxu0 0
        %1270 = vmatpush1.bf16.msra.mxu0 0
        %1271 = vmatprep.subr.bf16.mxu0 0
        %1272 = vmatpush1.bf16.msra.mxu0 0
        %1273 = vmatprep.subr.bf16.mxu0 0
        %1274 = vmatpush1.bf16.msra.mxu0 0
        %1275 = vmatprep.mubr.bf16.mxu0 0
        %1276 = vmatmul.mubr.bf16.gmra.mrb[0].mxu0 %v1238
        %v1277 = vpop.f32.mrb[0].mxu0
        %v1278 = vadd.f32 0.0, %v1277
        %v1279 = vpop.f32.mrb[0].mxu0
        %v1280 = vpop.f32.mrb[0].mxu0
        %v1281 = vpop.f32.mrb[0].mxu0
        %1282 = vdwg.mxu0
        %v1283 = vpack.c.bf16 %v1278, %v1278
        %v1285 = vunpack.c.l.b16 %v1283
        %v1286 = vpack.c.b16 %v1285, %v1285
        %1287 = vrot.lane.b32.xlu0 %v1286, 24
        %v1288 = vpop.permute.xlu0 %1287
        %vm1290 = vcmask 257216
        %1291 = vst.msk [vmem:[#allocation2] sm:$0xf] %vm1290, %v1288
        %v1292 = vld [vmem:[#allocation2] sm:$0xf]
        %v1293 = vld [vmem:[#allocation12] sm:$0xf]
        %v1294 = vld [vmem:[#allocation12 + $0x4] sm:$0xf]
        %v1295 = vld [vmem:[#allocation12 + $0x8] sm:$0xf]
        %v1296 = vld [vmem:[#allocation12 + $0xc] sm:$0xf]
        %v1297 = vld [vmem:[#allocation14] sm:$0x1]
        %v1299 = vlaneseq
        %v1300 = vshrl.u32 %v1299, 7
        %v1301 = vsub.s32 0, %v1300
        %v1302 = vrot.slane %v1297, %v1301
        %v1308 = vunpack.c.l.b16 %v1293
        %v1309 = vunpack.c.l.b16 %v1294
        %v1310 = vunpack.c.l.b16 %v1295
        %v1311 = vunpack.c.l.b16 %v1296
        %v1312 = vpack.c.b16 %v1309, %v1308
        %v1313 = vpack.c.b16 %v1311, %v1310
        %v1317 = vsel %vm762, %v1292, 0
        %1319 = vmatprep.subr.bf16.mxu0 0
        %1320 = vmatpush1.bf16.msra.mxu0 %v1312
        %1321 = vmatprep.subr.bf16.mxu0 0
        %1322 = vmatpush1.bf16.msra.mxu0 %v1313
        %1323 = vmatprep.subr.bf16.mxu0 0
        %1324 = vmatpush1.bf16.msra.mxu0 0
        %1325 = vmatprep.subr.bf16.mxu0 0
        %1326 = vmatpush1.bf16.msra.mxu0 0
        %1327 = vmatprep.subr.bf16.mxu0 0
        %1328 = vmatpush1.bf16.msra.mxu0 0
        %1329 = vmatprep.subr.bf16.mxu0 0
        %1330 = vmatpush1.bf16.msra.mxu0 0
        %1331 = vmatprep.subr.bf16.mxu0 0
        %1332 = vmatpush1.bf16.msra.mxu0 0
        %1333 = vmatprep.subr.bf16.mxu0 0
        %1334 = vmatpush1.bf16.msra.mxu0 0
        %1335 = vmatprep.subr.bf16.mxu0 0
        %1336 = vmatpush1.bf16.msra.mxu0 0
        %1337 = vmatprep.subr.bf16.mxu0 0
        %1338 = vmatpush1.bf16.msra.mxu0 0
        %1339 = vmatprep.subr.bf16.mxu0 0
        %1340 = vmatpush1.bf16.msra.mxu0 0
        %1341 = vmatprep.subr.bf16.mxu0 0
        %1342 = vmatpush1.bf16.msra.mxu0 0
        %1343 = vmatprep.subr.bf16.mxu0 0
        %1344 = vmatpush1.bf16.msra.mxu0 0
        %1345 = vmatprep.subr.bf16.mxu0 0
        %1346 = vmatpush1.bf16.msra.mxu0 0
        %1347 = vmatprep.subr.bf16.mxu0 0
        %1348 = vmatpush1.bf16.msra.mxu0 0
        %1349 = vmatprep.subr.bf16.mxu0 0
        %1350 = vmatpush1.bf16.msra.mxu0 0
        %1351 = vmatprep.mubr.bf16.mxu0 0
        %1352 = vmatmul.mubr.bf16.gmra.mrb[0].mxu0 %v1317
        %v1353 = vpop.f32.mrb[0].mxu0
        %v1354 = vadd.f32 %v1302, %v1353
        %v1355 = vpop.f32.mrb[0].mxu0
        %v1356 = vpop.f32.mrb[0].mxu0
        %v1357 = vpop.f32.mrb[0].mxu0
        %1358 = vdwg.mxu0
        %v1359 = vadd.f32 %v737, %v1354
        %v1360 = vsel %vm762, %v1359, 0.0
        %1361 = vadd.xlane.f32.xlu0 %v1360
        %v1362 = vpop.xlane.xlu0 %1361
        %v1363 = vrcp.pop 32.0
        %v1364 = vmul.f32 %v1362, %v1363
        %v1365 = vsub.f32 %v1359, %v1364
        %v1366 = vmul.f32 %v1365, %v1365
        %v1367 = vsel %vm762, %v1366, 0.0
        %1368 = vadd.xlane.f32.xlu0 %v1367
        %v1369 = vpop.xlane.xlu0 %1368
        %v1370 = vmul.f32 %v1369, %v1363
        %v1371 = vadd.f32 %v1370, 1e-05
        %v1372 = vrsqrt.pop %v1371
        %v1373 = vmul.f32 %v1365, %v1372
        %v1374 = vld [vmem:[#allocation15] sm:$0x1]
        %v1376 = vlaneseq
        %v1377 = vshrl.u32 %v1376, 7
        %v1378 = vsub.s32 0, %v1377
        %v1379 = vrot.slane %v1374, %v1378
        %v1381 = vmul.f32 %v1373, %v1379
        %v1382 = vld [vmem:[#allocation17] sm:$0x1]
        %v1384 = vlaneseq
        %v1385 = vshrl.u32 %v1384, 7
        %v1386 = vsub.s32 0, %v1385
        %v1387 = vrot.slane %v1382, %v1386
        %v1389 = vadd.f32 %v1381, %v1387
        %v1390 = vpack.c.bf16 %v1389, %v1389
        %v1391 = vld [vmem:[#allocation18] sm:$0xf]
        %v1392 = vld [vmem:[#allocation18 + $0x4] sm:$0xf]
        %v1393 = vld [vmem:[#allocation18 + $0x8] sm:$0xf]
        %v1394 = vld [vmem:[#allocation18 + $0xc] sm:$0xf]
        %v1395 = vld [vmem:[#allocation20] sm:$0x1]
        %v1397 = vlaneseq
        %v1398 = vshrl.u32 %v1397, 7
        %v1399 = vsub.s32 0, %v1398
        %v1400 = vrot.slane %v1395, %v1399
        %v1406 = vunpack.c.l.b16 %v1391
        %v1407 = vunpack.c.l.b16 %v1392
        %v1408 = vunpack.c.l.b16 %v1393
        %v1409 = vunpack.c.l.b16 %v1394
        %v1410 = vpack.c.b16 %v1407, %v1406
        %v1411 = vpack.c.b16 %v1409, %v1408
        %v1415 = vsel %vm762, %v1390, 0
        %1417 = vmatprep.subr.bf16.mxu0 0
        %1418 = vmatpush1.bf16.msra.mxu0 %v1410
        %1419 = vmatprep.subr.bf16.mxu0 0
        %1420 = vmatpush1.bf16.msra.mxu0 %v1411
        %1421 = vmatprep.subr.bf16.mxu0 0
        %1422 = vmatpush1.bf16.msra.mxu0 0
        %1423 = vmatprep.subr.bf16.mxu0 0
        %1424 = vmatpush1.bf16.msra.mxu0 0
        %1425 = vmatprep.subr.bf16.mxu0 0
        %1426 = vmatpush1.bf16.msra.mxu0 0
        %1427 = vmatprep.subr.bf16.mxu0 0
        %1428 = vmatpush1.bf16.msra.mxu0 0
        %1429 = vmatprep.subr.bf16.mxu0 0
        %1430 = vmatpush1.bf16.msra.mxu0 0
        %1431 = vmatprep.subr.bf16.mxu0 0
        %1432 = vmatpush1.bf16.msra.mxu0 0
        %1433 = vmatprep.subr.bf16.mxu0 0
        %1434 = vmatpush1.bf16.msra.mxu0 0
        %1435 = vmatprep.subr.bf16.mxu0 0
        %1436 = vmatpush1.bf16.msra.mxu0 0
        %1437 = vmatprep.subr.bf16.mxu0 0
        %1438 = vmatpush1.bf16.msra.mxu0 0
        %1439 = vmatprep.subr.bf16.mxu0 0
        %1440 = vmatpush1.bf16.msra.mxu0 0
        %1441 = vmatprep.subr.bf16.mxu0 0
        %1442 = vmatpush1.bf16.msra.mxu0 0
        %1443 = vmatprep.subr.bf16.mxu0 0
        %1444 = vmatpush1.bf16.msra.mxu0 0
        %1445 = vmatprep.subr.bf16.mxu0 0
        %1446 = vmatpush1.bf16.msra.mxu0 0
        %1447 = vmatprep.subr.bf16.mxu0 0
        %1448 = vmatpush1.bf16.msra.mxu0 0
        %1449 = vmatprep.mubr.bf16.mxu0 0
        %1450 = vmatmul.mubr.bf16.gmra.mrb[0].mxu0 %v1415
        %v1451 = vpop.f32.mrb[0].mxu0
        %v1452 = vadd.f32 %v1400, %v1451
        %v1453 = vpop.f32.mrb[0].mxu0
        %v1454 = vpop.f32.mrb[0].mxu0
        %v1455 = vpop.f32.mrb[0].mxu0
        %1456 = vdwg.mxu0
        %v1457 = vmax.f32 %v1452, 0.0
        %v1458 = vpack.c.bf16 %v1457, %v1457
        %v1459 = vld [vmem:[#allocation21] sm:$0xf]
        %v1460 = vld [vmem:[#allocation21 + $0x4] sm:$0xf]
        %v1461 = vld [vmem:[#allocation21 + $0x8] sm:$0xf]
        %v1462 = vld [vmem:[#allocation21 + $0xc] sm:$0xf]
        %v1463 = vld [vmem:[#allocation21 + $0x10] sm:$0xf]
        %v1464 = vld [vmem:[#allocation21 + $0x14] sm:$0xf]
        %v1465 = vld [vmem:[#allocation21 + $0x18] sm:$0xf]
        %v1466 = vld [vmem:[#allocation21 + $0x1c] sm:$0xf]
        %v1467 = vld [vmem:[#allocation23] sm:$0x1]
        %v1469 = vlaneseq
        %v1470 = vshrl.u32 %v1469, 7
        %v1471 = vsub.s32 0, %v1470
        %v1472 = vrot.slane %v1467, %v1471
        %v1482 = vunpack.c.l.b16 %v1459
        %v1483 = vunpack.c.l.b16 %v1460
        %v1484 = vunpack.c.l.b16 %v1461
        %v1485 = vunpack.c.l.b16 %v1462
        %v1486 = vunpack.c.l.b16 %v1463
        %v1487 = vunpack.c.l.b16 %v1464
        %v1488 = vunpack.c.l.b16 %v1465
        %v1489 = vunpack.c.l.b16 %v1466
        %v1490 = vpack.c.b16 %v1483, %v1482
        %v1491 = vpack.c.b16 %v1485, %v1484
        %v1492 = vpack.c.b16 %v1487, %v1486
        %v1493 = vpack.c.b16 %v1489, %v1488
        %vm1498 = vcmask 523264
        %v1500 = vsel %vm1498, %v1458, 0
        %1502 = vmatprep.subr.bf16.mxu0 0
        %1503 = vmatpush1.bf16.msra.mxu0 %v1490
        %1504 = vmatprep.subr.bf16.mxu0 0
        %1505 = vmatpush1.bf16.msra.mxu0 %v1491
        %1506 = vmatprep.subr.bf16.mxu0 0
        %1507 = vmatpush1.bf16.msra.mxu0 %v1492
        %1508 = vmatprep.subr.bf16.mxu0 0
        %1509 = vmatpush1.bf16.msra.mxu0 %v1493
        %1510 = vmatprep.subr.bf16.mxu0 0
        %1511 = vmatpush1.bf16.msra.mxu0 0
        %1512 = vmatprep.subr.bf16.mxu0 0
        %1513 = vmatpush1.bf16.msra.mxu0 0
        %1514 = vmatprep.subr.bf16.mxu0 0
        %1515 = vmatpush1.bf16.msra.mxu0 0
        %1516 = vmatprep.subr.bf16.mxu0 0
        %1517 = vmatpush1.bf16.msra.mxu0 0
        %1518 = vmatprep.subr.bf16.mxu0 0
        %1519 = vmatpush1.bf16.msra.mxu0 0
        %1520 = vmatprep.subr.bf16.mxu0 0
        %1521 = vmatpush1.bf16.msra.mxu0 0
        %1522 = vmatprep.subr.bf16.mxu0 0
        %1523 = vmatpush1.bf16.msra.mxu0 0
        %1524 = vmatprep.subr.bf16.mxu0 0
        %1525 = vmatpush1.bf16.msra.mxu0 0
        %1526 = vmatprep.subr.bf16.mxu0 0
        %1527 = vmatpush1.bf16.msra.mxu0 0
        %1528 = vmatprep.subr.bf16.mxu0 0
        %1529 = vmatpush1.bf16.msra.mxu0 0
        %1530 = vmatprep.subr.bf16.mxu0 0
        %1531 = vmatpush1.bf16.msra.mxu0 0
        %1532 = vmatprep.subr.bf16.mxu0 0
        %1533 = vmatpush1.bf16.msra.mxu0 0
        %1534 = vmatprep.mubr.bf16.mxu0 0
        %1535 = vmatmul.mubr.bf16.gmra.mrb[0].mxu0 %v1500
        %v1536 = vpop.f32.mrb[0].mxu0
        %v1537 = vadd.f32 %v1472, %v1536
        %v1538 = vpop.f32.mrb[0].mxu0
        %v1539 = vpop.f32.mrb[0].mxu0
        %v1540 = vpop.f32.mrb[0].mxu0
        %1541 = vdwg.mxu0
        %v1542 = vadd.f32 %v1389, %v1537
        %v1543 = vsel %vm762, %v1542, 0.0
        %1544 = vadd.xlane.f32.xlu0 %v1543
        %v1545 = vpop.xlane.xlu0 %1544
        %v1546 = vmul.f32 %v1545, %v1363
        %v1547 = vsub.f32 %v1542, %v1546
        %v1548 = vmul.f32 %v1547, %v1547
        %v1549 = vsel %vm762, %v1548, 0.0
        %1550 = vadd.xlane.f32.xlu0 %v1549
        %v1551 = vpop.xlane.xlu0 %1550
        %v1552 = vmul.f32 %v1551, %v1363
        %v1553 = vadd.f32 %v1552, 1e-05
        %v1554 = vrsqrt.pop %v1553
        %v1555 = vmul.f32 %v1547, %v1554
        %v1556 = vld [vmem:[#allocation24] sm:$0x1]
        %v1558 = vlaneseq
        %v1559 = vshrl.u32 %v1558, 7
        %v1560 = vsub.s32 0, %v1559
        %v1561 = vrot.slane %v1556, %v1560
        %v1563 = vmul.f32 %v1555, %v1561
        %v1564 = vld [vmem:[#allocation26] sm:$0x1]
        %v1566 = vlaneseq
        %v1567 = vshrl.u32 %v1566, 7
        %v1568 = vsub.s32 0, %v1567
        %v1569 = vrot.slane %v1564, %v1568
        %v1571 = vadd.f32 %v1563, %v1569
        %1572 = vst.msk [vmem:[%s735] sm:$0xff] %vm762, %v1571
        %s1573 = sand.u32 %s379, 1
        %s1574 = scalar_lea.sflag [#allocation5], %s1573
        %s1575 = sand.u32 %s379, 1
        %s1576 = smul.addr %s1575, 8
        %s1577 = scalar_lea.vmem [#allocation27], %s1576
        // Predicated region
        $region141: #{tpu_custom_call.1} parent=79 // pred_check
          %p1578 = pneg %p389
        $region142: #{tpu_custom_call.1} parent=79 // pred_check_branch
          %1580 = sbr.rel (%p1578) target = $region144
        $region143: #{tpu_custom_call.1} parent=79 // pred_region
          %s1582 = ssub.s32 128, 128
          %1583 = vsyncadd %s1574, %s1582
          %s1584 = smul.addr %s41, 128
          %s1585 = scalar_lea.hbm %s15, %s1584
          %s1587 = sshll.u32 %s1577, 4
          %s1588 = int_to_ptr.vmem [resolvable:$true] %s1587
          %1590 = dma.vmem_to_hbm [thread:$0]  %s1588, 128, %s1585, %s1574
        $region144: #{tpu_custom_call.1} parent=79 // pred_fallthru
          _
      $region80: #{tpu_custom_call.1} parent=5 // pred_fallthru
        _
      %p1591 = scmp.le.s32.totalorder 2, %s36
      // Predicated region
      $region145: #{tpu_custom_call.1} parent=5 // pred_check
        %p1592 = pneg %p1591
      $region146: #{tpu_custom_call.1} parent=5 // pred_check_branch
        %1594 = sbr.rel (%p1592) target = $region148
      $region147: #{tpu_custom_call.1} parent=5 // pred_region
        %s1595 = ssub.s32 %s36, 2
        // Predicated region
        $region149: #{tpu_custom_call.1} parent=147 // pred_check
          %p1596 = pneg %p395
        $region150: #{tpu_custom_call.1} parent=147 // pred_check_branch
          %1598 = sbr.rel (%p1596) target = $region152
        $region151: #{tpu_custom_call.1} parent=147 // pred_region
          %s1599 = sand.u32 %s380, 1
          %s1600 = scalar_lea.sflag [#allocation5], %s1599
          %s1601 = sand.u32 %s380, 1
          %s1602 = smul.addr %s1601, 8
          %s1603 = scalar_lea.vmem [#allocation27], %s1602
          %1604 = dma.done %s1600, 128
        $region152: #{tpu_custom_call.1} parent=147 // pred_fallthru
          _
      $region148: #{tpu_custom_call.1} parent=5 // pred_fallthru
        _
    $region6: #{tpu_custom_call.1} parent=1 // loop_footer
      %s40 = sadd.s32 1, %s36
    $region7: #{tpu_custom_call.1} parent=1 // loop_footer_branch
      %35 = sbr.rel target = $region3
    $region8: #{tpu_custom_call.1} parent=1 // loop_exit
      _
    %1605 = vsyncpa [#allocation4], 1
    %s1606 = scalar_lea.sflag [#allocation4], 1
    %1607 = vsyncpa %s1606, 1
    %1608 = vsyncpa [#allocation7], 1
    %s1609 = scalar_lea.sflag [#allocation7], 1
    %1610 = vsyncpa %s1609, 1
    %1611 = vsyncpa [#allocation10], 1
    %1612 = vsyncpa [#allocation13], 1
    %1613 = vsyncpa [#allocation16], 1
    %1614 = vsyncpa [#allocation19], 1
    %1615 = vsyncpa [#allocation22], 1
    %1616 = vsyncpa [#allocation25], 1
    %1617 = vsyncpa [#allocation5], 1
    %s1618 = scalar_lea.sflag [#allocation5], 1
    %1619 = vsyncpa %s1618, 1

</llo_original>
